<compile_context>
chip_gen: v7x
topology: tpu7x:2x2x1
jax: 0.10.0
libtpu: 0.0.40
codegen_flags: <defaults>
</compile_context>

<pallas_src>
import jax
import jax.numpy as jnp
from jax import lax
from jax.experimental import pallas as pl
from jax.experimental.pallas import tpu as pltpu

NUM_CLASSES = 10
_VMEM = pltpu.MemorySpace.VMEM


# --------------------------------------------------------------------------
# Fused conv(5x5, valid) + bias + ReLU + maxpool(2x2)  as one kernel.
# patches: (4, rows, K)   -- im2col patches for the 4 pooling sub-positions
# wcol   : (K, Cout)      -- conv weights reshaped, K = k*k*Cin
# bias   : (1, Cout)
# out    : (rows, Cout)   -- rows = B * Hp * Wp (pooled spatial positions)
# --------------------------------------------------------------------------
def _conv_relu_pool_kernel(p_ref, w_ref, b_ref, o_ref):
    w = w_ref[...]
    b = b_ref[...]
    acc = jnp.dot(p_ref[0], w, preferred_element_type=jnp.float32) + b
    for pos in range(1, p_ref.shape[0]):          # static unroll (4 positions)
        y = jnp.dot(p_ref[pos], w, preferred_element_type=jnp.float32) + b
        acc = jnp.maximum(acc, y)                 # 2x2 max-pool
    o_ref[...] = jnp.maximum(acc, 0.0).astype(o_ref.dtype)   # ReLU


def conv_relu_pool(h_nhwc, w_oihw, bias, *, ksize=5, pool=2):
    """h_nhwc: (B,H,W,Cin); w_oihw: (Cout,Cin,k,k); bias: (Cout,)."""
    B, H, W, Cin = h_nhwc.shape
    Cout = w_oihw.shape[0]
    Ho, Wo = H - ksize + 1, W - ksize + 1
    Hp, Wp = Ho // pool, Wo // pool
    rows = B * Hp * Wp
    K = ksize * ksize * Cin

    # --- im2col glue (XLA): 25 shifted views -> (B, Ho, Wo, K), then the 4
    # pooling sub-grids (stride-2 views) -> (4, rows, K).
    taps = [h_nhwc[:, dy:dy + Ho, dx:dx + Wo, :]
            for dy in range(ksize) for dx in range(ksize)]
    full = jnp.concatenate(taps, axis=-1)                     # (B,Ho,Wo,K)
    patches = jnp.stack(
        [full[:, oy:oy + pool * Hp:pool, ox:ox + pool * Wp:pool, :]
         .reshape(rows, K)
         for oy in range(pool) for ox in range(pool)], axis=0)  # (4,rows,K)

    # (Cout,Cin,k,k) -> (k,k,Cin,Cout) -> (K,Cout); row = (dy*k+dx)*Cin + ci,
    # matching the tap-major / channel-minor ordering of `patches`.
    wcol = jnp.transpose(w_oihw, (2, 3, 1, 0)).reshape(K, Cout)
    b2 = bias.reshape(1, Cout)

    out = pl.pallas_call(
        _conv_relu_pool_kernel,
        out_shape=jax.ShapeDtypeStruct((rows, Cout), h_nhwc.dtype),
        in_specs=[pl.BlockSpec(memory_space=_VMEM)] * 3,
        out_specs=pl.BlockSpec(memory_space=_VMEM),
    )(patches, wcol, b2)
    return out.reshape(B, Hp, Wp, Cout)


# --------------------------------------------------------------------------
# Fused classifier head: fc1 + ReLU + fc2 + ReLU + fc3 + log_softmax
# --------------------------------------------------------------------------
def _mlp_head_kernel(x_ref, w1_ref, b1_ref, w2_ref, b2_ref, w3_ref, b3_ref,
                     o_ref):
    h = jnp.dot(x_ref[...], w1_ref[...], preferred_element_type=jnp.float32)
    h = jnp.maximum(h + b1_ref[...], 0.0)
    h = jnp.dot(h, w2_ref[...], preferred_element_type=jnp.float32)
    h = jnp.maximum(h + b2_ref[...], 0.0)
    logits = jnp.dot(h, w3_ref[...], preferred_element_type=jnp.float32)
    logits = logits + b3_ref[...]
    # numerically-stable log_softmax along the class (lane) axis
    m = jnp.max(logits, axis=-1, keepdims=True)
    lse = m + jnp.log(jnp.sum(jnp.exp(logits - m), axis=-1, keepdims=True))
    o_ref[...] = (logits - lse).astype(o_ref.dtype)


def mlp_head(x_flat, params):
    B = x_flat.shape[0]
    nc = params["fc3_w"].shape[1]
    return pl.pallas_call(
        _mlp_head_kernel,
        out_shape=jax.ShapeDtypeStruct((B, nc), x_flat.dtype),
        in_specs=[pl.BlockSpec(memory_space=_VMEM)] * 7,
        out_specs=pl.BlockSpec(memory_space=_VMEM),
    )(x_flat,
      params["fc1_w"], params["fc1_b"].reshape(1, -1),
      params["fc2_w"], params["fc2_b"].reshape(1, -1),
      params["fc3_w"], params["fc3_b"].reshape(1, -1))


# --------------------------------------------------------------------------
# Model: parameters + forward
# --------------------------------------------------------------------------
def init_params(key):
    ks = jax.random.split(key, 10)

    def unif(k, shape, fan_in):
        bound = 1.0 / (float(fan_in) ** 0.5)
        return jax.random.uniform(k, shape, jnp.float32, -bound, bound)

    return {
        "conv1_w": unif(ks[0], (6, 3, 5, 5), 3 * 25),
        "conv1_b": unif(ks[1], (6,), 3 * 25),
        "conv2_w": unif(ks[2], (16, 6, 5, 5), 6 * 25),
        "conv2_b": unif(ks[3], (16,), 6 * 25),
        "fc1_w": unif(ks[4], (400, 60), 400),
        "fc1_b": unif(ks[5], (60,), 400),
        "fc2_w": unif(ks[6], (60, 32), 60),
        "fc2_b": unif(ks[7], (32,), 60),
        "fc3_w": unif(ks[8], (32, NUM_CLASSES), 32),
        "fc3_b": unif(ks[9], (NUM_CLASSES,), 32),
    }


def cnn_cifar_forward(x_nchw, params):
    B = x_nchw.shape[0]
    h = jnp.transpose(x_nchw, (0, 2, 3, 1)).astype(jnp.float32)   # NHWC
    h = conv_relu_pool(h, params["conv1_w"], params["conv1_b"])   # (B,14,14,6)
    h = conv_relu_pool(h, params["conv2_w"], params["conv2_b"])   # (B,5,5,16)
    # x.view(-1, 16*5*5) flattens NCHW order -> transpose back before flatten.
    feat = jnp.transpose(h, (0, 3, 1, 2)).reshape(B, 16 * 5 * 5)  # (B,400)
    return mlp_head(feat, params)                                 # (B,10)


# Pure-JAX reference (XLA) for a runtime numerical sanity check.
def _reference_forward(x, params):
    h = lax.conv_general_dilated(
        x.astype(jnp.float32), params["conv1_w"], (1, 1), "VALID",
        dimension_numbers=("NCHW", "OIHW", "NCHW"))
    h = jax.nn.relu(h + params["conv1_b"].reshape(1, -1, 1, 1))
    h = lax.reduce_window(h, -jnp.inf, lax.max, (1, 1, 2, 2), (1, 1, 2, 2),
                          "VALID")
    h = lax.conv_general_dilated(
        h, params["conv2_w"], (1, 1), "VALID",
        dimension_numbers=("NCHW", "OIHW", "NCHW"))
    h = jax.nn.relu(h + params["conv2_b"].reshape(1, -1, 1, 1))
    h = lax.reduce_window(h, -jnp.inf, lax.max, (1, 1, 2, 2), (1, 1, 2, 2),
                          "VALID")
    f = h.reshape(h.shape[0], -1)
    f = jax.nn.relu(f @ params["fc1_w"] + params["fc1_b"])
    f = jax.nn.relu(f @ params["fc2_w"] + params["fc2_b"])
    logits = f @ params["fc3_w"] + params["fc3_b"]
    return jax.nn.log_softmax(logits, axis=-1)


if __name__ == "__main__":
    key = jax.random.PRNGKey(0)
    pkey, xkey = jax.random.split(key)
    params = init_params(pkey)
    x = jax.random.normal(xkey, (2, 3, 32, 32), jnp.float32)   # CIFAR-shaped

    fwd = jax.jit(cnn_cifar_forward)
    logits = fwd(x, params)
    jax.block_until_ready(logits)

    assert logits.shape == (2, NUM_CLASSES)
    assert bool(jnp.all(jnp.isfinite(logits)))
    # log-softmax rows must exponentiate to probabilities summing to 1
    assert bool(jnp.allclose(jnp.sum(jnp.exp(logits), axis=1), 1.0, atol=1e-4))
    # numerical agreement with the pure-XLA reference (loose tol: default
    # TPU matmul precision differs slightly between paths)
    ref = _reference_forward(x, params)
    assert bool(jnp.allclose(logits, ref, atol=5e-2, rtol=5e-2))

    print("KERNEL_OK")
</pallas_src>

<mosaic_0001>
module attributes {stable_mosaic.version = 11 : i64} {
  func.func @_conv_relu_pool_kernel(%arg0: memref<4x392x75xf32, #tpu.memory_space<vmem>>, %arg1: memref<75x6xf32, #tpu.memory_space<vmem>>, %arg2: memref<1x6xf32, #tpu.memory_space<vmem>>, %arg3: memref<392x6xf32, #tpu.memory_space<vmem>>) attributes {dimension_semantics = [], scalar_prefetch = 0 : i64, scratch_operands = 0 : i64, tpu.core_type = #tpu.core_type<tc>} {
    %c0 = arith.constant 0 : index
    %c0_0 = arith.constant 0 : index
    %0 = vector.load %arg1[%c0, %c0_0] : memref<75x6xf32, #tpu.memory_space<vmem>>, vector<75x6xf32>
    %c0_1 = arith.constant 0 : index
    %c0_2 = arith.constant 0 : index
    %1 = vector.load %arg2[%c0_1, %c0_2] : memref<1x6xf32, #tpu.memory_space<vmem>>, vector<1x6xf32>
    %c0_3 = arith.constant 0 : index
    %c0_4 = arith.constant 0 : index
    %c0_5 = arith.constant 0 : index
    %2 = vector.load %arg0[%c0_3, %c0_4, %c0_5] : memref<4x392x75xf32, #tpu.memory_space<vmem>>, vector<1x392x75xf32>
    %3 = vector.shape_cast %2 : vector<1x392x75xf32> to vector<392x75xf32>
    %cst = arith.constant dense<0.000000e+00> : vector<392x6xf32>
    %4 = tpu.matmul %3, %0, %cst {dimension_numbers = #tpu.dot_dimension_numbers<[1], [0], [0], [1], [0, 0, 1, 1], [], []>} : vector<392x75xf32>, vector<75x6xf32>, vector<392x6xf32> -> vector<392x6xf32>
    %5 = vector.broadcast %1 : vector<1x6xf32> to vector<392x6xf32>
    %6 = arith.addf %4, %5 : vector<392x6xf32>
    %c1 = arith.constant 1 : index
    %c0_6 = arith.constant 0 : index
    %c0_7 = arith.constant 0 : index
    %7 = vector.load %arg0[%c1, %c0_6, %c0_7] : memref<4x392x75xf32, #tpu.memory_space<vmem>>, vector<1x392x75xf32>
    %8 = vector.shape_cast %7 : vector<1x392x75xf32> to vector<392x75xf32>
    %cst_8 = arith.constant dense<0.000000e+00> : vector<392x6xf32>
    %9 = tpu.matmul %8, %0, %cst_8 {dimension_numbers = #tpu.dot_dimension_numbers<[1], [0], [0], [1], [0, 0, 1, 1], [], []>} : vector<392x75xf32>, vector<75x6xf32>, vector<392x6xf32> -> vector<392x6xf32>
    %10 = vector.broadcast %1 : vector<1x6xf32> to vector<392x6xf32>
    %11 = arith.addf %9, %10 : vector<392x6xf32>
    %12 = arith.maximumf %6, %11 : vector<392x6xf32>
    %c2 = arith.constant 2 : index
    %c0_9 = arith.constant 0 : index
    %c0_10 = arith.constant 0 : index
    %13 = vector.load %arg0[%c2, %c0_9, %c0_10] : memref<4x392x75xf32, #tpu.memory_space<vmem>>, vector<1x392x75xf32>
    %14 = vector.shape_cast %13 : vector<1x392x75xf32> to vector<392x75xf32>
    %cst_11 = arith.constant dense<0.000000e+00> : vector<392x6xf32>
    %15 = tpu.matmul %14, %0, %cst_11 {dimension_numbers = #tpu.dot_dimension_numbers<[1], [0], [0], [1], [0, 0, 1, 1], [], []>} : vector<392x75xf32>, vector<75x6xf32>, vector<392x6xf32> -> vector<392x6xf32>
    %16 = vector.broadcast %1 : vector<1x6xf32> to vector<392x6xf32>
    %17 = arith.addf %15, %16 : vector<392x6xf32>
    %18 = arith.maximumf %12, %17 : vector<392x6xf32>
    %c3 = arith.constant 3 : index
    %c0_12 = arith.constant 0 : index
    %c0_13 = arith.constant 0 : index
    %19 = vector.load %arg0[%c3, %c0_12, %c0_13] : memref<4x392x75xf32, #tpu.memory_space<vmem>>, vector<1x392x75xf32>
    %20 = vector.shape_cast %19 : vector<1x392x75xf32> to vector<392x75xf32>
    %cst_14 = arith.constant dense<0.000000e+00> : vector<392x6xf32>
    %21 = tpu.matmul %20, %0, %cst_14 {dimension_numbers = #tpu.dot_dimension_numbers<[1], [0], [0], [1], [0, 0, 1, 1], [], []>} : vector<392x75xf32>, vector<75x6xf32>, vector<392x6xf32> -> vector<392x6xf32>
    %22 = vector.broadcast %1 : vector<1x6xf32> to vector<392x6xf32>
    %23 = arith.addf %21, %22 : vector<392x6xf32>
    %24 = arith.maximumf %18, %23 : vector<392x6xf32>
    %cst_15 = arith.constant 0.000000e+00 : f32
    %25 = vector.broadcast %cst_15 : f32 to vector<392x6xf32>
    %26 = arith.maximumf %24, %25 : vector<392x6xf32>
    %c0_16 = arith.constant 0 : index
    %c0_17 = arith.constant 0 : index
    %27 = vector.load %arg3[%c0_16, %c0_17] : memref<392x6xf32, #tpu.memory_space<vmem>>, vector<392x6xf32>
    tpu.vector_store %arg3[%c0_16, %c0_17], %26 {strides = array<i32>} : memref<392x6xf32, #tpu.memory_space<vmem>>, vector<392x6xf32>,
    return
  }
}

module attributes {stable_mosaic.version = 11 : i64} {
  func.func @_conv_relu_pool_kernel(%arg0: memref<4x50x150xf32, #tpu.memory_space<vmem>>, %arg1: memref<150x16xf32, #tpu.memory_space<vmem>>, %arg2: memref<1x16xf32, #tpu.memory_space<vmem>>, %arg3: memref<50x16xf32, #tpu.memory_space<vmem>>) attributes {dimension_semantics = [], scalar_prefetch = 0 : i64, scratch_operands = 0 : i64, tpu.core_type = #tpu.core_type<tc>} {
    %c0 = arith.constant 0 : index
    %c0_0 = arith.constant 0 : index
    %0 = vector.load %arg1[%c0, %c0_0] : memref<150x16xf32, #tpu.memory_space<vmem>>, vector<150x16xf32>
    %c0_1 = arith.constant 0 : index
    %c0_2 = arith.constant 0 : index
    %1 = vector.load %arg2[%c0_1, %c0_2] : memref<1x16xf32, #tpu.memory_space<vmem>>, vector<1x16xf32>
    %c0_3 = arith.constant 0 : index
    %c0_4 = arith.constant 0 : index
    %c0_5 = arith.constant 0 : index
    %2 = vector.load %arg0[%c0_3, %c0_4, %c0_5] : memref<4x50x150xf32, #tpu.memory_space<vmem>>, vector<1x50x150xf32>
    %3 = vector.shape_cast %2 : vector<1x50x150xf32> to vector<50x150xf32>
    %cst = arith.constant dense<0.000000e+00> : vector<50x16xf32>
    %4 = tpu.matmul %3, %0, %cst {dimension_numbers = #tpu.dot_dimension_numbers<[1], [0], [0], [1], [0, 0, 1, 1], [], []>} : vector<50x150xf32>, vector<150x16xf32>, vector<50x16xf32> -> vector<50x16xf32>
    %5 = vector.broadcast %1 : vector<1x16xf32> to vector<50x16xf32>
    %6 = arith.addf %4, %5 : vector<50x16xf32>
    %c1 = arith.constant 1 : index
    %c0_6 = arith.constant 0 : index
    %c0_7 = arith.constant 0 : index
    %7 = vector.load %arg0[%c1, %c0_6, %c0_7] : memref<4x50x150xf32, #tpu.memory_space<vmem>>, vector<1x50x150xf32>
    %8 = vector.shape_cast %7 : vector<1x50x150xf32> to vector<50x150xf32>
    %cst_8 = arith.constant dense<0.000000e+00> : vector<50x16xf32>
    %9 = tpu.matmul %8, %0, %cst_8 {dimension_numbers = #tpu.dot_dimension_numbers<[1], [0], [0], [1], [0, 0, 1, 1], [], []>} : vector<50x150xf32>, vector<150x16xf32>, vector<50x16xf32> -> vector<50x16xf32>
    %10 = vector.broadcast %1 : vector<1x16xf32> to vector<50x16xf32>
    %11 = arith.addf %9, %10 : vector<50x16xf32>
    %12 = arith.maximumf %6, %11 : vector<50x16xf32>
    %c2 = arith.constant 2 : index
    %c0_9 = arith.constant 0 : index
    %c0_10 = arith.constant 0 : index
    %13 = vector.load %arg0[%c2, %c0_9, %c0_10] : memref<4x50x150xf32, #tpu.memory_space<vmem>>, vector<1x50x150xf32>
    %14 = vector.shape_cast %13 : vector<1x50x150xf32> to vector<50x150xf32>
    %cst_11 = arith.constant dense<0.000000e+00> : vector<50x16xf32>
    %15 = tpu.matmul %14, %0, %cst_11 {dimension_numbers = #tpu.dot_dimension_numbers<[1], [0], [0], [1], [0, 0, 1, 1], [], []>} : vector<50x150xf32>, vector<150x16xf32>, vector<50x16xf32> -> vector<50x16xf32>
    %16 = vector.broadcast %1 : vector<1x16xf32> to vector<50x16xf32>
    %17 = arith.addf %15, %16 : vector<50x16xf32>
    %18 = arith.maximumf %12, %17 : vector<50x16xf32>
    %c3 = arith.constant 3 : index
    %c0_12 = arith.constant 0 : index
    %c0_13 = arith.constant 0 : index
    %19 = vector.load %arg0[%c3, %c0_12, %c0_13] : memref<4x50x150xf32, #tpu.memory_space<vmem>>, vector<1x50x150xf32>
    %20 = vector.shape_cast %19 : vector<1x50x150xf32> to vector<50x150xf32>
    %cst_14 = arith.constant dense<0.000000e+00> : vector<50x16xf32>
    %21 = tpu.matmul %20, %0, %cst_14 {dimension_numbers = #tpu.dot_dimension_numbers<[1], [0], [0], [1], [0, 0, 1, 1], [], []>} : vector<50x150xf32>, vector<150x16xf32>, vector<50x16xf32> -> vector<50x16xf32>
    %22 = vector.broadcast %1 : vector<1x16xf32> to vector<50x16xf32>
    %23 = arith.addf %21, %22 : vector<50x16xf32>
    %24 = arith.maximumf %18, %23 : vector<50x16xf32>
    %cst_15 = arith.constant 0.000000e+00 : f32
    %25 = vector.broadcast %cst_15 : f32 to vector<50x16xf32>
    %26 = arith.maximumf %24, %25 : vector<50x16xf32>
    %c0_16 = arith.constant 0 : index
    %c0_17 = arith.constant 0 : index
    %27 = vector.load %arg3[%c0_16, %c0_17] : memref<50x16xf32, #tpu.memory_space<vmem>>, vector<50x16xf32>
    tpu.vector_store %arg3[%c0_16, %c0_17], %26 {strides = array<i32>} : memref<50x16xf32, #tpu.memory_space<vmem>>, vector<50x16xf32>,
    return
  }
}

module attributes {stable_mosaic.version = 11 : i64} {
  func.func @_mlp_head_kernel(%arg0: memref<2x400xf32, #tpu.memory_space<vmem>>, %arg1: memref<400x60xf32, #tpu.memory_space<vmem>>, %arg2: memref<1x60xf32, #tpu.memory_space<vmem>>, %arg3: memref<60x32xf32, #tpu.memory_space<vmem>>, %arg4: memref<1x32xf32, #tpu.memory_space<vmem>>, %arg5: memref<32x10xf32, #tpu.memory_space<vmem>>, %arg6: memref<1x10xf32, #tpu.memory_space<vmem>>, %arg7: memref<2x10xf32, #tpu.memory_space<vmem>>) attributes {dimension_semantics = [], scalar_prefetch = 0 : i64, scratch_operands = 0 : i64, tpu.core_type = #tpu.core_type<tc>} {
    %c0 = arith.constant 0 : index
    %c0_0 = arith.constant 0 : index
    %0 = vector.load %arg0[%c0, %c0_0] : memref<2x400xf32, #tpu.memory_space<vmem>>, vector<2x400xf32>
    %c0_1 = arith.constant 0 : index
    %c0_2 = arith.constant 0 : index
    %1 = vector.load %arg1[%c0_1, %c0_2] : memref<400x60xf32, #tpu.memory_space<vmem>>, vector<400x60xf32>
    %cst = arith.constant dense<0.000000e+00> : vector<2x60xf32>
    %2 = tpu.matmul %0, %1, %cst {dimension_numbers = #tpu.dot_dimension_numbers<[1], [0], [0], [1], [0, 0, 1, 1], [], []>} : vector<2x400xf32>, vector<400x60xf32>, vector<2x60xf32> -> vector<2x60xf32>
    %c0_3 = arith.constant 0 : index
    %c0_4 = arith.constant 0 : index
    %3 = vector.load %arg2[%c0_3, %c0_4] : memref<1x60xf32, #tpu.memory_space<vmem>>, vector<1x60xf32>
    %4 = vector.broadcast %3 : vector<1x60xf32> to vector<2x60xf32>
    %5 = arith.addf %2, %4 : vector<2x60xf32>
    %cst_5 = arith.constant 0.000000e+00 : f32
    %6 = vector.broadcast %cst_5 : f32 to vector<2x60xf32>
    %7 = arith.maximumf %5, %6 : vector<2x60xf32>
    %c0_6 = arith.constant 0 : index
    %c0_7 = arith.constant 0 : index
    %8 = vector.load %arg3[%c0_6, %c0_7] : memref<60x32xf32, #tpu.memory_space<vmem>>, vector<60x32xf32>
    %cst_8 = arith.constant dense<0.000000e+00> : vector<2x32xf32>
    %9 = tpu.matmul %7, %8, %cst_8 {dimension_numbers = #tpu.dot_dimension_numbers<[1], [0], [0], [1], [0, 0, 1, 1], [], []>} : vector<2x60xf32>, vector<60x32xf32>, vector<2x32xf32> -> vector<2x32xf32>
    %c0_9 = arith.constant 0 : index
    %c0_10 = arith.constant 0 : index
    %10 = vector.load %arg4[%c0_9, %c0_10] : memref<1x32xf32, #tpu.memory_space<vmem>>, vector<1x32xf32>
    %11 = vector.broadcast %10 : vector<1x32xf32> to vector<2x32xf32>
    %12 = arith.addf %9, %11 : vector<2x32xf32>
    %cst_11 = arith.constant 0.000000e+00 : f32
    %13 = vector.broadcast %cst_11 : f32 to vector<2x32xf32>
    %14 = arith.maximumf %12, %13 : vector<2x32xf32>
    %c0_12 = arith.constant 0 : index
    %c0_13 = arith.constant 0 : index
    %15 = vector.load %arg5[%c0_12, %c0_13] : memref<32x10xf32, #tpu.memory_space<vmem>>, vector<32x10xf32>
    %cst_14 = arith.constant dense<0.000000e+00> : vector<2x10xf32>
    %16 = tpu.matmul %14, %15, %cst_14 {dimension_numbers = #tpu.dot_dimension_numbers<[1], [0], [0], [1], [0, 0, 1, 1], [], []>} : vector<2x32xf32>, vector<32x10xf32>, vector<2x10xf32> -> vector<2x10xf32>
    %c0_15 = arith.constant 0 : index
    %c0_16 = arith.constant 0 : index
    %17 = vector.load %arg6[%c0_15, %c0_16] : memref<1x10xf32, #tpu.memory_space<vmem>>, vector<1x10xf32>
    %18 = vector.broadcast %17 : vector<1x10xf32> to vector<2x10xf32>
    %19 = arith.addf %16, %18 : vector<2x10xf32>
    %cst_17 = arith.constant dense<0xFF800000> : vector<2xf32>
    %20 = vector.multi_reduction <maximumf>, %19, %cst_17 [1] : vector<2x10xf32> to vector<2xf32>
    %21 = vector.shape_cast %20 : vector<2xf32> to vector<2x1xf32>
    %22 = vector.broadcast %21 : vector<2x1xf32> to vector<2x10xf32>
    %23 = arith.subf %19, %22 : vector<2x10xf32>
    %24 = math.exp %23 : vector<2x10xf32>
    %cst_18 = arith.constant dense<0.000000e+00> : vector<2xf32>
    %25 = vector.multi_reduction <add>, %24, %cst_18 [1] : vector<2x10xf32> to vector<2xf32>
    %26 = vector.shape_cast %25 : vector<2xf32> to vector<2x1xf32>
    %27 = math.log %26 : vector<2x1xf32>
    %28 = arith.addf %21, %27 : vector<2x1xf32>
    %29 = vector.broadcast %28 : vector<2x1xf32> to vector<2x10xf32>
    %30 = arith.subf %19, %29 : vector<2x10xf32>
    %c0_19 = arith.constant 0 : index
    %c0_20 = arith.constant 0 : index
    %31 = vector.load %arg7[%c0_19, %c0_20] : memref<2x10xf32, #tpu.memory_space<vmem>>, vector<2x10xf32>
    tpu.vector_store %arg7[%c0_19, %c0_20], %30 {strides = array<i32>} : memref<2x10xf32, #tpu.memory_space<vmem>>, vector<2x10xf32>,
    return
  }
}

</mosaic_0001>

<llo_original>
// kernel: cnn_cifar_forward.3
$region0: #{cnn_cifar_forward.3}
  #allocation0 [shape = 'u32[]', space=smem, size = 0x4, offset = 0x4, fixed_abs, tag = 'smem constant byte address 0x4 - core index']
  #allocation1 [shape = 'u32[144,128]{1,0:T(1,128)}', space=vmem, size = 0x12000, scoped, tag = 'internal scratch']
  %s0 = inlined_call_operand.vmem [shape: f32[4,392,75], index: 0, kind: input, shape index: {}]
  %s1 = inlined_call_operand.vmem [shape: f32[75,6], index: 1, kind: input, shape index: {}]
  %s2 = inlined_call_operand.vmem [shape: f32[1,6], index: 2, kind: input, shape index: {}]
  %s3 = inlined_call_operand.vmem [shape: f32[392,6], index: 3, kind: output, shape index: {}]
  %s4 = sld [smem:[#allocation0]]
  $region22: #{cnn_cifar_forward.3} parent=0
    _
  %s6 = ssub.s32 1, %s4
  %s7 = scalar_select 0, %s6, %s4
  // Predicated region
  $region2: #{cnn_cifar_forward.3} parent=0 // pred_check
    _
  $region3: #{cnn_cifar_forward.3} parent=0 // pred_check_branch
    %9 = sbr.rel (0) target = $region5
  $region4: #{cnn_cifar_forward.3} parent=0 // pred_region
    _
  $region5: #{cnn_cifar_forward.3} parent=0 // pred_fallthru
    _
  // Predicated region
  $region6: #{cnn_cifar_forward.3} parent=0 // pred_check
    _
  $region7: #{cnn_cifar_forward.3} parent=0 // pred_check_branch
    %11 = sbr.rel (0) target = $region9
  $region8: #{cnn_cifar_forward.3} parent=0 // pred_region
    _
  $region9: #{cnn_cifar_forward.3} parent=0 // pred_fallthru
    _
  // Predicated region
  $region10: #{cnn_cifar_forward.3} parent=0 // pred_check
    _
  $region11: #{cnn_cifar_forward.3} parent=0 // pred_check_branch
    %13 = sbr.rel (0) target = $region13
  $region12: #{cnn_cifar_forward.3} parent=0 // pred_region
    _
  $region13: #{cnn_cifar_forward.3} parent=0 // pred_fallthru
    _
  %v14 = vld [vmem:[%s1] sm:$0xff]
  %v15 = vld [vmem:[%s1 + $0x8] sm:$0xff]
  %v16 = vld [vmem:[%s1 + $0x10] sm:$0xff]
  %v17 = vld [vmem:[%s1 + $0x18] sm:$0xff]
  %v18 = vld [vmem:[%s1 + $0x20] sm:$0xff]
  %v19 = vld [vmem:[%s1 + $0x28] sm:$0xff]
  %v20 = vld [vmem:[%s1 + $0x30] sm:$0xff]
  %v21 = vld [vmem:[%s1 + $0x38] sm:$0xff]
  %v22 = vld [vmem:[%s1 + $0x40] sm:$0xff]
  %v23 = vld [vmem:[%s1 + $0x48] sm:$0x7]
  %v24 = vld [vmem:[%s2] sm:$0x1]
  %v25 = vld [vmem:[%s0] sm:$0xff]
  %v26 = vld [vmem:[%s0 + $0x8] sm:$0xff]
  %v27 = vld [vmem:[%s0 + $0x10] sm:$0xff]
  %v28 = vld [vmem:[%s0 + $0x18] sm:$0xff]
  %v29 = vld [vmem:[%s0 + $0x20] sm:$0xff]
  %v30 = vld [vmem:[%s0 + $0x28] sm:$0xff]
  %v31 = vld [vmem:[%s0 + $0x30] sm:$0xff]
  %v32 = vld [vmem:[%s0 + $0x38] sm:$0xff]
  %v33 = vld [vmem:[%s0 + $0x40] sm:$0xff]
  %v34 = vld [vmem:[%s0 + $0x48] sm:$0xff]
  %v35 = vld [vmem:[%s0 + $0x50] sm:$0xff]
  %v36 = vld [vmem:[%s0 + $0x58] sm:$0xff]
  %v37 = vld [vmem:[%s0 + $0x60] sm:$0xff]
  %v38 = vld [vmem:[%s0 + $0x68] sm:$0xff]
  %v39 = vld [vmem:[%s0 + $0x70] sm:$0xff]
  %v40 = vld [vmem:[%s0 + $0x78] sm:$0xff]
  %v41 = vld [vmem:[%s0 + $0x80] sm:$0xff]
  %v42 = vld [vmem:[%s0 + $0x88] sm:$0xff]
  %v43 = vld [vmem:[%s0 + $0x90] sm:$0xff]
  %v44 = vld [vmem:[%s0 + $0x98] sm:$0xff]
  %v45 = vld [vmem:[%s0 + $0xa0] sm:$0xff]
  %v46 = vld [vmem:[%s0 + $0xa8] sm:$0xff]
  %v47 = vld [vmem:[%s0 + $0xb0] sm:$0xff]
  %v48 = vld [vmem:[%s0 + $0xb8] sm:$0xff]
  %v49 = vld [vmem:[%s0 + $0xc0] sm:$0xff]
  %v50 = vld [vmem:[%s0 + $0xc8] sm:$0xff]
  %v51 = vld [vmem:[%s0 + $0xd0] sm:$0xff]
  %v52 = vld [vmem:[%s0 + $0xd8] sm:$0xff]
  %v53 = vld [vmem:[%s0 + $0xe0] sm:$0xff]
  %v54 = vld [vmem:[%s0 + $0xe8] sm:$0xff]
  %v55 = vld [vmem:[%s0 + $0xf0] sm:$0xff]
  %v56 = vld [vmem:[%s0 + $0xf8] sm:$0xff]
  %v57 = vld [vmem:[%s0 + $0x100] sm:$0xff]
  %v58 = vld [vmem:[%s0 + $0x108] sm:$0xff]
  %v59 = vld [vmem:[%s0 + $0x110] sm:$0xff]
  %v60 = vld [vmem:[%s0 + $0x118] sm:$0xff]
  %v61 = vld [vmem:[%s0 + $0x120] sm:$0xff]
  %v62 = vld [vmem:[%s0 + $0x128] sm:$0xff]
  %v63 = vld [vmem:[%s0 + $0x130] sm:$0xff]
  %v64 = vld [vmem:[%s0 + $0x138] sm:$0xff]
  %v65 = vld [vmem:[%s0 + $0x140] sm:$0xff]
  %v66 = vld [vmem:[%s0 + $0x148] sm:$0xff]
  %v67 = vld [vmem:[%s0 + $0x150] sm:$0xff]
  %v68 = vld [vmem:[%s0 + $0x158] sm:$0xff]
  %v69 = vld [vmem:[%s0 + $0x160] sm:$0xff]
  %v70 = vld [vmem:[%s0 + $0x168] sm:$0xff]
  %v71 = vld [vmem:[%s0 + $0x170] sm:$0xff]
  %v72 = vld [vmem:[%s0 + $0x178] sm:$0xff]
  %v73 = vld [vmem:[%s0 + $0x180] sm:$0xff]
  %v75 = vlaneseq
  %v76 = vshrl.u32 %v75, 7
  %v77 = vsub.s32 0, %v76
  %v78 = vrot.slane %v24, %v77
  %vm80 = vcmask 613376
  %v82 = vsel %vm80, %v25, 0
  %v85 = vsel %vm80, %v26, 0
  %v88 = vsel %vm80, %v27, 0
  %v91 = vsel %vm80, %v28, 0
  %v94 = vsel %vm80, %v29, 0
  %v97 = vsel %vm80, %v30, 0
  %v100 = vsel %vm80, %v31, 0
  %v103 = vsel %vm80, %v32, 0
  %v106 = vsel %vm80, %v33, 0
  %v109 = vsel %vm80, %v34, 0
  %v112 = vsel %vm80, %v35, 0
  %v115 = vsel %vm80, %v36, 0
  %v118 = vsel %vm80, %v37, 0
  %v121 = vsel %vm80, %v38, 0
  %v124 = vsel %vm80, %v39, 0
  %v127 = vsel %vm80, %v40, 0
  %v130 = vsel %vm80, %v41, 0
  %v133 = vsel %vm80, %v42, 0
  %v136 = vsel %vm80, %v43, 0
  %v139 = vsel %vm80, %v44, 0
  %v142 = vsel %vm80, %v45, 0
  %v145 = vsel %vm80, %v46, 0
  %v148 = vsel %vm80, %v47, 0
  %v151 = vsel %vm80, %v48, 0
  %v154 = vsel %vm80, %v49, 0
  %v157 = vsel %vm80, %v50, 0
  %v160 = vsel %vm80, %v51, 0
  %v163 = vsel %vm80, %v52, 0
  %v166 = vsel %vm80, %v53, 0
  %v169 = vsel %vm80, %v54, 0
  %v172 = vsel %vm80, %v55, 0
  %v175 = vsel %vm80, %v56, 0
  %v178 = vsel %vm80, %v57, 0
  %v181 = vsel %vm80, %v58, 0
  %v184 = vsel %vm80, %v59, 0
  %v187 = vsel %vm80, %v60, 0
  %v190 = vsel %vm80, %v61, 0
  %v193 = vsel %vm80, %v62, 0
  %v196 = vsel %vm80, %v63, 0
  %v199 = vsel %vm80, %v64, 0
  %v202 = vsel %vm80, %v65, 0
  %v205 = vsel %vm80, %v66, 0
  %v208 = vsel %vm80, %v67, 0
  %v211 = vsel %vm80, %v68, 0
  %v214 = vsel %vm80, %v69, 0
  %v217 = vsel %vm80, %v70, 0
  %v220 = vsel %vm80, %v71, 0
  %v223 = vsel %vm80, %v72, 0
  %v226 = vsel %vm80, %v73, 0
  %vm228 = vcmask 1042432
  %v230 = vsel %vm228, %v23, 0
  %232 = vmatprep.subr.mxu0 0.0
  %233 = vmatpush1.msra.mxu0 %v14
  %234 = vmatprep.subr.mxu0 0.0
  %235 = vmatpush1.msra.mxu0 %v15
  %236 = vmatprep.subr.mxu0 0.0
  %237 = vmatpush1.msra.mxu0 %v16
  %238 = vmatprep.subr.mxu0 0.0
  %239 = vmatpush1.msra.mxu0 %v17
  %240 = vmatprep.subr.mxu0 0.0
  %241 = vmatpush1.msra.mxu0 %v18
  %242 = vmatprep.subr.mxu0 0.0
  %243 = vmatpush1.msra.mxu0 %v19
  %244 = vmatprep.subr.mxu0 0.0
  %245 = vmatpush1.msra.mxu0 %v20
  %246 = vmatprep.subr.mxu0 0.0
  %247 = vmatpush1.msra.mxu0 %v21
  %248 = vmatprep.subr.mxu0 0.0
  %249 = vmatpush1.msra.mxu0 %v22
  %250 = vmatprep.subr.mxu0 0.0
  %251 = vmatpush1.msra.mxu0 %v230
  %252 = vmatprep.subr.mxu0 0.0
  %253 = vmatpush1.msra.mxu0 0.0
  %254 = vmatprep.subr.mxu0 0.0
  %255 = vmatpush1.msra.mxu0 0.0
  %256 = vmatprep.subr.mxu0 0.0
  %257 = vmatpush1.msra.mxu0 0.0
  %258 = vmatprep.subr.mxu0 0.0
  %259 = vmatpush1.msra.mxu0 0.0
  %260 = vmatprep.subr.mxu0 0.0
  %261 = vmatpush1.msra.mxu0 0.0
  %262 = vmatprep.subr.mxu0 0.0
  %263 = vmatpush1.msra.mxu0 0.0
  %264 = vmatprep.subr.mxu0 0.0
  %265 = vmatpush1.msra.mxu0 0.0
  %266 = vmatprep.subr.mxu0 0.0
  %267 = vmatpush1.msra.mxu0 0.0
  %268 = vmatprep.subr.mxu0 0.0
  %269 = vmatpush1.msra.mxu0 0.0
  %270 = vmatprep.subr.mxu0 0.0
  %271 = vmatpush1.msra.mxu0 0.0
  %272 = vmatprep.subr.mxu0 0.0
  %273 = vmatpush1.msra.mxu0 0.0
  %274 = vmatprep.subr.mxu0 0.0
  %275 = vmatpush1.msra.mxu0 0.0
  %276 = vmatprep.subr.mxu0 0.0
  %277 = vmatpush1.msra.mxu0 0.0
  %278 = vmatprep.subr.mxu0 0.0
  %279 = vmatpush1.msra.mxu0 0.0
  %280 = vmatprep.subr.mxu0 0.0
  %281 = vmatpush1.msra.mxu0 0.0
  %282 = vmatprep.subr.mxu0 0.0
  %283 = vmatpush1.msra.mxu0 0.0
  %284 = vmatprep.subr.mxu0 0.0
  %285 = vmatpush1.msra.mxu0 0.0
  %286 = vmatprep.subr.mxu0 0.0
  %287 = vmatpush1.msra.mxu0 0.0
  %288 = vmatprep.subr.mxu0 0.0
  %289 = vmatpush1.msra.mxu0 0.0
  %290 = vmatprep.subr.mxu0 0.0
  %291 = vmatpush1.msra.mxu0 0.0
  %292 = vmatprep.subr.mxu0 0.0
  %293 = vmatpush1.msra.mxu0 0.0
  %294 = vmatprep.subr.mxu0 0.0
  %295 = vmatpush1.msra.mxu0 0.0
  %296 = vmatprep.mubr.f32.mxu0 0.0
  %297 = vmatmul.mubr.f32.gmra.mrb[0].mxu0 %v82
  %v298 = vpop.f32.mrb[0].mxu0
  %v299 = vadd.f32 %v78, %v298
  %v300 = vpop.f32.mrb[0].mxu0
  %301 = vmatprep.mubr.f32.mxu0 0.0
  %302 = vmatmul.mubr.f32.gmra.mrb[0].mxu0 %v85
  %v303 = vpop.f32.mrb[0].mxu0
  %v304 = vadd.f32 %v78, %v303
  %v305 = vpop.f32.mrb[0].mxu0
  %306 = vmatprep.mubr.f32.mxu0 0.0
  %307 = vmatmul.mubr.f32.gmra.mrb[0].mxu0 %v88
  %v308 = vpop.f32.mrb[0].mxu0
  %v309 = vadd.f32 %v78, %v308
  %v310 = vpop.f32.mrb[0].mxu0
  %311 = vmatprep.mubr.f32.mxu0 0.0
  %312 = vmatmul.mubr.f32.gmra.mrb[0].mxu0 %v91
  %v313 = vpop.f32.mrb[0].mxu0
  %v314 = vadd.f32 %v78, %v313
  %v315 = vpop.f32.mrb[0].mxu0
  %316 = vmatprep.mubr.f32.mxu0 0.0
  %317 = vmatmul.mubr.f32.gmra.mrb[0].mxu0 %v94
  %v318 = vpop.f32.mrb[0].mxu0
  %v319 = vadd.f32 %v78, %v318
  %v320 = vpop.f32.mrb[0].mxu0
  %321 = vmatprep.mubr.f32.mxu0 0.0
  %322 = vmatmul.mubr.f32.gmra.mrb[0].mxu0 %v97
  %v323 = vpop.f32.mrb[0].mxu0
  %v324 = vadd.f32 %v78, %v323
  %v325 = vpop.f32.mrb[0].mxu0
  %326 = vmatprep.mubr.f32.mxu0 0.0
  %327 = vmatmul.mubr.f32.gmra.mrb[0].mxu0 %v100
  %v328 = vpop.f32.mrb[0].mxu0
  %v329 = vadd.f32 %v78, %v328
  %v330 = vpop.f32.mrb[0].mxu0
  %331 = vmatprep.mubr.f32.mxu0 0.0
  %332 = vmatmul.mubr.f32.gmra.mrb[0].mxu0 %v103
  %v333 = vpop.f32.mrb[0].mxu0
  %v334 = vadd.f32 %v78, %v333
  %v335 = vpop.f32.mrb[0].mxu0
  %336 = vmatprep.mubr.f32.mxu0 0.0
  %337 = vmatmul.mubr.f32.gmra.mrb[0].mxu0 %v106
  %v338 = vpop.f32.mrb[0].mxu0
  %v339 = vadd.f32 %v78, %v338
  %v340 = vpop.f32.mrb[0].mxu0
  %341 = vmatprep.mubr.f32.mxu0 0.0
  %342 = vmatmul.mubr.f32.gmra.mrb[0].mxu0 %v109
  %v343 = vpop.f32.mrb[0].mxu0
  %v344 = vadd.f32 %v78, %v343
  %v345 = vpop.f32.mrb[0].mxu0
  %346 = vmatprep.mubr.f32.mxu0 0.0
  %347 = vmatmul.mubr.f32.gmra.mrb[0].mxu0 %v112
  %v348 = vpop.f32.mrb[0].mxu0
  %v349 = vadd.f32 %v78, %v348
  %v350 = vpop.f32.mrb[0].mxu0
  %351 = vmatprep.mubr.f32.mxu0 0.0
  %352 = vmatmul.mubr.f32.gmra.mrb[0].mxu0 %v115
  %v353 = vpop.f32.mrb[0].mxu0
  %v354 = vadd.f32 %v78, %v353
  %v355 = vpop.f32.mrb[0].mxu0
  %356 = vmatprep.mubr.f32.mxu0 0.0
  %357 = vmatmul.mubr.f32.gmra.mrb[0].mxu0 %v118
  %v358 = vpop.f32.mrb[0].mxu0
  %v359 = vadd.f32 %v78, %v358
  %v360 = vpop.f32.mrb[0].mxu0
  %361 = vmatprep.mubr.f32.mxu0 0.0
  %362 = vmatmul.mubr.f32.gmra.mrb[0].mxu0 %v121
  %v363 = vpop.f32.mrb[0].mxu0
  %v364 = vadd.f32 %v78, %v363
  %v365 = vpop.f32.mrb[0].mxu0
  %366 = vmatprep.mubr.f32.mxu0 0.0
  %367 = vmatmul.mubr.f32.gmra.mrb[0].mxu0 %v124
  %v368 = vpop.f32.mrb[0].mxu0
  %v369 = vadd.f32 %v78, %v368
  %v370 = vpop.f32.mrb[0].mxu0
  %371 = vmatprep.mubr.f32.mxu0 0.0
  %372 = vmatmul.mubr.f32.gmra.mrb[0].mxu0 %v127
  %v373 = vpop.f32.mrb[0].mxu0
  %v374 = vadd.f32 %v78, %v373
  %v375 = vpop.f32.mrb[0].mxu0
  %376 = vmatprep.mubr.f32.mxu0 0.0
  %377 = vmatmul.mubr.f32.gmra.mrb[0].mxu0 %v130
  %v378 = vpop.f32.mrb[0].mxu0
  %v379 = vadd.f32 %v78, %v378
  %v380 = vpop.f32.mrb[0].mxu0
  %381 = vmatprep.mubr.f32.mxu0 0.0
  %382 = vmatmul.mubr.f32.gmra.mrb[0].mxu0 %v133
  %v383 = vpop.f32.mrb[0].mxu0
  %v384 = vadd.f32 %v78, %v383
  %v385 = vpop.f32.mrb[0].mxu0
  %386 = vmatprep.mubr.f32.mxu0 0.0
  %387 = vmatmul.mubr.f32.gmra.mrb[0].mxu0 %v136
  %v388 = vpop.f32.mrb[0].mxu0
  %v389 = vadd.f32 %v78, %v388
  %v390 = vpop.f32.mrb[0].mxu0
  %391 = vmatprep.mubr.f32.mxu0 0.0
  %392 = vmatmul.mubr.f32.gmra.mrb[0].mxu0 %v139
  %v393 = vpop.f32.mrb[0].mxu0
  %v394 = vadd.f32 %v78, %v393
  %v395 = vpop.f32.mrb[0].mxu0
  %396 = vmatprep.mubr.f32.mxu0 0.0
  %397 = vmatmul.mubr.f32.gmra.mrb[0].mxu0 %v142
  %v398 = vpop.f32.mrb[0].mxu0
  %v399 = vadd.f32 %v78, %v398
  %v400 = vpop.f32.mrb[0].mxu0
  %401 = vmatprep.mubr.f32.mxu0 0.0
  %402 = vmatmul.mubr.f32.gmra.mrb[0].mxu0 %v145
  %v403 = vpop.f32.mrb[0].mxu0
  %v404 = vadd.f32 %v78, %v403
  %v405 = vpop.f32.mrb[0].mxu0
  %406 = vmatprep.mubr.f32.mxu0 0.0
  %407 = vmatmul.mubr.f32.gmra.mrb[0].mxu0 %v148
  %v408 = vpop.f32.mrb[0].mxu0
  %v409 = vadd.f32 %v78, %v408
  %v410 = vpop.f32.mrb[0].mxu0
  %411 = vmatprep.mubr.f32.mxu0 0.0
  %412 = vmatmul.mubr.f32.gmra.mrb[0].mxu0 %v151
  %v413 = vpop.f32.mrb[0].mxu0
  %v414 = vadd.f32 %v78, %v413
  %v415 = vpop.f32.mrb[0].mxu0
  %416 = vmatprep.mubr.f32.mxu0 0.0
  %417 = vmatmul.mubr.f32.gmra.mrb[0].mxu0 %v154
  %v418 = vpop.f32.mrb[0].mxu0
  %v419 = vadd.f32 %v78, %v418
  %v420 = vpop.f32.mrb[0].mxu0
  %421 = vmatprep.mubr.f32.mxu0 0.0
  %422 = vmatmul.mubr.f32.gmra.mrb[0].mxu0 %v157
  %v423 = vpop.f32.mrb[0].mxu0
  %v424 = vadd.f32 %v78, %v423
  %v425 = vpop.f32.mrb[0].mxu0
  %426 = vmatprep.mubr.f32.mxu0 0.0
  %427 = vmatmul.mubr.f32.gmra.mrb[0].mxu0 %v160
  %v428 = vpop.f32.mrb[0].mxu0
  %v429 = vadd.f32 %v78, %v428
  %v430 = vpop.f32.mrb[0].mxu0
  %431 = vmatprep.mubr.f32.mxu0 0.0
  %432 = vmatmul.mubr.f32.gmra.mrb[0].mxu0 %v163
  %v433 = vpop.f32.mrb[0].mxu0
  %v434 = vadd.f32 %v78, %v433
  %v435 = vpop.f32.mrb[0].mxu0
  %436 = vmatprep.mubr.f32.mxu0 0.0
  %437 = vmatmul.mubr.f32.gmra.mrb[0].mxu0 %v166
  %v438 = vpop.f32.mrb[0].mxu0
  %v439 = vadd.f32 %v78, %v438
  %v440 = vpop.f32.mrb[0].mxu0
  %441 = vmatprep.mubr.f32.mxu0 0.0
  %442 = vmatmul.mubr.f32.gmra.mrb[0].mxu0 %v169
  %v443 = vpop.f32.mrb[0].mxu0
  %v444 = vadd.f32 %v78, %v443
  %v445 = vpop.f32.mrb[0].mxu0
  %446 = vmatprep.mubr.f32.mxu0 0.0
  %447 = vmatmul.mubr.f32.gmra.mrb[0].mxu0 %v172
  %v448 = vpop.f32.mrb[0].mxu0
  %v449 = vadd.f32 %v78, %v448
  %v450 = vpop.f32.mrb[0].mxu0
  %451 = vmatprep.mubr.f32.mxu0 0.0
  %452 = vmatmul.mubr.f32.gmra.mrb[0].mxu0 %v175
  %v453 = vpop.f32.mrb[0].mxu0
  %v454 = vadd.f32 %v78, %v453
  %v455 = vpop.f32.mrb[0].mxu0
  %456 = vmatprep.mubr.f32.mxu0 0.0
  %457 = vmatmul.mubr.f32.gmra.mrb[0].mxu0 %v178
  %v458 = vpop.f32.mrb[0].mxu0
  %v459 = vadd.f32 %v78, %v458
  %v460 = vpop.f32.mrb[0].mxu0
  %461 = vmatprep.mubr.f32.mxu0 0.0
  %462 = vmatmul.mubr.f32.gmra.mrb[0].mxu0 %v181
  %v463 = vpop.f32.mrb[0].mxu0
  %v464 = vadd.f32 %v78, %v463
  %v465 = vpop.f32.mrb[0].mxu0
  %466 = vmatprep.mubr.f32.mxu0 0.0
  %467 = vmatmul.mubr.f32.gmra.mrb[0].mxu0 %v184
  %v468 = vpop.f32.mrb[0].mxu0
  %v469 = vadd.f32 %v78, %v468
  %v470 = vpop.f32.mrb[0].mxu0
  %471 = vmatprep.mubr.f32.mxu0 0.0
  %472 = vmatmul.mubr.f32.gmra.mrb[0].mxu0 %v187
  %v473 = vpop.f32.mrb[0].mxu0
  %v474 = vadd.f32 %v78, %v473
  %v475 = vpop.f32.mrb[0].mxu0
  %476 = vmatprep.mubr.f32.mxu0 0.0
  %477 = vmatmul.mubr.f32.gmra.mrb[0].mxu0 %v190
  %v478 = vpop.f32.mrb[0].mxu0
  %v479 = vadd.f32 %v78, %v478
  %v480 = vpop.f32.mrb[0].mxu0
  %481 = vmatprep.mubr.f32.mxu0 0.0
  %482 = vmatmul.mubr.f32.gmra.mrb[0].mxu0 %v193
  %v483 = vpop.f32.mrb[0].mxu0
  %v484 = vadd.f32 %v78, %v483
  %v485 = vpop.f32.mrb[0].mxu0
  %486 = vmatprep.mubr.f32.mxu0 0.0
  %487 = vmatmul.mubr.f32.gmra.mrb[0].mxu0 %v196
  %v488 = vpop.f32.mrb[0].mxu0
  %v489 = vadd.f32 %v78, %v488
  %v490 = vpop.f32.mrb[0].mxu0
  %491 = vmatprep.mubr.f32.mxu0 0.0
  %492 = vmatmul.mubr.f32.gmra.mrb[0].mxu0 %v199
  %v493 = vpop.f32.mrb[0].mxu0
  %v494 = vadd.f32 %v78, %v493
  %v495 = vpop.f32.mrb[0].mxu0
  %496 = vmatprep.mubr.f32.mxu0 0.0
  %497 = vmatmul.mubr.f32.gmra.mrb[0].mxu0 %v202
  %v498 = vpop.f32.mrb[0].mxu0
  %v499 = vadd.f32 %v78, %v498
  %v500 = vpop.f32.mrb[0].mxu0
  %501 = vmatprep.mubr.f32.mxu0 0.0
  %502 = vmatmul.mubr.f32.gmra.mrb[0].mxu0 %v205
  %v503 = vpop.f32.mrb[0].mxu0
  %v504 = vadd.f32 %v78, %v503
  %v505 = vpop.f32.mrb[0].mxu0
  %506 = vmatprep.mubr.f32.mxu0 0.0
  %507 = vmatmul.mubr.f32.gmra.mrb[0].mxu0 %v208
  %v508 = vpop.f32.mrb[0].mxu0
  %v509 = vadd.f32 %v78, %v508
  %v510 = vpop.f32.mrb[0].mxu0
  %511 = vmatprep.mubr.f32.mxu0 0.0
  %512 = vmatmul.mubr.f32.gmra.mrb[0].mxu0 %v211
  %v513 = vpop.f32.mrb[0].mxu0
  %v514 = vadd.f32 %v78, %v513
  %v515 = vpop.f32.mrb[0].mxu0
  %516 = vmatprep.mubr.f32.mxu0 0.0
  %517 = vmatmul.mubr.f32.gmra.mrb[0].mxu0 %v214
  %v518 = vpop.f32.mrb[0].mxu0
  %v519 = vadd.f32 %v78, %v518
  %v520 = vpop.f32.mrb[0].mxu0
  %521 = vmatprep.mubr.f32.mxu0 0.0
  %522 = vmatmul.mubr.f32.gmra.mrb[0].mxu0 %v217
  %v523 = vpop.f32.mrb[0].mxu0
  %v524 = vadd.f32 %v78, %v523
  %v525 = vpop.f32.mrb[0].mxu0
  %526 = vmatprep.mubr.f32.mxu0 0.0
  %527 = vmatmul.mubr.f32.gmra.mrb[0].mxu0 %v220
  %v528 = vpop.f32.mrb[0].mxu0
  %v529 = vadd.f32 %v78, %v528
  %v530 = vpop.f32.mrb[0].mxu0
  %531 = vmatprep.mubr.f32.mxu0 0.0
  %532 = vmatmul.mubr.f32.gmra.mrb[0].mxu0 %v223
  %v533 = vpop.f32.mrb[0].mxu0
  %v534 = vadd.f32 %v78, %v533
  %v535 = vpop.f32.mrb[0].mxu0
  %536 = vmatprep.mubr.f32.mxu0 0.0
  %537 = vmatmul.mubr.f32.gmra.mrb[0].mxu0 %v226
  %v538 = vpop.f32.mrb[0].mxu0
  %v539 = vadd.f32 %v78, %v538
  %v540 = vpop.f32.mrb[0].mxu0
  %541 = vdwg.mxu0
  %s542 = scalar_lea.vmem %s0, 392
  %v543 = vld [vmem:[%s542] sm:$0xff]
  %v544 = vld [vmem:[%s542 + $0x8] sm:$0xff]
  %v545 = vld [vmem:[%s542 + $0x10] sm:$0xff]
  %v546 = vld [vmem:[%s542 + $0x18] sm:$0xff]
  %v547 = vld [vmem:[%s542 + $0x20] sm:$0xff]
  %v548 = vld [vmem:[%s542 + $0x28] sm:$0xff]
  %v549 = vld [vmem:[%s542 + $0x30] sm:$0xff]
  %v550 = vld [vmem:[%s542 + $0x38] sm:$0xff]
  %v551 = vld [vmem:[%s542 + $0x40] sm:$0xff]
  %v552 = vld [vmem:[%s542 + $0x48] sm:$0xff]
  %v553 = vld [vmem:[%s542 + $0x50] sm:$0xff]
  %v554 = vld [vmem:[%s542 + $0x58] sm:$0xff]
  %v555 = vld [vmem:[%s542 + $0x60] sm:$0xff]
  %v556 = vld [vmem:[%s542 + $0x68] sm:$0xff]
  %v557 = vld [vmem:[%s542 + $0x70] sm:$0xff]
  %v558 = vld [vmem:[%s542 + $0x78] sm:$0xff]
  %v559 = vld [vmem:[%s542 + $0x80] sm:$0xff]
  %v560 = vld [vmem:[%s542 + $0x88] sm:$0xff]
  %v561 = vld [vmem:[%s542 + $0x90] sm:$0xff]
  %v562 = vld [vmem:[%s542 + $0x98] sm:$0xff]
  %v563 = vld [vmem:[%s542 + $0xa0] sm:$0xff]
  %v564 = vld [vmem:[%s542 + $0xa8] sm:$0xff]
  %v565 = vld [vmem:[%s542 + $0xb0] sm:$0xff]
  %v566 = vld [vmem:[%s542 + $0xb8] sm:$0xff]
  %v567 = vld [vmem:[%s542 + $0xc0] sm:$0xff]
  %v568 = vld [vmem:[%s542 + $0xc8] sm:$0xff]
  %v569 = vld [vmem:[%s542 + $0xd0] sm:$0xff]
  %v570 = vld [vmem:[%s542 + $0xd8] sm:$0xff]
  %v571 = vld [vmem:[%s542 + $0xe0] sm:$0xff]
  %v572 = vld [vmem:[%s542 + $0xe8] sm:$0xff]
  %v573 = vld [vmem:[%s542 + $0xf0] sm:$0xff]
  %v574 = vld [vmem:[%s542 + $0xf8] sm:$0xff]
  %v575 = vld [vmem:[%s542 + $0x100] sm:$0xff]
  %v576 = vld [vmem:[%s542 + $0x108] sm:$0xff]
  %v577 = vld [vmem:[%s542 + $0x110] sm:$0xff]
  %v578 = vld [vmem:[%s542 + $0x118] sm:$0xff]
  %v579 = vld [vmem:[%s542 + $0x120] sm:$0xff]
  %v580 = vld [vmem:[%s542 + $0x128] sm:$0xff]
  %v581 = vld [vmem:[%s542 + $0x130] sm:$0xff]
  %v582 = vld [vmem:[%s542 + $0x138] sm:$0xff]
  %v583 = vld [vmem:[%s542 + $0x140] sm:$0xff]
  %v584 = vld [vmem:[%s542 + $0x148] sm:$0xff]
  %v585 = vld [vmem:[%s542 + $0x150] sm:$0xff]
  %v586 = vld [vmem:[%s542 + $0x158] sm:$0xff]
  %v587 = vld [vmem:[%s542 + $0x160] sm:$0xff]
  %v588 = vld [vmem:[%s542 + $0x168] sm:$0xff]
  %v589 = vld [vmem:[%s542 + $0x170] sm:$0xff]
  %v590 = vld [vmem:[%s542 + $0x178] sm:$0xff]
  %v591 = vld [vmem:[%s542 + $0x180] sm:$0xff]
  %v593 = vsel %vm80, %v543, 0
  %v596 = vsel %vm80, %v544, 0
  %v599 = vsel %vm80, %v545, 0
  %v602 = vsel %vm80, %v546, 0
  %v605 = vsel %vm80, %v547, 0
  %v608 = vsel %vm80, %v548, 0
  %v611 = vsel %vm80, %v549, 0
  %v614 = vsel %vm80, %v550, 0
  %v617 = vsel %vm80, %v551, 0
  %v620 = vsel %vm80, %v552, 0
  %v623 = vsel %vm80, %v553, 0
  %v626 = vsel %vm80, %v554, 0
  %v629 = vsel %vm80, %v555, 0
  %v632 = vsel %vm80, %v556, 0
  %v635 = vsel %vm80, %v557, 0
  %v638 = vsel %vm80, %v558, 0
  %v641 = vsel %vm80, %v559, 0
  %v644 = vsel %vm80, %v560, 0
  %v647 = vsel %vm80, %v561, 0
  %v650 = vsel %vm80, %v562, 0
  %v653 = vsel %vm80, %v563, 0
  %v656 = vsel %vm80, %v564, 0
  %v659 = vsel %vm80, %v565, 0
  %v662 = vsel %vm80, %v566, 0
  %v665 = vsel %vm80, %v567, 0
  %v668 = vsel %vm80, %v568, 0
  %v671 = vsel %vm80, %v569, 0
  %v674 = vsel %vm80, %v570, 0
  %v677 = vsel %vm80, %v571, 0
  %v680 = vsel %vm80, %v572, 0
  %v683 = vsel %vm80, %v573, 0
  %v686 = vsel %vm80, %v574, 0
  %v689 = vsel %vm80, %v575, 0
  %v692 = vsel %vm80, %v576, 0
  %v695 = vsel %vm80, %v577, 0
  %v698 = vsel %vm80, %v578, 0
  %v701 = vsel %vm80, %v579, 0
  %v704 = vsel %vm80, %v580, 0
  %v707 = vsel %vm80, %v581, 0
  %v710 = vsel %vm80, %v582, 0
  %v713 = vsel %vm80, %v583, 0
  %v716 = vsel %vm80, %v584, 0
  %v719 = vsel %vm80, %v585, 0
  %v722 = vsel %vm80, %v586, 0
  %v725 = vsel %vm80, %v587, 0
  %v728 = vsel %vm80, %v588, 0
  %v731 = vsel %vm80, %v589, 0
  %v734 = vsel %vm80, %v590, 0
  %v737 = vsel %vm80, %v591, 0
  %739 = vmatprep.subr.mxu0 0.0
  %740 = vmatpush1.msra.mxu0 %v14
  %741 = vmatprep.subr.mxu0 0.0
  %742 = vmatpush1.msra.mxu0 %v15
  %743 = vmatprep.subr.mxu0 0.0
  %744 = vmatpush1.msra.mxu0 %v16
  %745 = vmatprep.subr.mxu0 0.0
  %746 = vmatpush1.msra.mxu0 %v17
  %747 = vmatprep.subr.mxu0 0.0
  %748 = vmatpush1.msra.mxu0 %v18
  %749 = vmatprep.subr.mxu0 0.0
  %750 = vmatpush1.msra.mxu0 %v19
  %751 = vmatprep.subr.mxu0 0.0
  %752 = vmatpush1.msra.mxu0 %v20
  %753 = vmatprep.subr.mxu0 0.0
  %754 = vmatpush1.msra.mxu0 %v21
  %755 = vmatprep.subr.mxu0 0.0
  %756 = vmatpush1.msra.mxu0 %v22
  %757 = vmatprep.subr.mxu0 0.0
  %758 = vmatpush1.msra.mxu0 %v230
  %759 = vmatprep.subr.mxu0 0.0
  %760 = vmatpush1.msra.mxu0 0.0
  %761 = vmatprep.subr.mxu0 0.0
  %762 = vmatpush1.msra.mxu0 0.0
  %763 = vmatprep.subr.mxu0 0.0
  %764 = vmatpush1.msra.mxu0 0.0
  %765 = vmatprep.subr.mxu0 0.0
  %766 = vmatpush1.msra.mxu0 0.0
  %767 = vmatprep.subr.mxu0 0.0
  %768 = vmatpush1.msra.mxu0 0.0
  %769 = vmatprep.subr.mxu0 0.0
  %770 = vmatpush1.msra.mxu0 0.0
  %771 = vmatprep.subr.mxu0 0.0
  %772 = vmatpush1.msra.mxu0 0.0
  %773 = vmatprep.subr.mxu0 0.0
  %774 = vmatpush1.msra.mxu0 0.0
  %775 = vmatprep.subr.mxu0 0.0
  %776 = vmatpush1.msra.mxu0 0.0
  %777 = vmatprep.subr.mxu0 0.0
  %778 = vmatpush1.msra.mxu0 0.0
  %779 = vmatprep.subr.mxu0 0.0
  %780 = vmatpush1.msra.mxu0 0.0
  %781 = vmatprep.subr.mxu0 0.0
  %782 = vmatpush1.msra.mxu0 0.0
  %783 = vmatprep.subr.mxu0 0.0
  %784 = vmatpush1.msra.mxu0 0.0
  %785 = vmatprep.subr.mxu0 0.0
  %786 = vmatpush1.msra.mxu0 0.0
  %787 = vmatprep.subr.mxu0 0.0
  %788 = vmatpush1.msra.mxu0 0.0
  %789 = vmatprep.subr.mxu0 0.0
  %790 = vmatpush1.msra.mxu0 0.0
  %791 = vmatprep.subr.mxu0 0.0
  %792 = vmatpush1.msra.mxu0 0.0
  %793 = vmatprep.subr.mxu0 0.0
  %794 = vmatpush1.msra.mxu0 0.0
  %795 = vmatprep.subr.mxu0 0.0
  %796 = vmatpush1.msra.mxu0 0.0
  %797 = vmatprep.subr.mxu0 0.0
  %798 = vmatpush1.msra.mxu0 0.0
  %799 = vmatprep.subr.mxu0 0.0
  %800 = vmatpush1.msra.mxu0 0.0
  %801 = vmatprep.subr.mxu0 0.0
  %802 = vmatpush1.msra.mxu0 0.0
  %803 = vmatprep.mubr.f32.mxu0 0.0
  %804 = vmatmul.mubr.f32.gmra.mrb[0].mxu0 %v593
  %v805 = vpop.f32.mrb[0].mxu0
  %v806 = vadd.f32 %v78, %v805
  %v807 = vpop.f32.mrb[0].mxu0
  %808 = vmatprep.mubr.f32.mxu0 0.0
  %809 = vmatmul.mubr.f32.gmra.mrb[0].mxu0 %v596
  %v810 = vpop.f32.mrb[0].mxu0
  %v811 = vadd.f32 %v78, %v810
  %v812 = vpop.f32.mrb[0].mxu0
  %813 = vmatprep.mubr.f32.mxu0 0.0
  %814 = vmatmul.mubr.f32.gmra.mrb[0].mxu0 %v599
  %v815 = vpop.f32.mrb[0].mxu0
  %v816 = vadd.f32 %v78, %v815
  %v817 = vpop.f32.mrb[0].mxu0
  %818 = vmatprep.mubr.f32.mxu0 0.0
  %819 = vmatmul.mubr.f32.gmra.mrb[0].mxu0 %v602
  %v820 = vpop.f32.mrb[0].mxu0
  %v821 = vadd.f32 %v78, %v820
  %v822 = vpop.f32.mrb[0].mxu0
  %823 = vmatprep.mubr.f32.mxu0 0.0
  %824 = vmatmul.mubr.f32.gmra.mrb[0].mxu0 %v605
  %v825 = vpop.f32.mrb[0].mxu0
  %v826 = vadd.f32 %v78, %v825
  %v827 = vpop.f32.mrb[0].mxu0
  %828 = vmatprep.mubr.f32.mxu0 0.0
  %829 = vmatmul.mubr.f32.gmra.mrb[0].mxu0 %v608
  %v830 = vpop.f32.mrb[0].mxu0
  %v831 = vadd.f32 %v78, %v830
  %v832 = vpop.f32.mrb[0].mxu0
  %833 = vmatprep.mubr.f32.mxu0 0.0
  %834 = vmatmul.mubr.f32.gmra.mrb[0].mxu0 %v611
  %v835 = vpop.f32.mrb[0].mxu0
  %v836 = vadd.f32 %v78, %v835
  %v837 = vpop.f32.mrb[0].mxu0
  %838 = vmatprep.mubr.f32.mxu0 0.0
  %839 = vmatmul.mubr.f32.gmra.mrb[0].mxu0 %v614
  %v840 = vpop.f32.mrb[0].mxu0
  %v841 = vadd.f32 %v78, %v840
  %v842 = vpop.f32.mrb[0].mxu0
  %843 = vmatprep.mubr.f32.mxu0 0.0
  %844 = vmatmul.mubr.f32.gmra.mrb[0].mxu0 %v617
  %v845 = vpop.f32.mrb[0].mxu0
  %v846 = vadd.f32 %v78, %v845
  %v847 = vpop.f32.mrb[0].mxu0
  %848 = vmatprep.mubr.f32.mxu0 0.0
  %849 = vmatmul.mubr.f32.gmra.mrb[0].mxu0 %v620
  %v850 = vpop.f32.mrb[0].mxu0
  %v851 = vadd.f32 %v78, %v850
  %v852 = vpop.f32.mrb[0].mxu0
  %853 = vmatprep.mubr.f32.mxu0 0.0
  %854 = vmatmul.mubr.f32.gmra.mrb[0].mxu0 %v623
  %v855 = vpop.f32.mrb[0].mxu0
  %v856 = vadd.f32 %v78, %v855
  %v857 = vpop.f32.mrb[0].mxu0
  %858 = vmatprep.mubr.f32.mxu0 0.0
  %859 = vmatmul.mubr.f32.gmra.mrb[0].mxu0 %v626
  %v860 = vpop.f32.mrb[0].mxu0
  %v861 = vadd.f32 %v78, %v860
  %v862 = vpop.f32.mrb[0].mxu0
  %863 = vmatprep.mubr.f32.mxu0 0.0
  %864 = vmatmul.mubr.f32.gmra.mrb[0].mxu0 %v629
  %v865 = vpop.f32.mrb[0].mxu0
  %v866 = vadd.f32 %v78, %v865
  %v867 = vpop.f32.mrb[0].mxu0
  %868 = vmatprep.mubr.f32.mxu0 0.0
  %869 = vmatmul.mubr.f32.gmra.mrb[0].mxu0 %v632
  %v870 = vpop.f32.mrb[0].mxu0
  %v871 = vadd.f32 %v78, %v870
  %v872 = vpop.f32.mrb[0].mxu0
  %873 = vmatprep.mubr.f32.mxu0 0.0
  %874 = vmatmul.mubr.f32.gmra.mrb[0].mxu0 %v635
  %v875 = vpop.f32.mrb[0].mxu0
  %v876 = vadd.f32 %v78, %v875
  %v877 = vpop.f32.mrb[0].mxu0
  %878 = vmatprep.mubr.f32.mxu0 0.0
  %879 = vmatmul.mubr.f32.gmra.mrb[0].mxu0 %v638
  %v880 = vpop.f32.mrb[0].mxu0
  %v881 = vadd.f32 %v78, %v880
  %v882 = vpop.f32.mrb[0].mxu0
  %883 = vmatprep.mubr.f32.mxu0 0.0
  %884 = vmatmul.mubr.f32.gmra.mrb[0].mxu0 %v641
  %v885 = vpop.f32.mrb[0].mxu0
  %v886 = vadd.f32 %v78, %v885
  %v887 = vpop.f32.mrb[0].mxu0
  %888 = vmatprep.mubr.f32.mxu0 0.0
  %889 = vmatmul.mubr.f32.gmra.mrb[0].mxu0 %v644
  %v890 = vpop.f32.mrb[0].mxu0
  %v891 = vadd.f32 %v78, %v890
  %v892 = vpop.f32.mrb[0].mxu0
  %893 = vmatprep.mubr.f32.mxu0 0.0
  %894 = vmatmul.mubr.f32.gmra.mrb[0].mxu0 %v647
  %v895 = vpop.f32.mrb[0].mxu0
  %v896 = vadd.f32 %v78, %v895
  %v897 = vpop.f32.mrb[0].mxu0
  %898 = vmatprep.mubr.f32.mxu0 0.0
  %899 = vmatmul.mubr.f32.gmra.mrb[0].mxu0 %v650
  %v900 = vpop.f32.mrb[0].mxu0
  %v901 = vadd.f32 %v78, %v900
  %v902 = vpop.f32.mrb[0].mxu0
  %903 = vmatprep.mubr.f32.mxu0 0.0
  %904 = vmatmul.mubr.f32.gmra.mrb[0].mxu0 %v653
  %v905 = vpop.f32.mrb[0].mxu0
  %v906 = vadd.f32 %v78, %v905
  %v907 = vpop.f32.mrb[0].mxu0
  %908 = vmatprep.mubr.f32.mxu0 0.0
  %909 = vmatmul.mubr.f32.gmra.mrb[0].mxu0 %v656
  %v910 = vpop.f32.mrb[0].mxu0
  %v911 = vadd.f32 %v78, %v910
  %v912 = vpop.f32.mrb[0].mxu0
  %913 = vmatprep.mubr.f32.mxu0 0.0
  %914 = vmatmul.mubr.f32.gmra.mrb[0].mxu0 %v659
  %v915 = vpop.f32.mrb[0].mxu0
  %v916 = vadd.f32 %v78, %v915
  %v917 = vpop.f32.mrb[0].mxu0
  %918 = vmatprep.mubr.f32.mxu0 0.0
  %919 = vmatmul.mubr.f32.gmra.mrb[0].mxu0 %v662
  %v920 = vpop.f32.mrb[0].mxu0
  %v921 = vadd.f32 %v78, %v920
  %v922 = vpop.f32.mrb[0].mxu0
  %923 = vmatprep.mubr.f32.mxu0 0.0
  %924 = vmatmul.mubr.f32.gmra.mrb[0].mxu0 %v665
  %v925 = vpop.f32.mrb[0].mxu0
  %v926 = vadd.f32 %v78, %v925
  %v927 = vpop.f32.mrb[0].mxu0
  %928 = vmatprep.mubr.f32.mxu0 0.0
  %929 = vmatmul.mubr.f32.gmra.mrb[0].mxu0 %v668
  %v930 = vpop.f32.mrb[0].mxu0
  %v931 = vadd.f32 %v78, %v930
  %v932 = vpop.f32.mrb[0].mxu0
  %933 = vmatprep.mubr.f32.mxu0 0.0
  %934 = vmatmul.mubr.f32.gmra.mrb[0].mxu0 %v671
  %v935 = vpop.f32.mrb[0].mxu0
  %v936 = vadd.f32 %v78, %v935
  %v937 = vpop.f32.mrb[0].mxu0
  %938 = vmatprep.mubr.f32.mxu0 0.0
  %939 = vmatmul.mubr.f32.gmra.mrb[0].mxu0 %v674
  %v940 = vpop.f32.mrb[0].mxu0
  %v941 = vadd.f32 %v78, %v940
  %v942 = vpop.f32.mrb[0].mxu0
  %943 = vmatprep.mubr.f32.mxu0 0.0
  %944 = vmatmul.mubr.f32.gmra.mrb[0].mxu0 %v677
  %v945 = vpop.f32.mrb[0].mxu0
  %v946 = vadd.f32 %v78, %v945
  %v947 = vpop.f32.mrb[0].mxu0
  %948 = vmatprep.mubr.f32.mxu0 0.0
  %949 = vmatmul.mubr.f32.gmra.mrb[0].mxu0 %v680
  %v950 = vpop.f32.mrb[0].mxu0
  %v951 = vadd.f32 %v78, %v950
  %v952 = vpop.f32.mrb[0].mxu0
  %953 = vmatprep.mubr.f32.mxu0 0.0
  %954 = vmatmul.mubr.f32.gmra.mrb[0].mxu0 %v683
  %v955 = vpop.f32.mrb[0].mxu0
  %v956 = vadd.f32 %v78, %v955
  %v957 = vpop.f32.mrb[0].mxu0
  %958 = vmatprep.mubr.f32.mxu0 0.0
  %959 = vmatmul.mubr.f32.gmra.mrb[0].mxu0 %v686
  %v960 = vpop.f32.mrb[0].mxu0
  %v961 = vadd.f32 %v78, %v960
  %v962 = vpop.f32.mrb[0].mxu0
  %963 = vmatprep.mubr.f32.mxu0 0.0
  %964 = vmatmul.mubr.f32.gmra.mrb[0].mxu0 %v689
  %v965 = vpop.f32.mrb[0].mxu0
  %v966 = vadd.f32 %v78, %v965
  %v967 = vpop.f32.mrb[0].mxu0
  %968 = vmatprep.mubr.f32.mxu0 0.0
  %969 = vmatmul.mubr.f32.gmra.mrb[0].mxu0 %v692
  %v970 = vpop.f32.mrb[0].mxu0
  %v971 = vadd.f32 %v78, %v970
  %v972 = vpop.f32.mrb[0].mxu0
  %973 = vmatprep.mubr.f32.mxu0 0.0
  %974 = vmatmul.mubr.f32.gmra.mrb[0].mxu0 %v695
  %v975 = vpop.f32.mrb[0].mxu0
  %v976 = vadd.f32 %v78, %v975
  %v977 = vpop.f32.mrb[0].mxu0
  %978 = vmatprep.mubr.f32.mxu0 0.0
  %979 = vmatmul.mubr.f32.gmra.mrb[0].mxu0 %v698
  %v980 = vpop.f32.mrb[0].mxu0
  %v981 = vadd.f32 %v78, %v980
  %v982 = vpop.f32.mrb[0].mxu0
  %983 = vmatprep.mubr.f32.mxu0 0.0
  %984 = vmatmul.mubr.f32.gmra.mrb[0].mxu0 %v701
  %v985 = vpop.f32.mrb[0].mxu0
  %v986 = vadd.f32 %v78, %v985
  %v987 = vpop.f32.mrb[0].mxu0
  %988 = vmatprep.mubr.f32.mxu0 0.0
  %989 = vmatmul.mubr.f32.gmra.mrb[0].mxu0 %v704
  %v990 = vpop.f32.mrb[0].mxu0
  %v991 = vadd.f32 %v78, %v990
  %v992 = vpop.f32.mrb[0].mxu0
  %993 = vmatprep.mubr.f32.mxu0 0.0
  %994 = vmatmul.mubr.f32.gmra.mrb[0].mxu0 %v707
  %v995 = vpop.f32.mrb[0].mxu0
  %v996 = vadd.f32 %v78, %v995
  %v997 = vpop.f32.mrb[0].mxu0
  %998 = vmatprep.mubr.f32.mxu0 0.0
  %999 = vmatmul.mubr.f32.gmra.mrb[0].mxu0 %v710
  %v1000 = vpop.f32.mrb[0].mxu0
  %v1001 = vadd.f32 %v78, %v1000
  %v1002 = vpop.f32.mrb[0].mxu0
  %1003 = vmatprep.mubr.f32.mxu0 0.0
  %1004 = vmatmul.mubr.f32.gmra.mrb[0].mxu0 %v713
  %v1005 = vpop.f32.mrb[0].mxu0
  %v1006 = vadd.f32 %v78, %v1005
  %v1007 = vpop.f32.mrb[0].mxu0
  %1008 = vmatprep.mubr.f32.mxu0 0.0
  %1009 = vmatmul.mubr.f32.gmra.mrb[0].mxu0 %v716
  %v1010 = vpop.f32.mrb[0].mxu0
  %v1011 = vadd.f32 %v78, %v1010
  %v1012 = vpop.f32.mrb[0].mxu0
  %1013 = vmatprep.mubr.f32.mxu0 0.0
  %1014 = vmatmul.mubr.f32.gmra.mrb[0].mxu0 %v719
  %v1015 = vpop.f32.mrb[0].mxu0
  %v1016 = vadd.f32 %v78, %v1015
  %v1017 = vpop.f32.mrb[0].mxu0
  %1018 = vmatprep.mubr.f32.mxu0 0.0
  %1019 = vmatmul.mubr.f32.gmra.mrb[0].mxu0 %v722
  %v1020 = vpop.f32.mrb[0].mxu0
  %v1021 = vadd.f32 %v78, %v1020
  %v1022 = vpop.f32.mrb[0].mxu0
  %1023 = vmatprep.mubr.f32.mxu0 0.0
  %1024 = vmatmul.mubr.f32.gmra.mrb[0].mxu0 %v725
  %v1025 = vpop.f32.mrb[0].mxu0
  %v1026 = vadd.f32 %v78, %v1025
  %v1027 = vpop.f32.mrb[0].mxu0
  %1028 = vmatprep.mubr.f32.mxu0 0.0
  %1029 = vmatmul.mubr.f32.gmra.mrb[0].mxu0 %v728
  %v1030 = vpop.f32.mrb[0].mxu0
  %v1031 = vadd.f32 %v78, %v1030
  %v1032 = vpop.f32.mrb[0].mxu0
  %1033 = vmatprep.mubr.f32.mxu0 0.0
  %1034 = vmatmul.mubr.f32.gmra.mrb[0].mxu0 %v731
  %v1035 = vpop.f32.mrb[0].mxu0
  %v1036 = vadd.f32 %v78, %v1035
  %v1037 = vpop.f32.mrb[0].mxu0
  %1038 = vmatprep.mubr.f32.mxu0 0.0
  %1039 = vmatmul.mubr.f32.gmra.mrb[0].mxu0 %v734
  %v1040 = vpop.f32.mrb[0].mxu0
  %v1041 = vadd.f32 %v78, %v1040
  %v1042 = vpop.f32.mrb[0].mxu0
  %1043 = vmatprep.mubr.f32.mxu0 0.0
  %1044 = vmatmul.mubr.f32.gmra.mrb[0].mxu0 %v737
  %v1045 = vpop.f32.mrb[0].mxu0
  %v1046 = vadd.f32 %v78, %v1045
  %v1047 = vpop.f32.mrb[0].mxu0
  %1048 = vdwg.mxu0
  %v1049 = vmax.f32 %v299, %v806
  %v1050 = vmax.f32 %v304, %v811
  %v1051 = vmax.f32 %v309, %v816
  %v1052 = vmax.f32 %v314, %v821
  %v1053 = vmax.f32 %v319, %v826
  %v1054 = vmax.f32 %v324, %v831
  %v1055 = vmax.f32 %v329, %v836
  %v1056 = vmax.f32 %v334, %v841
  %v1057 = vmax.f32 %v339, %v846
  %v1058 = vmax.f32 %v344, %v851
  %v1059 = vmax.f32 %v349, %v856
  %v1060 = vmax.f32 %v354, %v861
  %v1061 = vmax.f32 %v359, %v866
  %v1062 = vmax.f32 %v364, %v871
  %v1063 = vmax.f32 %v369, %v876
  %v1064 = vmax.f32 %v374, %v881
  %v1065 = vmax.f32 %v379, %v886
  %v1066 = vmax.f32 %v384, %v891
  %v1067 = vmax.f32 %v389, %v896
  %v1068 = vmax.f32 %v394, %v901
  %v1069 = vmax.f32 %v399, %v906
  %v1070 = vmax.f32 %v404, %v911
  %v1071 = vmax.f32 %v409, %v916
  %v1072 = vmax.f32 %v414, %v921
  %v1073 = vmax.f32 %v419, %v926
  %v1074 = vmax.f32 %v424, %v931
  %v1075 = vmax.f32 %v429, %v936
  %v1076 = vmax.f32 %v434, %v941
  %v1077 = vmax.f32 %v439, %v946
  %v1078 = vmax.f32 %v444, %v951
  %v1079 = vmax.f32 %v449, %v956
  %v1080 = vmax.f32 %v454, %v961
  %v1081 = vmax.f32 %v459, %v966
  %v1082 = vmax.f32 %v464, %v971
  %v1083 = vmax.f32 %v469, %v976
  %v1084 = vmax.f32 %v474, %v981
  %v1085 = vmax.f32 %v479, %v986
  %v1086 = vmax.f32 %v484, %v991
  %v1087 = vmax.f32 %v489, %v996
  %v1088 = vmax.f32 %v494, %v1001
  %v1089 = vmax.f32 %v499, %v1006
  %v1090 = vmax.f32 %v504, %v1011
  %v1091 = vmax.f32 %v509, %v1016
  %v1092 = vmax.f32 %v514, %v1021
  %v1093 = vmax.f32 %v519, %v1026
  %v1094 = vmax.f32 %v524, %v1031
  %v1095 = vmax.f32 %v529, %v1036
  %v1096 = vmax.f32 %v534, %v1041
  %v1097 = vmax.f32 %v539, %v1046
  %s1098 = scalar_lea.vmem %s0, 784
  %v1099 = vld [vmem:[%s1098] sm:$0xff]
  %v1100 = vld [vmem:[%s1098 + $0x8] sm:$0xff]
  %v1101 = vld [vmem:[%s1098 + $0x10] sm:$0xff]
  %v1102 = vld [vmem:[%s1098 + $0x18] sm:$0xff]
  %v1103 = vld [vmem:[%s1098 + $0x20] sm:$0xff]
  %v1104 = vld [vmem:[%s1098 + $0x28] sm:$0xff]
  %v1105 = vld [vmem:[%s1098 + $0x30] sm:$0xff]
  %v1106 = vld [vmem:[%s1098 + $0x38] sm:$0xff]
  %v1107 = vld [vmem:[%s1098 + $0x40] sm:$0xff]
  %v1108 = vld [vmem:[%s1098 + $0x48] sm:$0xff]
  %v1109 = vld [vmem:[%s1098 + $0x50] sm:$0xff]
  %v1110 = vld [vmem:[%s1098 + $0x58] sm:$0xff]
  %v1111 = vld [vmem:[%s1098 + $0x60] sm:$0xff]
  %v1112 = vld [vmem:[%s1098 + $0x68] sm:$0xff]
  %v1113 = vld [vmem:[%s1098 + $0x70] sm:$0xff]
  %v1114 = vld [vmem:[%s1098 + $0x78] sm:$0xff]
  %v1115 = vld [vmem:[%s1098 + $0x80] sm:$0xff]
  %v1116 = vld [vmem:[%s1098 + $0x88] sm:$0xff]
  %v1117 = vld [vmem:[%s1098 + $0x90] sm:$0xff]
  %v1118 = vld [vmem:[%s1098 + $0x98] sm:$0xff]
  %v1119 = vld [vmem:[%s1098 + $0xa0] sm:$0xff]
  %v1120 = vld [vmem:[%s1098 + $0xa8] sm:$0xff]
  %v1121 = vld [vmem:[%s1098 + $0xb0] sm:$0xff]
  %v1122 = vld [vmem:[%s1098 + $0xb8] sm:$0xff]
  %v1123 = vld [vmem:[%s1098 + $0xc0] sm:$0xff]
  %v1124 = vld [vmem:[%s1098 + $0xc8] sm:$0xff]
  %v1125 = vld [vmem:[%s1098 + $0xd0] sm:$0xff]
  %v1126 = vld [vmem:[%s1098 + $0xd8] sm:$0xff]
  %v1127 = vld [vmem:[%s1098 + $0xe0] sm:$0xff]
  %v1128 = vld [vmem:[%s1098 + $0xe8] sm:$0xff]
  %v1129 = vld [vmem:[%s1098 + $0xf0] sm:$0xff]
  %v1130 = vld [vmem:[%s1098 + $0xf8] sm:$0xff]
  %v1131 = vld [vmem:[%s1098 + $0x100] sm:$0xff]
  %v1132 = vld [vmem:[%s1098 + $0x108] sm:$0xff]
  %v1133 = vld [vmem:[%s1098 + $0x110] sm:$0xff]
  %v1134 = vld [vmem:[%s1098 + $0x118] sm:$0xff]
  %v1135 = vld [vmem:[%s1098 + $0x120] sm:$0xff]
  %v1136 = vld [vmem:[%s1098 + $0x128] sm:$0xff]
  %v1137 = vld [vmem:[%s1098 + $0x130] sm:$0xff]
  %v1138 = vld [vmem:[%s1098 + $0x138] sm:$0xff]
  %v1139 = vld [vmem:[%s1098 + $0x140] sm:$0xff]
  %v1140 = vld [vmem:[%s1098 + $0x148] sm:$0xff]
  %v1141 = vld [vmem:[%s1098 + $0x150] sm:$0xff]
  %v1142 = vld [vmem:[%s1098 + $0x158] sm:$0xff]
  %v1143 = vld [vmem:[%s1098 + $0x160] sm:$0xff]
  %v1144 = vld [vmem:[%s1098 + $0x168] sm:$0xff]
  %v1145 = vld [vmem:[%s1098 + $0x170] sm:$0xff]
  %v1146 = vld [vmem:[%s1098 + $0x178] sm:$0xff]
  %v1147 = vld [vmem:[%s1098 + $0x180] sm:$0xff]
  %v1149 = vsel %vm80, %v1099, 0
  %v1152 = vsel %vm80, %v1100, 0
  %v1155 = vsel %vm80, %v1101, 0
  %v1158 = vsel %vm80, %v1102, 0
  %v1161 = vsel %vm80, %v1103, 0
  %v1164 = vsel %vm80, %v1104, 0
  %v1167 = vsel %vm80, %v1105, 0
  %v1170 = vsel %vm80, %v1106, 0
  %v1173 = vsel %vm80, %v1107, 0
  %v1176 = vsel %vm80, %v1108, 0
  %v1179 = vsel %vm80, %v1109, 0
  %v1182 = vsel %vm80, %v1110, 0
  %v1185 = vsel %vm80, %v1111, 0
  %v1188 = vsel %vm80, %v1112, 0
  %v1191 = vsel %vm80, %v1113, 0
  %v1194 = vsel %vm80, %v1114, 0
  %v1197 = vsel %vm80, %v1115, 0
  %v1200 = vsel %vm80, %v1116, 0
  %v1203 = vsel %vm80, %v1117, 0
  %v1206 = vsel %vm80, %v1118, 0
  %v1209 = vsel %vm80, %v1119, 0
  %v1212 = vsel %vm80, %v1120, 0
  %v1215 = vsel %vm80, %v1121, 0
  %v1218 = vsel %vm80, %v1122, 0
  %v1221 = vsel %vm80, %v1123, 0
  %v1224 = vsel %vm80, %v1124, 0
  %v1227 = vsel %vm80, %v1125, 0
  %v1230 = vsel %vm80, %v1126, 0
  %v1233 = vsel %vm80, %v1127, 0
  %v1236 = vsel %vm80, %v1128, 0
  %v1239 = vsel %vm80, %v1129, 0
  %v1242 = vsel %vm80, %v1130, 0
  %v1245 = vsel %vm80, %v1131, 0
  %v1248 = vsel %vm80, %v1132, 0
  %v1251 = vsel %vm80, %v1133, 0
  %v1254 = vsel %vm80, %v1134, 0
  %v1257 = vsel %vm80, %v1135, 0
  %v1260 = vsel %vm80, %v1136, 0
  %v1263 = vsel %vm80, %v1137, 0
  %v1266 = vsel %vm80, %v1138, 0
  %v1269 = vsel %vm80, %v1139, 0
  %v1272 = vsel %vm80, %v1140, 0
  %v1275 = vsel %vm80, %v1141, 0
  %v1278 = vsel %vm80, %v1142, 0
  %v1281 = vsel %vm80, %v1143, 0
  %v1284 = vsel %vm80, %v1144, 0
  %v1287 = vsel %vm80, %v1145, 0
  %v1290 = vsel %vm80, %v1146, 0
  %v1293 = vsel %vm80, %v1147, 0
  %1295 = vmatprep.subr.mxu0 0.0
  %1296 = vmatpush1.msra.mxu0 %v14
  %1297 = vmatprep.subr.mxu0 0.0
  %1298 = vmatpush1.msra.mxu0 %v15
  %1299 = vmatprep.subr.mxu0 0.0
  %1300 = vmatpush1.msra.mxu0 %v16
  %1301 = vmatprep.subr.mxu0 0.0
  %1302 = vmatpush1.msra.mxu0 %v17
  %1303 = vmatprep.subr.mxu0 0.0
  %1304 = vmatpush1.msra.mxu0 %v18
  %1305 = vmatprep.subr.mxu0 0.0
  %1306 = vmatpush1.msra.mxu0 %v19
  %1307 = vmatprep.subr.mxu0 0.0
  %1308 = vmatpush1.msra.mxu0 %v20
  %1309 = vmatprep.subr.mxu0 0.0
  %1310 = vmatpush1.msra.mxu0 %v21
  %1311 = vmatprep.subr.mxu0 0.0
  %1312 = vmatpush1.msra.mxu0 %v22
  %1313 = vmatprep.subr.mxu0 0.0
  %1314 = vmatpush1.msra.mxu0 %v230
  %1315 = vmatprep.subr.mxu0 0.0
  %1316 = vmatpush1.msra.mxu0 0.0
  %1317 = vmatprep.subr.mxu0 0.0
  %1318 = vmatpush1.msra.mxu0 0.0
  %1319 = vmatprep.subr.mxu0 0.0
  %1320 = vmatpush1.msra.mxu0 0.0
  %1321 = vmatprep.subr.mxu0 0.0
  %1322 = vmatpush1.msra.mxu0 0.0
  %1323 = vmatprep.subr.mxu0 0.0
  %1324 = vmatpush1.msra.mxu0 0.0
  %1325 = vmatprep.subr.mxu0 0.0
  %1326 = vmatpush1.msra.mxu0 0.0
  %1327 = vmatprep.subr.mxu0 0.0
  %1328 = vmatpush1.msra.mxu0 0.0
  %1329 = vmatprep.subr.mxu0 0.0
  %1330 = vmatpush1.msra.mxu0 0.0
  %1331 = vmatprep.subr.mxu0 0.0
  %1332 = vmatpush1.msra.mxu0 0.0
  %1333 = vmatprep.subr.mxu0 0.0
  %1334 = vmatpush1.msra.mxu0 0.0
  %1335 = vmatprep.subr.mxu0 0.0
  %1336 = vmatpush1.msra.mxu0 0.0
  %1337 = vmatprep.subr.mxu0 0.0
  %1338 = vmatpush1.msra.mxu0 0.0
  %1339 = vmatprep.subr.mxu0 0.0
  %1340 = vmatpush1.msra.mxu0 0.0
  %1341 = vmatprep.subr.mxu0 0.0
  %1342 = vmatpush1.msra.mxu0 0.0
  %1343 = vmatprep.subr.mxu0 0.0
  %1344 = vmatpush1.msra.mxu0 0.0
  %1345 = vmatprep.subr.mxu0 0.0
  %1346 = vmatpush1.msra.mxu0 0.0
  %1347 = vmatprep.subr.mxu0 0.0
  %1348 = vmatpush1.msra.mxu0 0.0
  %1349 = vmatprep.subr.mxu0 0.0
  %1350 = vmatpush1.msra.mxu0 0.0
  %1351 = vmatprep.subr.mxu0 0.0
  %1352 = vmatpush1.msra.mxu0 0.0
  %1353 = vmatprep.subr.mxu0 0.0
  %1354 = vmatpush1.msra.mxu0 0.0
  %1355 = vmatprep.subr.mxu0 0.0
  %1356 = vmatpush1.msra.mxu0 0.0
  %1357 = vmatprep.subr.mxu0 0.0
  %1358 = vmatpush1.msra.mxu0 0.0
  %1359 = vmatprep.mubr.f32.mxu0 0.0
  %1360 = vmatmul.mubr.f32.gmra.mrb[0].mxu0 %v1149
  %v1361 = vpop.f32.mrb[0].mxu0
  %v1362 = vadd.f32 %v78, %v1361
  %v1363 = vpop.f32.mrb[0].mxu0
  %1364 = vmatprep.mubr.f32.mxu0 0.0
  %1365 = vmatmul.mubr.f32.gmra.mrb[0].mxu0 %v1152
  %v1366 = vpop.f32.mrb[0].mxu0
  %v1367 = vadd.f32 %v78, %v1366
  %v1368 = vpop.f32.mrb[0].mxu0
  %1369 = vmatprep.mubr.f32.mxu0 0.0
  %1370 = vmatmul.mubr.f32.gmra.mrb[0].mxu0 %v1155
  %v1371 = vpop.f32.mrb[0].mxu0
  %v1372 = vadd.f32 %v78, %v1371
  %v1373 = vpop.f32.mrb[0].mxu0
  %1374 = vmatprep.mubr.f32.mxu0 0.0
  %1375 = vmatmul.mubr.f32.gmra.mrb[0].mxu0 %v1158
  %v1376 = vpop.f32.mrb[0].mxu0
  %v1377 = vadd.f32 %v78, %v1376
  %v1378 = vpop.f32.mrb[0].mxu0
  %1379 = vmatprep.mubr.f32.mxu0 0.0
  %1380 = vmatmul.mubr.f32.gmra.mrb[0].mxu0 %v1161
  %v1381 = vpop.f32.mrb[0].mxu0
  %v1382 = vadd.f32 %v78, %v1381
  %v1383 = vpop.f32.mrb[0].mxu0
  %1384 = vmatprep.mubr.f32.mxu0 0.0
  %1385 = vmatmul.mubr.f32.gmra.mrb[0].mxu0 %v1164
  %v1386 = vpop.f32.mrb[0].mxu0
  %v1387 = vadd.f32 %v78, %v1386
  %v1388 = vpop.f32.mrb[0].mxu0
  %1389 = vmatprep.mubr.f32.mxu0 0.0
  %1390 = vmatmul.mubr.f32.gmra.mrb[0].mxu0 %v1167
  %v1391 = vpop.f32.mrb[0].mxu0
  %v1392 = vadd.f32 %v78, %v1391
  %v1393 = vpop.f32.mrb[0].mxu0
  %1394 = vmatprep.mubr.f32.mxu0 0.0
  %1395 = vmatmul.mubr.f32.gmra.mrb[0].mxu0 %v1170
  %v1396 = vpop.f32.mrb[0].mxu0
  %v1397 = vadd.f32 %v78, %v1396
  %v1398 = vpop.f32.mrb[0].mxu0
  %1399 = vmatprep.mubr.f32.mxu0 0.0
  %1400 = vmatmul.mubr.f32.gmra.mrb[0].mxu0 %v1173
  %v1401 = vpop.f32.mrb[0].mxu0
  %v1402 = vadd.f32 %v78, %v1401
  %v1403 = vpop.f32.mrb[0].mxu0
  %1404 = vmatprep.mubr.f32.mxu0 0.0
  %1405 = vmatmul.mubr.f32.gmra.mrb[0].mxu0 %v1176
  %v1406 = vpop.f32.mrb[0].mxu0
  %v1407 = vadd.f32 %v78, %v1406
  %v1408 = vpop.f32.mrb[0].mxu0
  %1409 = vmatprep.mubr.f32.mxu0 0.0
  %1410 = vmatmul.mubr.f32.gmra.mrb[0].mxu0 %v1179
  %v1411 = vpop.f32.mrb[0].mxu0
  %v1412 = vadd.f32 %v78, %v1411
  %v1413 = vpop.f32.mrb[0].mxu0
  %1414 = vmatprep.mubr.f32.mxu0 0.0
  %1415 = vmatmul.mubr.f32.gmra.mrb[0].mxu0 %v1182
  %v1416 = vpop.f32.mrb[0].mxu0
  %v1417 = vadd.f32 %v78, %v1416
  %v1418 = vpop.f32.mrb[0].mxu0
  %1419 = vmatprep.mubr.f32.mxu0 0.0
  %1420 = vmatmul.mubr.f32.gmra.mrb[0].mxu0 %v1185
  %v1421 = vpop.f32.mrb[0].mxu0
  %v1422 = vadd.f32 %v78, %v1421
  %v1423 = vpop.f32.mrb[0].mxu0
  %1424 = vmatprep.mubr.f32.mxu0 0.0
  %1425 = vmatmul.mubr.f32.gmra.mrb[0].mxu0 %v1188
  %v1426 = vpop.f32.mrb[0].mxu0
  %v1427 = vadd.f32 %v78, %v1426
  %v1428 = vpop.f32.mrb[0].mxu0
  %1429 = vmatprep.mubr.f32.mxu0 0.0
  %1430 = vmatmul.mubr.f32.gmra.mrb[0].mxu0 %v1191
  %v1431 = vpop.f32.mrb[0].mxu0
  %v1432 = vadd.f32 %v78, %v1431
  %v1433 = vpop.f32.mrb[0].mxu0
  %1434 = vmatprep.mubr.f32.mxu0 0.0
  %1435 = vmatmul.mubr.f32.gmra.mrb[0].mxu0 %v1194
  %v1436 = vpop.f32.mrb[0].mxu0
  %v1437 = vadd.f32 %v78, %v1436
  %v1438 = vpop.f32.mrb[0].mxu0
  %1439 = vmatprep.mubr.f32.mxu0 0.0
  %1440 = vmatmul.mubr.f32.gmra.mrb[0].mxu0 %v1197
  %v1441 = vpop.f32.mrb[0].mxu0
  %v1442 = vadd.f32 %v78, %v1441
  %v1443 = vpop.f32.mrb[0].mxu0
  %1444 = vmatprep.mubr.f32.mxu0 0.0
  %1445 = vmatmul.mubr.f32.gmra.mrb[0].mxu0 %v1200
  %v1446 = vpop.f32.mrb[0].mxu0
  %v1447 = vadd.f32 %v78, %v1446
  %v1448 = vpop.f32.mrb[0].mxu0
  %1449 = vmatprep.mubr.f32.mxu0 0.0
  %1450 = vmatmul.mubr.f32.gmra.mrb[0].mxu0 %v1203
  %v1451 = vpop.f32.mrb[0].mxu0
  %v1452 = vadd.f32 %v78, %v1451
  %v1453 = vpop.f32.mrb[0].mxu0
  %1454 = vmatprep.mubr.f32.mxu0 0.0
  %1455 = vmatmul.mubr.f32.gmra.mrb[0].mxu0 %v1206
  %v1456 = vpop.f32.mrb[0].mxu0
  %v1457 = vadd.f32 %v78, %v1456
  %v1458 = vpop.f32.mrb[0].mxu0
  %1459 = vmatprep.mubr.f32.mxu0 0.0
  %1460 = vmatmul.mubr.f32.gmra.mrb[0].mxu0 %v1209
  %v1461 = vpop.f32.mrb[0].mxu0
  %v1462 = vadd.f32 %v78, %v1461
  %v1463 = vpop.f32.mrb[0].mxu0
  %1464 = vmatprep.mubr.f32.mxu0 0.0
  %1465 = vmatmul.mubr.f32.gmra.mrb[0].mxu0 %v1212
  %v1466 = vpop.f32.mrb[0].mxu0
  %v1467 = vadd.f32 %v78, %v1466
  %v1468 = vpop.f32.mrb[0].mxu0
  %1469 = vmatprep.mubr.f32.mxu0 0.0
  %1470 = vmatmul.mubr.f32.gmra.mrb[0].mxu0 %v1215
  %v1471 = vpop.f32.mrb[0].mxu0
  %v1472 = vadd.f32 %v78, %v1471
  %v1473 = vpop.f32.mrb[0].mxu0
  %1474 = vmatprep.mubr.f32.mxu0 0.0
  %1475 = vmatmul.mubr.f32.gmra.mrb[0].mxu0 %v1218
  %v1476 = vpop.f32.mrb[0].mxu0
  %v1477 = vadd.f32 %v78, %v1476
  %v1478 = vpop.f32.mrb[0].mxu0
  %1479 = vmatprep.mubr.f32.mxu0 0.0
  %1480 = vmatmul.mubr.f32.gmra.mrb[0].mxu0 %v1221
  %v1481 = vpop.f32.mrb[0].mxu0
  %v1482 = vadd.f32 %v78, %v1481
  %v1483 = vpop.f32.mrb[0].mxu0
  %1484 = vmatprep.mubr.f32.mxu0 0.0
  %1485 = vmatmul.mubr.f32.gmra.mrb[0].mxu0 %v1224
  %v1486 = vpop.f32.mrb[0].mxu0
  %v1487 = vadd.f32 %v78, %v1486
  %v1488 = vpop.f32.mrb[0].mxu0
  %1489 = vmatprep.mubr.f32.mxu0 0.0
  %1490 = vmatmul.mubr.f32.gmra.mrb[0].mxu0 %v1227
  %v1491 = vpop.f32.mrb[0].mxu0
  %v1492 = vadd.f32 %v78, %v1491
  %v1493 = vpop.f32.mrb[0].mxu0
  %1494 = vmatprep.mubr.f32.mxu0 0.0
  %1495 = vmatmul.mubr.f32.gmra.mrb[0].mxu0 %v1230
  %v1496 = vpop.f32.mrb[0].mxu0
  %v1497 = vadd.f32 %v78, %v1496
  %v1498 = vpop.f32.mrb[0].mxu0
  %1499 = vmatprep.mubr.f32.mxu0 0.0
  %1500 = vmatmul.mubr.f32.gmra.mrb[0].mxu0 %v1233
  %v1501 = vpop.f32.mrb[0].mxu0
  %v1502 = vadd.f32 %v78, %v1501
  %v1503 = vpop.f32.mrb[0].mxu0
  %1504 = vmatprep.mubr.f32.mxu0 0.0
  %1505 = vmatmul.mubr.f32.gmra.mrb[0].mxu0 %v1236
  %v1506 = vpop.f32.mrb[0].mxu0
  %v1507 = vadd.f32 %v78, %v1506
  %v1508 = vpop.f32.mrb[0].mxu0
  %1509 = vmatprep.mubr.f32.mxu0 0.0
  %1510 = vmatmul.mubr.f32.gmra.mrb[0].mxu0 %v1239
  %v1511 = vpop.f32.mrb[0].mxu0
  %v1512 = vadd.f32 %v78, %v1511
  %v1513 = vpop.f32.mrb[0].mxu0
  %1514 = vmatprep.mubr.f32.mxu0 0.0
  %1515 = vmatmul.mubr.f32.gmra.mrb[0].mxu0 %v1242
  %v1516 = vpop.f32.mrb[0].mxu0
  %v1517 = vadd.f32 %v78, %v1516
  %v1518 = vpop.f32.mrb[0].mxu0
  %1519 = vmatprep.mubr.f32.mxu0 0.0
  %1520 = vmatmul.mubr.f32.gmra.mrb[0].mxu0 %v1245
  %v1521 = vpop.f32.mrb[0].mxu0
  %v1522 = vadd.f32 %v78, %v1521
  %v1523 = vpop.f32.mrb[0].mxu0
  %1524 = vmatprep.mubr.f32.mxu0 0.0
  %1525 = vmatmul.mubr.f32.gmra.mrb[0].mxu0 %v1248
  %v1526 = vpop.f32.mrb[0].mxu0
  %v1527 = vadd.f32 %v78, %v1526
  %v1528 = vpop.f32.mrb[0].mxu0
  %1529 = vmatprep.mubr.f32.mxu0 0.0
  %1530 = vmatmul.mubr.f32.gmra.mrb[0].mxu0 %v1251
  %v1531 = vpop.f32.mrb[0].mxu0
  %v1532 = vadd.f32 %v78, %v1531
  %v1533 = vpop.f32.mrb[0].mxu0
  %1534 = vmatprep.mubr.f32.mxu0 0.0
  %1535 = vmatmul.mubr.f32.gmra.mrb[0].mxu0 %v1254
  %v1536 = vpop.f32.mrb[0].mxu0
  %v1537 = vadd.f32 %v78, %v1536
  %v1538 = vpop.f32.mrb[0].mxu0
  %1539 = vmatprep.mubr.f32.mxu0 0.0
  %1540 = vmatmul.mubr.f32.gmra.mrb[0].mxu0 %v1257
  %v1541 = vpop.f32.mrb[0].mxu0
  %v1542 = vadd.f32 %v78, %v1541
  %v1543 = vpop.f32.mrb[0].mxu0
  %1544 = vmatprep.mubr.f32.mxu0 0.0
  %1545 = vmatmul.mubr.f32.gmra.mrb[0].mxu0 %v1260
  %v1546 = vpop.f32.mrb[0].mxu0
  %v1547 = vadd.f32 %v78, %v1546
  %v1548 = vpop.f32.mrb[0].mxu0
  %1549 = vmatprep.mubr.f32.mxu0 0.0
  %1550 = vmatmul.mubr.f32.gmra.mrb[0].mxu0 %v1263
  %v1551 = vpop.f32.mrb[0].mxu0
  %v1552 = vadd.f32 %v78, %v1551
  %v1553 = vpop.f32.mrb[0].mxu0
  %1554 = vmatprep.mubr.f32.mxu0 0.0
  %1555 = vmatmul.mubr.f32.gmra.mrb[0].mxu0 %v1266
  %v1556 = vpop.f32.mrb[0].mxu0
  %v1557 = vadd.f32 %v78, %v1556
  %v1558 = vpop.f32.mrb[0].mxu0
  %1559 = vmatprep.mubr.f32.mxu0 0.0
  %1560 = vmatmul.mubr.f32.gmra.mrb[0].mxu0 %v1269
  %v1561 = vpop.f32.mrb[0].mxu0
  %v1562 = vadd.f32 %v78, %v1561
  %v1563 = vpop.f32.mrb[0].mxu0
  %1564 = vmatprep.mubr.f32.mxu0 0.0
  %1565 = vmatmul.mubr.f32.gmra.mrb[0].mxu0 %v1272
  %v1566 = vpop.f32.mrb[0].mxu0
  %v1567 = vadd.f32 %v78, %v1566
  %v1568 = vpop.f32.mrb[0].mxu0
  %1569 = vmatprep.mubr.f32.mxu0 0.0
  %1570 = vmatmul.mubr.f32.gmra.mrb[0].mxu0 %v1275
  %v1571 = vpop.f32.mrb[0].mxu0
  %v1572 = vadd.f32 %v78, %v1571
  %v1573 = vpop.f32.mrb[0].mxu0
  %1574 = vmatprep.mubr.f32.mxu0 0.0
  %1575 = vmatmul.mubr.f32.gmra.mrb[0].mxu0 %v1278
  %v1576 = vpop.f32.mrb[0].mxu0
  %v1577 = vadd.f32 %v78, %v1576
  %v1578 = vpop.f32.mrb[0].mxu0
  %1579 = vmatprep.mubr.f32.mxu0 0.0
  %1580 = vmatmul.mubr.f32.gmra.mrb[0].mxu0 %v1281
  %v1581 = vpop.f32.mrb[0].mxu0
  %v1582 = vadd.f32 %v78, %v1581
  %v1583 = vpop.f32.mrb[0].mxu0
  %1584 = vmatprep.mubr.f32.mxu0 0.0
  %1585 = vmatmul.mubr.f32.gmra.mrb[0].mxu0 %v1284
  %v1586 = vpop.f32.mrb[0].mxu0
  %v1587 = vadd.f32 %v78, %v1586
  %v1588 = vpop.f32.mrb[0].mxu0
  %1589 = vmatprep.mubr.f32.mxu0 0.0
  %1590 = vmatmul.mubr.f32.gmra.mrb[0].mxu0 %v1287
  %v1591 = vpop.f32.mrb[0].mxu0
  %v1592 = vadd.f32 %v78, %v1591
  %v1593 = vpop.f32.mrb[0].mxu0
  %1594 = vmatprep.mubr.f32.mxu0 0.0
  %1595 = vmatmul.mubr.f32.gmra.mrb[0].mxu0 %v1290
  %v1596 = vpop.f32.mrb[0].mxu0
  %v1597 = vadd.f32 %v78, %v1596
  %v1598 = vpop.f32.mrb[0].mxu0
  %1599 = vmatprep.mubr.f32.mxu0 0.0
  %1600 = vmatmul.mubr.f32.gmra.mrb[0].mxu0 %v1293
  %v1601 = vpop.f32.mrb[0].mxu0
  %v1602 = vadd.f32 %v78, %v1601
  %v1603 = vpop.f32.mrb[0].mxu0
  %1604 = vdwg.mxu0
  %v1605 = vmax.f32 %v1049, %v1362
  %v1606 = vmax.f32 %v1050, %v1367
  %v1607 = vmax.f32 %v1051, %v1372
  %v1608 = vmax.f32 %v1052, %v1377
  %v1609 = vmax.f32 %v1053, %v1382
  %v1610 = vmax.f32 %v1054, %v1387
  %v1611 = vmax.f32 %v1055, %v1392
  %v1612 = vmax.f32 %v1056, %v1397
  %v1613 = vmax.f32 %v1057, %v1402
  %v1614 = vmax.f32 %v1058, %v1407
  %v1615 = vmax.f32 %v1059, %v1412
  %v1616 = vmax.f32 %v1060, %v1417
  %v1617 = vmax.f32 %v1061, %v1422
  %v1618 = vmax.f32 %v1062, %v1427
  %v1619 = vmax.f32 %v1063, %v1432
  %v1620 = vmax.f32 %v1064, %v1437
  %v1621 = vmax.f32 %v1065, %v1442
  %v1622 = vmax.f32 %v1066, %v1447
  %v1623 = vmax.f32 %v1067, %v1452
  %v1624 = vmax.f32 %v1068, %v1457
  %v1625 = vmax.f32 %v1069, %v1462
  %v1626 = vmax.f32 %v1070, %v1467
  %v1627 = vmax.f32 %v1071, %v1472
  %v1628 = vmax.f32 %v1072, %v1477
  %v1629 = vmax.f32 %v1073, %v1482
  %v1630 = vmax.f32 %v1074, %v1487
  %v1631 = vmax.f32 %v1075, %v1492
  %v1632 = vmax.f32 %v1076, %v1497
  %v1633 = vmax.f32 %v1077, %v1502
  %v1634 = vmax.f32 %v1078, %v1507
  %v1635 = vmax.f32 %v1079, %v1512
  %v1636 = vmax.f32 %v1080, %v1517
  %v1637 = vmax.f32 %v1081, %v1522
  %v1638 = vmax.f32 %v1082, %v1527
  %v1639 = vmax.f32 %v1083, %v1532
  %v1640 = vmax.f32 %v1084, %v1537
  %v1641 = vmax.f32 %v1085, %v1542
  %v1642 = vmax.f32 %v1086, %v1547
  %v1643 = vmax.f32 %v1087, %v1552
  %v1644 = vmax.f32 %v1088, %v1557
  %v1645 = vmax.f32 %v1089, %v1562
  %v1646 = vmax.f32 %v1090, %v1567
  %v1647 = vmax.f32 %v1091, %v1572
  %v1648 = vmax.f32 %v1092, %v1577
  %v1649 = vmax.f32 %v1093, %v1582
  %v1650 = vmax.f32 %v1094, %v1587
  %v1651 = vmax.f32 %v1095, %v1592
  %v1652 = vmax.f32 %v1096, %v1597
  %v1653 = vmax.f32 %v1097, %v1602
  %s1654 = scalar_lea.vmem %s0, 1176
  %v1655 = vld [vmem:[%s1654] sm:$0xff]
  %v1656 = vld [vmem:[%s1654 + $0x8] sm:$0xff]
  %v1657 = vld [vmem:[%s1654 + $0x10] sm:$0xff]
  %v1658 = vld [vmem:[%s1654 + $0x18] sm:$0xff]
  %v1659 = vld [vmem:[%s1654 + $0x20] sm:$0xff]
  %v1660 = vld [vmem:[%s1654 + $0x28] sm:$0xff]
  %v1661 = vld [vmem:[%s1654 + $0x30] sm:$0xff]
  %v1662 = vld [vmem:[%s1654 + $0x38] sm:$0xff]
  %v1663 = vld [vmem:[%s1654 + $0x40] sm:$0xff]
  %v1664 = vld [vmem:[%s1654 + $0x48] sm:$0xff]
  %v1665 = vld [vmem:[%s1654 + $0x50] sm:$0xff]
  %v1666 = vld [vmem:[%s1654 + $0x58] sm:$0xff]
  %v1667 = vld [vmem:[%s1654 + $0x60] sm:$0xff]
  %v1668 = vld [vmem:[%s1654 + $0x68] sm:$0xff]
  %v1669 = vld [vmem:[%s1654 + $0x70] sm:$0xff]
  %v1670 = vld [vmem:[%s1654 + $0x78] sm:$0xff]
  %v1671 = vld [vmem:[%s1654 + $0x80] sm:$0xff]
  %v1672 = vld [vmem:[%s1654 + $0x88] sm:$0xff]
  %v1673 = vld [vmem:[%s1654 + $0x90] sm:$0xff]
  %v1674 = vld [vmem:[%s1654 + $0x98] sm:$0xff]
  %v1675 = vld [vmem:[%s1654 + $0xa0] sm:$0xff]
  %v1676 = vld [vmem:[%s1654 + $0xa8] sm:$0xff]
  %v1677 = vld [vmem:[%s1654 + $0xb0] sm:$0xff]
  %v1678 = vld [vmem:[%s1654 + $0xb8] sm:$0xff]
  %v1679 = vld [vmem:[%s1654 + $0xc0] sm:$0xff]
  %v1680 = vld [vmem:[%s1654 + $0xc8] sm:$0xff]
  %v1681 = vld [vmem:[%s1654 + $0xd0] sm:$0xff]
  %v1682 = vld [vmem:[%s1654 + $0xd8] sm:$0xff]
  %v1683 = vld [vmem:[%s1654 + $0xe0] sm:$0xff]
  %v1684 = vld [vmem:[%s1654 + $0xe8] sm:$0xff]
  %v1685 = vld [vmem:[%s1654 + $0xf0] sm:$0xff]
  %v1686 = vld [vmem:[%s1654 + $0xf8] sm:$0xff]
  %v1687 = vld [vmem:[%s1654 + $0x100] sm:$0xff]
  %v1688 = vld [vmem:[%s1654 + $0x108] sm:$0xff]
  %v1689 = vld [vmem:[%s1654 + $0x110] sm:$0xff]
  %v1690 = vld [vmem:[%s1654 + $0x118] sm:$0xff]
  %v1691 = vld [vmem:[%s1654 + $0x120] sm:$0xff]
  %v1692 = vld [vmem:[%s1654 + $0x128] sm:$0xff]
  %v1693 = vld [vmem:[%s1654 + $0x130] sm:$0xff]
  %v1694 = vld [vmem:[%s1654 + $0x138] sm:$0xff]
  %v1695 = vld [vmem:[%s1654 + $0x140] sm:$0xff]
  %v1696 = vld [vmem:[%s1654 + $0x148] sm:$0xff]
  %v1697 = vld [vmem:[%s1654 + $0x150] sm:$0xff]
  %v1698 = vld [vmem:[%s1654 + $0x158] sm:$0xff]
  %v1699 = vld [vmem:[%s1654 + $0x160] sm:$0xff]
  %v1700 = vld [vmem:[%s1654 + $0x168] sm:$0xff]
  %v1701 = vld [vmem:[%s1654 + $0x170] sm:$0xff]
  %v1702 = vld [vmem:[%s1654 + $0x178] sm:$0xff]
  %v1703 = vld [vmem:[%s1654 + $0x180] sm:$0xff]
  %v1705 = vsel %vm80, %v1655, 0
  %v1708 = vsel %vm80, %v1656, 0
  %v1711 = vsel %vm80, %v1657, 0
  %v1714 = vsel %vm80, %v1658, 0
  %v1717 = vsel %vm80, %v1659, 0
  %v1720 = vsel %vm80, %v1660, 0
  %v1723 = vsel %vm80, %v1661, 0
  %v1726 = vsel %vm80, %v1662, 0
  %v1729 = vsel %vm80, %v1663, 0
  %v1732 = vsel %vm80, %v1664, 0
  %v1735 = vsel %vm80, %v1665, 0
  %v1738 = vsel %vm80, %v1666, 0
  %v1741 = vsel %vm80, %v1667, 0
  %v1744 = vsel %vm80, %v1668, 0
  %v1747 = vsel %vm80, %v1669, 0
  %v1750 = vsel %vm80, %v1670, 0
  %v1753 = vsel %vm80, %v1671, 0
  %v1756 = vsel %vm80, %v1672, 0
  %v1759 = vsel %vm80, %v1673, 0
  %v1762 = vsel %vm80, %v1674, 0
  %v1765 = vsel %vm80, %v1675, 0
  %v1768 = vsel %vm80, %v1676, 0
  %v1771 = vsel %vm80, %v1677, 0
  %v1774 = vsel %vm80, %v1678, 0
  %v1777 = vsel %vm80, %v1679, 0
  %v1780 = vsel %vm80, %v1680, 0
  %v1783 = vsel %vm80, %v1681, 0
  %v1786 = vsel %vm80, %v1682, 0
  %v1789 = vsel %vm80, %v1683, 0
  %v1792 = vsel %vm80, %v1684, 0
  %v1795 = vsel %vm80, %v1685, 0
  %v1798 = vsel %vm80, %v1686, 0
  %v1801 = vsel %vm80, %v1687, 0
  %v1804 = vsel %vm80, %v1688, 0
  %v1807 = vsel %vm80, %v1689, 0
  %v1810 = vsel %vm80, %v1690, 0
  %v1813 = vsel %vm80, %v1691, 0
  %v1816 = vsel %vm80, %v1692, 0
  %v1819 = vsel %vm80, %v1693, 0
  %v1822 = vsel %vm80, %v1694, 0
  %v1825 = vsel %vm80, %v1695, 0
  %v1828 = vsel %vm80, %v1696, 0
  %v1831 = vsel %vm80, %v1697, 0
  %v1834 = vsel %vm80, %v1698, 0
  %v1837 = vsel %vm80, %v1699, 0
  %v1840 = vsel %vm80, %v1700, 0
  %v1843 = vsel %vm80, %v1701, 0
  %v1846 = vsel %vm80, %v1702, 0
  %v1849 = vsel %vm80, %v1703, 0
  %1851 = vmatprep.subr.mxu0 0.0
  %1852 = vmatpush1.msra.mxu0 %v14
  %1853 = vmatprep.subr.mxu0 0.0
  %1854 = vmatpush1.msra.mxu0 %v15
  %1855 = vmatprep.subr.mxu0 0.0
  %1856 = vmatpush1.msra.mxu0 %v16
  %1857 = vmatprep.subr.mxu0 0.0
  %1858 = vmatpush1.msra.mxu0 %v17
  %1859 = vmatprep.subr.mxu0 0.0
  %1860 = vmatpush1.msra.mxu0 %v18
  %1861 = vmatprep.subr.mxu0 0.0
  %1862 = vmatpush1.msra.mxu0 %v19
  %1863 = vmatprep.subr.mxu0 0.0
  %1864 = vmatpush1.msra.mxu0 %v20
  %1865 = vmatprep.subr.mxu0 0.0
  %1866 = vmatpush1.msra.mxu0 %v21
  %1867 = vmatprep.subr.mxu0 0.0
  %1868 = vmatpush1.msra.mxu0 %v22
  %1869 = vmatprep.subr.mxu0 0.0
  %1870 = vmatpush1.msra.mxu0 %v230
  %1871 = vmatprep.subr.mxu0 0.0
  %1872 = vmatpush1.msra.mxu0 0.0
  %1873 = vmatprep.subr.mxu0 0.0
  %1874 = vmatpush1.msra.mxu0 0.0
  %1875 = vmatprep.subr.mxu0 0.0
  %1876 = vmatpush1.msra.mxu0 0.0
  %1877 = vmatprep.subr.mxu0 0.0
  %1878 = vmatpush1.msra.mxu0 0.0
  %1879 = vmatprep.subr.mxu0 0.0
  %1880 = vmatpush1.msra.mxu0 0.0
  %1881 = vmatprep.subr.mxu0 0.0
  %1882 = vmatpush1.msra.mxu0 0.0
  %1883 = vmatprep.subr.mxu0 0.0
  %1884 = vmatpush1.msra.mxu0 0.0
  %1885 = vmatprep.subr.mxu0 0.0
  %1886 = vmatpush1.msra.mxu0 0.0
  %1887 = vmatprep.subr.mxu0 0.0
  %1888 = vmatpush1.msra.mxu0 0.0
  %1889 = vmatprep.subr.mxu0 0.0
  %1890 = vmatpush1.msra.mxu0 0.0
  %1891 = vmatprep.subr.mxu0 0.0
  %1892 = vmatpush1.msra.mxu0 0.0
  %1893 = vmatprep.subr.mxu0 0.0
  %1894 = vmatpush1.msra.mxu0 0.0
  %1895 = vmatprep.subr.mxu0 0.0
  %1896 = vmatpush1.msra.mxu0 0.0
  %1897 = vmatprep.subr.mxu0 0.0
  %1898 = vmatpush1.msra.mxu0 0.0
  %1899 = vmatprep.subr.mxu0 0.0
  %1900 = vmatpush1.msra.mxu0 0.0
  %1901 = vmatprep.subr.mxu0 0.0
  %1902 = vmatpush1.msra.mxu0 0.0
  %1903 = vmatprep.subr.mxu0 0.0
  %1904 = vmatpush1.msra.mxu0 0.0
  %1905 = vmatprep.subr.mxu0 0.0
  %1906 = vmatpush1.msra.mxu0 0.0
  %1907 = vmatprep.subr.mxu0 0.0
  %1908 = vmatpush1.msra.mxu0 0.0
  %1909 = vmatprep.subr.mxu0 0.0
  %1910 = vmatpush1.msra.mxu0 0.0
  %1911 = vmatprep.subr.mxu0 0.0
  %1912 = vmatpush1.msra.mxu0 0.0
  %1913 = vmatprep.subr.mxu0 0.0
  %1914 = vmatpush1.msra.mxu0 0.0
  %1915 = vmatprep.mubr.f32.mxu0 0.0
  %1916 = vmatmul.mubr.f32.gmra.mrb[0].mxu0 %v1705
  %v1917 = vpop.f32.mrb[0].mxu0
  %v1918 = vadd.f32 %v78, %v1917
  %v1919 = vpop.f32.mrb[0].mxu0
  %1920 = vmatprep.mubr.f32.mxu0 0.0
  %1921 = vmatmul.mubr.f32.gmra.mrb[0].mxu0 %v1708
  %v1922 = vpop.f32.mrb[0].mxu0
  %v1923 = vadd.f32 %v78, %v1922
  %v1924 = vpop.f32.mrb[0].mxu0
  %1925 = vmatprep.mubr.f32.mxu0 0.0
  %1926 = vmatmul.mubr.f32.gmra.mrb[0].mxu0 %v1711
  %v1927 = vpop.f32.mrb[0].mxu0
  %v1928 = vadd.f32 %v78, %v1927
  %v1929 = vpop.f32.mrb[0].mxu0
  %1930 = vmatprep.mubr.f32.mxu0 0.0
  %1931 = vmatmul.mubr.f32.gmra.mrb[0].mxu0 %v1714
  %v1932 = vpop.f32.mrb[0].mxu0
  %v1933 = vadd.f32 %v78, %v1932
  %v1934 = vpop.f32.mrb[0].mxu0
  %1935 = vmatprep.mubr.f32.mxu0 0.0
  %1936 = vmatmul.mubr.f32.gmra.mrb[0].mxu0 %v1717
  %v1937 = vpop.f32.mrb[0].mxu0
  %v1938 = vadd.f32 %v78, %v1937
  %v1939 = vpop.f32.mrb[0].mxu0
  %1940 = vmatprep.mubr.f32.mxu0 0.0
  %1941 = vmatmul.mubr.f32.gmra.mrb[0].mxu0 %v1720
  %v1942 = vpop.f32.mrb[0].mxu0
  %v1943 = vadd.f32 %v78, %v1942
  %v1944 = vpop.f32.mrb[0].mxu0
  %1945 = vmatprep.mubr.f32.mxu0 0.0
  %1946 = vmatmul.mubr.f32.gmra.mrb[0].mxu0 %v1723
  %v1947 = vpop.f32.mrb[0].mxu0
  %v1948 = vadd.f32 %v78, %v1947
  %v1949 = vpop.f32.mrb[0].mxu0
  %1950 = vmatprep.mubr.f32.mxu0 0.0
  %1951 = vmatmul.mubr.f32.gmra.mrb[0].mxu0 %v1726
  %v1952 = vpop.f32.mrb[0].mxu0
  %v1953 = vadd.f32 %v78, %v1952
  %v1954 = vpop.f32.mrb[0].mxu0
  %1955 = vmatprep.mubr.f32.mxu0 0.0
  %1956 = vmatmul.mubr.f32.gmra.mrb[0].mxu0 %v1729
  %v1957 = vpop.f32.mrb[0].mxu0
  %v1958 = vadd.f32 %v78, %v1957
  %v1959 = vpop.f32.mrb[0].mxu0
  %1960 = vmatprep.mubr.f32.mxu0 0.0
  %1961 = vmatmul.mubr.f32.gmra.mrb[0].mxu0 %v1732
  %v1962 = vpop.f32.mrb[0].mxu0
  %v1963 = vadd.f32 %v78, %v1962
  %v1964 = vpop.f32.mrb[0].mxu0
  %1965 = vmatprep.mubr.f32.mxu0 0.0
  %1966 = vmatmul.mubr.f32.gmra.mrb[0].mxu0 %v1735
  %v1967 = vpop.f32.mrb[0].mxu0
  %v1968 = vadd.f32 %v78, %v1967
  %v1969 = vpop.f32.mrb[0].mxu0
  %1970 = vmatprep.mubr.f32.mxu0 0.0
  %1971 = vmatmul.mubr.f32.gmra.mrb[0].mxu0 %v1738
  %v1972 = vpop.f32.mrb[0].mxu0
  %v1973 = vadd.f32 %v78, %v1972
  %v1974 = vpop.f32.mrb[0].mxu0
  %1975 = vmatprep.mubr.f32.mxu0 0.0
  %1976 = vmatmul.mubr.f32.gmra.mrb[0].mxu0 %v1741
  %v1977 = vpop.f32.mrb[0].mxu0
  %v1978 = vadd.f32 %v78, %v1977
  %v1979 = vpop.f32.mrb[0].mxu0
  %1980 = vmatprep.mubr.f32.mxu0 0.0
  %1981 = vmatmul.mubr.f32.gmra.mrb[0].mxu0 %v1744
  %v1982 = vpop.f32.mrb[0].mxu0
  %v1983 = vadd.f32 %v78, %v1982
  %v1984 = vpop.f32.mrb[0].mxu0
  %1985 = vmatprep.mubr.f32.mxu0 0.0
  %1986 = vmatmul.mubr.f32.gmra.mrb[0].mxu0 %v1747
  %v1987 = vpop.f32.mrb[0].mxu0
  %v1988 = vadd.f32 %v78, %v1987
  %v1989 = vpop.f32.mrb[0].mxu0
  %1990 = vmatprep.mubr.f32.mxu0 0.0
  %1991 = vmatmul.mubr.f32.gmra.mrb[0].mxu0 %v1750
  %v1992 = vpop.f32.mrb[0].mxu0
  %v1993 = vadd.f32 %v78, %v1992
  %v1994 = vpop.f32.mrb[0].mxu0
  %1995 = vmatprep.mubr.f32.mxu0 0.0
  %1996 = vmatmul.mubr.f32.gmra.mrb[0].mxu0 %v1753
  %v1997 = vpop.f32.mrb[0].mxu0
  %v1998 = vadd.f32 %v78, %v1997
  %v1999 = vpop.f32.mrb[0].mxu0
  %2000 = vmatprep.mubr.f32.mxu0 0.0
  %2001 = vmatmul.mubr.f32.gmra.mrb[0].mxu0 %v1756
  %v2002 = vpop.f32.mrb[0].mxu0
  %v2003 = vadd.f32 %v78, %v2002
  %v2004 = vpop.f32.mrb[0].mxu0
  %2005 = vmatprep.mubr.f32.mxu0 0.0
  %2006 = vmatmul.mubr.f32.gmra.mrb[0].mxu0 %v1759
  %v2007 = vpop.f32.mrb[0].mxu0
  %v2008 = vadd.f32 %v78, %v2007
  %v2009 = vpop.f32.mrb[0].mxu0
  %2010 = vmatprep.mubr.f32.mxu0 0.0
  %2011 = vmatmul.mubr.f32.gmra.mrb[0].mxu0 %v1762
  %v2012 = vpop.f32.mrb[0].mxu0
  %v2013 = vadd.f32 %v78, %v2012
  %v2014 = vpop.f32.mrb[0].mxu0
  %2015 = vmatprep.mubr.f32.mxu0 0.0
  %2016 = vmatmul.mubr.f32.gmra.mrb[0].mxu0 %v1765
  %v2017 = vpop.f32.mrb[0].mxu0
  %v2018 = vadd.f32 %v78, %v2017
  %v2019 = vpop.f32.mrb[0].mxu0
  %2020 = vmatprep.mubr.f32.mxu0 0.0
  %2021 = vmatmul.mubr.f32.gmra.mrb[0].mxu0 %v1768
  %v2022 = vpop.f32.mrb[0].mxu0
  %v2023 = vadd.f32 %v78, %v2022
  %v2024 = vpop.f32.mrb[0].mxu0
  %2025 = vmatprep.mubr.f32.mxu0 0.0
  %2026 = vmatmul.mubr.f32.gmra.mrb[0].mxu0 %v1771
  %v2027 = vpop.f32.mrb[0].mxu0
  %v2028 = vadd.f32 %v78, %v2027
  %v2029 = vpop.f32.mrb[0].mxu0
  %2030 = vmatprep.mubr.f32.mxu0 0.0
  %2031 = vmatmul.mubr.f32.gmra.mrb[0].mxu0 %v1774
  %v2032 = vpop.f32.mrb[0].mxu0
  %v2033 = vadd.f32 %v78, %v2032
  %v2034 = vpop.f32.mrb[0].mxu0
  %2035 = vmatprep.mubr.f32.mxu0 0.0
  %2036 = vmatmul.mubr.f32.gmra.mrb[0].mxu0 %v1777
  %v2037 = vpop.f32.mrb[0].mxu0
  %v2038 = vadd.f32 %v78, %v2037
  %v2039 = vpop.f32.mrb[0].mxu0
  %2040 = vmatprep.mubr.f32.mxu0 0.0
  %2041 = vmatmul.mubr.f32.gmra.mrb[0].mxu0 %v1780
  %v2042 = vpop.f32.mrb[0].mxu0
  %v2043 = vadd.f32 %v78, %v2042
  %v2044 = vpop.f32.mrb[0].mxu0
  %2045 = vmatprep.mubr.f32.mxu0 0.0
  %2046 = vmatmul.mubr.f32.gmra.mrb[0].mxu0 %v1783
  %v2047 = vpop.f32.mrb[0].mxu0
  %v2048 = vadd.f32 %v78, %v2047
  %v2049 = vpop.f32.mrb[0].mxu0
  %2050 = vmatprep.mubr.f32.mxu0 0.0
  %2051 = vmatmul.mubr.f32.gmra.mrb[0].mxu0 %v1786
  %v2052 = vpop.f32.mrb[0].mxu0
  %v2053 = vadd.f32 %v78, %v2052
  %v2054 = vpop.f32.mrb[0].mxu0
  %2055 = vmatprep.mubr.f32.mxu0 0.0
  %2056 = vmatmul.mubr.f32.gmra.mrb[0].mxu0 %v1789
  %v2057 = vpop.f32.mrb[0].mxu0
  %v2058 = vadd.f32 %v78, %v2057
  %v2059 = vpop.f32.mrb[0].mxu0
  %2060 = vmatprep.mubr.f32.mxu0 0.0
  %2061 = vmatmul.mubr.f32.gmra.mrb[0].mxu0 %v1792
  %v2062 = vpop.f32.mrb[0].mxu0
  %v2063 = vadd.f32 %v78, %v2062
  %v2064 = vpop.f32.mrb[0].mxu0
  %2065 = vmatprep.mubr.f32.mxu0 0.0
  %2066 = vmatmul.mubr.f32.gmra.mrb[0].mxu0 %v1795
  %v2067 = vpop.f32.mrb[0].mxu0
  %v2068 = vadd.f32 %v78, %v2067
  %v2069 = vpop.f32.mrb[0].mxu0
  %2070 = vmatprep.mubr.f32.mxu0 0.0
  %2071 = vmatmul.mubr.f32.gmra.mrb[0].mxu0 %v1798
  %v2072 = vpop.f32.mrb[0].mxu0
  %v2073 = vadd.f32 %v78, %v2072
  %v2074 = vpop.f32.mrb[0].mxu0
  %2075 = vmatprep.mubr.f32.mxu0 0.0
  %2076 = vmatmul.mubr.f32.gmra.mrb[0].mxu0 %v1801
  %v2077 = vpop.f32.mrb[0].mxu0
  %v2078 = vadd.f32 %v78, %v2077
  %v2079 = vpop.f32.mrb[0].mxu0
  %2080 = vmatprep.mubr.f32.mxu0 0.0
  %2081 = vmatmul.mubr.f32.gmra.mrb[0].mxu0 %v1804
  %v2082 = vpop.f32.mrb[0].mxu0
  %v2083 = vadd.f32 %v78, %v2082
  %v2084 = vpop.f32.mrb[0].mxu0
  %2085 = vmatprep.mubr.f32.mxu0 0.0
  %2086 = vmatmul.mubr.f32.gmra.mrb[0].mxu0 %v1807
  %v2087 = vpop.f32.mrb[0].mxu0
  %v2088 = vadd.f32 %v78, %v2087
  %v2089 = vpop.f32.mrb[0].mxu0
  %2090 = vmatprep.mubr.f32.mxu0 0.0
  %2091 = vmatmul.mubr.f32.gmra.mrb[0].mxu0 %v1810
  %v2092 = vpop.f32.mrb[0].mxu0
  %v2093 = vadd.f32 %v78, %v2092
  %v2094 = vpop.f32.mrb[0].mxu0
  %2095 = vmatprep.mubr.f32.mxu0 0.0
  %2096 = vmatmul.mubr.f32.gmra.mrb[0].mxu0 %v1813
  %v2097 = vpop.f32.mrb[0].mxu0
  %v2098 = vadd.f32 %v78, %v2097
  %v2099 = vpop.f32.mrb[0].mxu0
  %2100 = vmatprep.mubr.f32.mxu0 0.0
  %2101 = vmatmul.mubr.f32.gmra.mrb[0].mxu0 %v1816
  %v2102 = vpop.f32.mrb[0].mxu0
  %v2103 = vadd.f32 %v78, %v2102
  %v2104 = vpop.f32.mrb[0].mxu0
  %2105 = vmatprep.mubr.f32.mxu0 0.0
  %2106 = vmatmul.mubr.f32.gmra.mrb[0].mxu0 %v1819
  %v2107 = vpop.f32.mrb[0].mxu0
  %v2108 = vadd.f32 %v78, %v2107
  %v2109 = vpop.f32.mrb[0].mxu0
  %2110 = vmatprep.mubr.f32.mxu0 0.0
  %2111 = vmatmul.mubr.f32.gmra.mrb[0].mxu0 %v1822
  %v2112 = vpop.f32.mrb[0].mxu0
  %v2113 = vadd.f32 %v78, %v2112
  %v2114 = vpop.f32.mrb[0].mxu0
  %2115 = vmatprep.mubr.f32.mxu0 0.0
  %2116 = vmatmul.mubr.f32.gmra.mrb[0].mxu0 %v1825
  %v2117 = vpop.f32.mrb[0].mxu0
  %v2118 = vadd.f32 %v78, %v2117
  %v2119 = vpop.f32.mrb[0].mxu0
  %2120 = vmatprep.mubr.f32.mxu0 0.0
  %2121 = vmatmul.mubr.f32.gmra.mrb[0].mxu0 %v1828
  %v2122 = vpop.f32.mrb[0].mxu0
  %v2123 = vadd.f32 %v78, %v2122
  %v2124 = vpop.f32.mrb[0].mxu0
  %2125 = vmatprep.mubr.f32.mxu0 0.0
  %2126 = vmatmul.mubr.f32.gmra.mrb[0].mxu0 %v1831
  %v2127 = vpop.f32.mrb[0].mxu0
  %v2128 = vadd.f32 %v78, %v2127
  %v2129 = vpop.f32.mrb[0].mxu0
  %2130 = vmatprep.mubr.f32.mxu0 0.0
  %2131 = vmatmul.mubr.f32.gmra.mrb[0].mxu0 %v1834
  %v2132 = vpop.f32.mrb[0].mxu0
  %v2133 = vadd.f32 %v78, %v2132
  %v2134 = vpop.f32.mrb[0].mxu0
  %2135 = vmatprep.mubr.f32.mxu0 0.0
  %2136 = vmatmul.mubr.f32.gmra.mrb[0].mxu0 %v1837
  %v2137 = vpop.f32.mrb[0].mxu0
  %v2138 = vadd.f32 %v78, %v2137
  %v2139 = vpop.f32.mrb[0].mxu0
  %2140 = vmatprep.mubr.f32.mxu0 0.0
  %2141 = vmatmul.mubr.f32.gmra.mrb[0].mxu0 %v1840
  %v2142 = vpop.f32.mrb[0].mxu0
  %v2143 = vadd.f32 %v78, %v2142
  %v2144 = vpop.f32.mrb[0].mxu0
  %2145 = vmatprep.mubr.f32.mxu0 0.0
  %2146 = vmatmul.mubr.f32.gmra.mrb[0].mxu0 %v1843
  %v2147 = vpop.f32.mrb[0].mxu0
  %v2148 = vadd.f32 %v78, %v2147
  %v2149 = vpop.f32.mrb[0].mxu0
  %2150 = vmatprep.mubr.f32.mxu0 0.0
  %2151 = vmatmul.mubr.f32.gmra.mrb[0].mxu0 %v1846
  %v2152 = vpop.f32.mrb[0].mxu0
  %v2153 = vadd.f32 %v78, %v2152
  %v2154 = vpop.f32.mrb[0].mxu0
  %2155 = vmatprep.mubr.f32.mxu0 0.0
  %2156 = vmatmul.mubr.f32.gmra.mrb[0].mxu0 %v1849
  %v2157 = vpop.f32.mrb[0].mxu0
  %v2158 = vadd.f32 %v78, %v2157
  %v2159 = vpop.f32.mrb[0].mxu0
  %2160 = vdwg.mxu0
  %v2161 = vmax.f32 %v1605, %v1918
  %v2162 = vmax.f32 %v1606, %v1923
  %v2163 = vmax.f32 %v1607, %v1928
  %v2164 = vmax.f32 %v1608, %v1933
  %v2165 = vmax.f32 %v1609, %v1938
  %v2166 = vmax.f32 %v1610, %v1943
  %v2167 = vmax.f32 %v1611, %v1948
  %v2168 = vmax.f32 %v1612, %v1953
  %v2169 = vmax.f32 %v1613, %v1958
  %v2170 = vmax.f32 %v1614, %v1963
  %v2171 = vmax.f32 %v1615, %v1968
  %v2172 = vmax.f32 %v1616, %v1973
  %v2173 = vmax.f32 %v1617, %v1978
  %v2174 = vmax.f32 %v1618, %v1983
  %v2175 = vmax.f32 %v1619, %v1988
  %v2176 = vmax.f32 %v1620, %v1993
  %v2177 = vmax.f32 %v1621, %v1998
  %v2178 = vmax.f32 %v1622, %v2003
  %v2179 = vmax.f32 %v1623, %v2008
  %v2180 = vmax.f32 %v1624, %v2013
  %v2181 = vmax.f32 %v1625, %v2018
  %v2182 = vmax.f32 %v1626, %v2023
  %v2183 = vmax.f32 %v1627, %v2028
  %v2184 = vmax.f32 %v1628, %v2033
  %v2185 = vmax.f32 %v1629, %v2038
  %v2186 = vmax.f32 %v1630, %v2043
  %v2187 = vmax.f32 %v1631, %v2048
  %v2188 = vmax.f32 %v1632, %v2053
  %v2189 = vmax.f32 %v1633, %v2058
  %v2190 = vmax.f32 %v1634, %v2063
  %v2191 = vmax.f32 %v1635, %v2068
  %v2192 = vmax.f32 %v1636, %v2073
  %v2193 = vmax.f32 %v1637, %v2078
  %v2194 = vmax.f32 %v1638, %v2083
  %v2195 = vmax.f32 %v1639, %v2088
  %v2196 = vmax.f32 %v1640, %v2093
  %v2197 = vmax.f32 %v1641, %v2098
  %v2198 = vmax.f32 %v1642, %v2103
  %v2199 = vmax.f32 %v1643, %v2108
  %v2200 = vmax.f32 %v1644, %v2113
  %v2201 = vmax.f32 %v1645, %v2118
  %v2202 = vmax.f32 %v1646, %v2123
  %v2203 = vmax.f32 %v1647, %v2128
  %v2204 = vmax.f32 %v1648, %v2133
  %v2205 = vmax.f32 %v1649, %v2138
  %v2206 = vmax.f32 %v1650, %v2143
  %v2207 = vmax.f32 %v1651, %v2148
  %v2208 = vmax.f32 %v1652, %v2153
  %v2209 = vmax.f32 %v1653, %v2158
  %v2210 = vmax.f32 %v2161, 0.0
  %v2211 = vmax.f32 %v2162, 0.0
  %v2212 = vmax.f32 %v2163, 0.0
  %v2213 = vmax.f32 %v2164, 0.0
  %v2214 = vmax.f32 %v2165, 0.0
  %v2215 = vmax.f32 %v2166, 0.0
  %v2216 = vmax.f32 %v2167, 0.0
  %v2217 = vmax.f32 %v2168, 0.0
  %v2218 = vmax.f32 %v2169, 0.0
  %v2219 = vmax.f32 %v2170, 0.0
  %v2220 = vmax.f32 %v2171, 0.0
  %v2221 = vmax.f32 %v2172, 0.0
  %v2222 = vmax.f32 %v2173, 0.0
  %v2223 = vmax.f32 %v2174, 0.0
  %v2224 = vmax.f32 %v2175, 0.0
  %v2225 = vmax.f32 %v2176, 0.0
  %v2226 = vmax.f32 %v2177, 0.0
  %v2227 = vmax.f32 %v2178, 0.0
  %v2228 = vmax.f32 %v2179, 0.0
  %v2229 = vmax.f32 %v2180, 0.0
  %v2230 = vmax.f32 %v2181, 0.0
  %v2231 = vmax.f32 %v2182, 0.0
  %v2232 = vmax.f32 %v2183, 0.0
  %v2233 = vmax.f32 %v2184, 0.0
  %v2234 = vmax.f32 %v2185, 0.0
  %v2235 = vmax.f32 %v2186, 0.0
  %v2236 = vmax.f32 %v2187, 0.0
  %v2237 = vmax.f32 %v2188, 0.0
  %v2238 = vmax.f32 %v2189, 0.0
  %v2239 = vmax.f32 %v2190, 0.0
  %v2240 = vmax.f32 %v2191, 0.0
  %v2241 = vmax.f32 %v2192, 0.0
  %v2242 = vmax.f32 %v2193, 0.0
  %v2243 = vmax.f32 %v2194, 0.0
  %v2244 = vmax.f32 %v2195, 0.0
  %v2245 = vmax.f32 %v2196, 0.0
  %v2246 = vmax.f32 %v2197, 0.0
  %v2247 = vmax.f32 %v2198, 0.0
  %v2248 = vmax.f32 %v2199, 0.0
  %v2249 = vmax.f32 %v2200, 0.0
  %v2250 = vmax.f32 %v2201, 0.0
  %v2251 = vmax.f32 %v2202, 0.0
  %v2252 = vmax.f32 %v2203, 0.0
  %v2253 = vmax.f32 %v2204, 0.0
  %v2254 = vmax.f32 %v2205, 0.0
  %v2255 = vmax.f32 %v2206, 0.0
  %v2256 = vmax.f32 %v2207, 0.0
  %v2257 = vmax.f32 %v2208, 0.0
  %v2258 = vmax.f32 %v2209, 0.0
  %vm2259 = vcmask 48128
  %2260 = vst.msk [vmem:[%s3] sm:$0xff] %vm2259, %v2210
  %2261 = vst.msk [vmem:[%s3 + $0x8] sm:$0xff] %vm2259, %v2211
  %2262 = vst.msk [vmem:[%s3 + $0x10] sm:$0xff] %vm2259, %v2212
  %2263 = vst.msk [vmem:[%s3 + $0x18] sm:$0xff] %vm2259, %v2213
  %2264 = vst.msk [vmem:[%s3 + $0x20] sm:$0xff] %vm2259, %v2214
  %2265 = vst.msk [vmem:[%s3 + $0x28] sm:$0xff] %vm2259, %v2215
  %2266 = vst.msk [vmem:[%s3 + $0x30] sm:$0xff] %vm2259, %v2216
  %2267 = vst.msk [vmem:[%s3 + $0x38] sm:$0xff] %vm2259, %v2217
  %2268 = vst.msk [vmem:[%s3 + $0x40] sm:$0xff] %vm2259, %v2218
  %2269 = vst.msk [vmem:[%s3 + $0x48] sm:$0xff] %vm2259, %v2219
  %2270 = vst.msk [vmem:[%s3 + $0x50] sm:$0xff] %vm2259, %v2220
  %2271 = vst.msk [vmem:[%s3 + $0x58] sm:$0xff] %vm2259, %v2221
  %2272 = vst.msk [vmem:[%s3 + $0x60] sm:$0xff] %vm2259, %v2222
  %2273 = vst.msk [vmem:[%s3 + $0x68] sm:$0xff] %vm2259, %v2223
  %2274 = vst.msk [vmem:[%s3 + $0x70] sm:$0xff] %vm2259, %v2224
  %2275 = vst.msk [vmem:[%s3 + $0x78] sm:$0xff] %vm2259, %v2225
  %2276 = vst.msk [vmem:[%s3 + $0x80] sm:$0xff] %vm2259, %v2226
  %2277 = vst.msk [vmem:[%s3 + $0x88] sm:$0xff] %vm2259, %v2227
  %2278 = vst.msk [vmem:[%s3 + $0x90] sm:$0xff] %vm2259, %v2228
  %2279 = vst.msk [vmem:[%s3 + $0x98] sm:$0xff] %vm2259, %v2229
  %2280 = vst.msk [vmem:[%s3 + $0xa0] sm:$0xff] %vm2259, %v2230
  %2281 = vst.msk [vmem:[%s3 + $0xa8] sm:$0xff] %vm2259, %v2231
  %2282 = vst.msk [vmem:[%s3 + $0xb0] sm:$0xff] %vm2259, %v2232
  %2283 = vst.msk [vmem:[%s3 + $0xb8] sm:$0xff] %vm2259, %v2233
  %2284 = vst.msk [vmem:[%s3 + $0xc0] sm:$0xff] %vm2259, %v2234
  %2285 = vst.msk [vmem:[%s3 + $0xc8] sm:$0xff] %vm2259, %v2235
  %2286 = vst.msk [vmem:[%s3 + $0xd0] sm:$0xff] %vm2259, %v2236
  %2287 = vst.msk [vmem:[%s3 + $0xd8] sm:$0xff] %vm2259, %v2237
  %2288 = vst.msk [vmem:[%s3 + $0xe0] sm:$0xff] %vm2259, %v2238
  %2289 = vst.msk [vmem:[%s3 + $0xe8] sm:$0xff] %vm2259, %v2239
  %2290 = vst.msk [vmem:[%s3 + $0xf0] sm:$0xff] %vm2259, %v2240
  %2291 = vst.msk [vmem:[%s3 + $0xf8] sm:$0xff] %vm2259, %v2241
  %2292 = vst.msk [vmem:[%s3 + $0x100] sm:$0xff] %vm2259, %v2242
  %2293 = vst.msk [vmem:[%s3 + $0x108] sm:$0xff] %vm2259, %v2243
  %2294 = vst.msk [vmem:[%s3 + $0x110] sm:$0xff] %vm2259, %v2244
  %2295 = vst.msk [vmem:[%s3 + $0x118] sm:$0xff] %vm2259, %v2245
  %2296 = vst.msk [vmem:[%s3 + $0x120] sm:$0xff] %vm2259, %v2246
  %2297 = vst.msk [vmem:[%s3 + $0x128] sm:$0xff] %vm2259, %v2247
  %2298 = vst.msk [vmem:[%s3 + $0x130] sm:$0xff] %vm2259, %v2248
  %2299 = vst.msk [vmem:[%s3 + $0x138] sm:$0xff] %vm2259, %v2249
  %2300 = vst.msk [vmem:[%s3 + $0x140] sm:$0xff] %vm2259, %v2250
  %2301 = vst.msk [vmem:[%s3 + $0x148] sm:$0xff] %vm2259, %v2251
  %2302 = vst.msk [vmem:[%s3 + $0x150] sm:$0xff] %vm2259, %v2252
  %2303 = vst.msk [vmem:[%s3 + $0x158] sm:$0xff] %vm2259, %v2253
  %2304 = vst.msk [vmem:[%s3 + $0x160] sm:$0xff] %vm2259, %v2254
  %2305 = vst.msk [vmem:[%s3 + $0x168] sm:$0xff] %vm2259, %v2255
  %2306 = vst.msk [vmem:[%s3 + $0x170] sm:$0xff] %vm2259, %v2256
  %2307 = vst.msk [vmem:[%s3 + $0x178] sm:$0xff] %vm2259, %v2257
  %2308 = vst.msk [vmem:[%s3 + $0x180] sm:$0xff] %vm2259, %v2258
  // Predicated region
  $region14: #{cnn_cifar_forward.3} parent=0 // pred_check
    _
  $region15: #{cnn_cifar_forward.3} parent=0 // pred_check_branch
    %2310 = sbr.rel (0) target = $region17
  $region16: #{cnn_cifar_forward.3} parent=0 // pred_region
    _
  $region17: #{cnn_cifar_forward.3} parent=0 // pred_fallthru
    _
  // Predicated region
  $region18: #{cnn_cifar_forward.3} parent=0 // pred_check
    _
  $region19: #{cnn_cifar_forward.3} parent=0 // pred_check_branch
    %2312 = sbr.rel (0) target = $region21
  $region20: #{cnn_cifar_forward.3} parent=0 // pred_region
    _
  $region21: #{cnn_cifar_forward.3} parent=0 // pred_fallthru
    _

// kernel: cnn_cifar_forward.4
$region0: #{cnn_cifar_forward.4}
  #allocation0 [shape = 'u32[]', space=smem, size = 0x4, offset = 0x4, fixed_abs, tag = 'smem constant byte address 0x4 - core index']
  #allocation1 [shape = 'u32[144,128]{1,0:T(1,128)}', space=vmem, size = 0x12000, scoped, tag = 'internal scratch']
  %s0 = inlined_call_operand.vmem [shape: f32[4,50,150], index: 0, kind: input, shape index: {}]
  %s1 = inlined_call_operand.vmem [shape: f32[150,16], index: 1, kind: input, shape index: {}]
  %s2 = inlined_call_operand.vmem [shape: f32[1,16], index: 2, kind: input, shape index: {}]
  %s3 = inlined_call_operand.vmem [shape: f32[50,16], index: 3, kind: output, shape index: {}]
  %s4 = sld [smem:[#allocation0]]
  $region22: #{cnn_cifar_forward.4} parent=0
    _
  %s6 = ssub.s32 1, %s4
  %s7 = scalar_select 0, %s6, %s4
  // Predicated region
  $region2: #{cnn_cifar_forward.4} parent=0 // pred_check
    _
  $region3: #{cnn_cifar_forward.4} parent=0 // pred_check_branch
    %9 = sbr.rel (0) target = $region5
  $region4: #{cnn_cifar_forward.4} parent=0 // pred_region
    _
  $region5: #{cnn_cifar_forward.4} parent=0 // pred_fallthru
    _
  // Predicated region
  $region6: #{cnn_cifar_forward.4} parent=0 // pred_check
    _
  $region7: #{cnn_cifar_forward.4} parent=0 // pred_check_branch
    %11 = sbr.rel (0) target = $region9
  $region8: #{cnn_cifar_forward.4} parent=0 // pred_region
    _
  $region9: #{cnn_cifar_forward.4} parent=0 // pred_fallthru
    _
  // Predicated region
  $region10: #{cnn_cifar_forward.4} parent=0 // pred_check
    _
  $region11: #{cnn_cifar_forward.4} parent=0 // pred_check_branch
    %13 = sbr.rel (0) target = $region13
  $region12: #{cnn_cifar_forward.4} parent=0 // pred_region
    _
  $region13: #{cnn_cifar_forward.4} parent=0 // pred_fallthru
    _
  %v14 = vld [vmem:[%s1] sm:$0xff]
  %v15 = vld [vmem:[%s1 + $0x8] sm:$0xff]
  %v16 = vld [vmem:[%s1 + $0x10] sm:$0xff]
  %v17 = vld [vmem:[%s1 + $0x18] sm:$0xff]
  %v18 = vld [vmem:[%s1 + $0x20] sm:$0xff]
  %v19 = vld [vmem:[%s1 + $0x28] sm:$0xff]
  %v20 = vld [vmem:[%s1 + $0x30] sm:$0xff]
  %v21 = vld [vmem:[%s1 + $0x38] sm:$0xff]
  %v22 = vld [vmem:[%s1 + $0x40] sm:$0xff]
  %v23 = vld [vmem:[%s1 + $0x48] sm:$0xff]
  %v24 = vld [vmem:[%s1 + $0x50] sm:$0xff]
  %v25 = vld [vmem:[%s1 + $0x58] sm:$0xff]
  %v26 = vld [vmem:[%s1 + $0x60] sm:$0xff]
  %v27 = vld [vmem:[%s1 + $0x68] sm:$0xff]
  %v28 = vld [vmem:[%s1 + $0x70] sm:$0xff]
  %v29 = vld [vmem:[%s1 + $0x78] sm:$0xff]
  %v30 = vld [vmem:[%s1 + $0x80] sm:$0xff]
  %v31 = vld [vmem:[%s1 + $0x88] sm:$0xff]
  %v32 = vld [vmem:[%s1 + $0x90] sm:$0x3f]
  %v33 = vld [vmem:[%s2] sm:$0x1]
  %v34 = vld [vmem:[%s0] sm:$0xff]
  %v35 = vld [vmem:[%s0 + $0x8] sm:$0xff]
  %v36 = vld [vmem:[%s0 + $0x10] sm:$0xff]
  %v37 = vld [vmem:[%s0 + $0x18] sm:$0xff]
  %v38 = vld [vmem:[%s0 + $0x20] sm:$0xff]
  %v39 = vld [vmem:[%s0 + $0x28] sm:$0xff]
  %v40 = vld [vmem:[%s0 + $0x30] sm:$0xff]
  %v41 = vld [vmem:[%s0 + $0x38] sm:$0xff]
  %v42 = vld [vmem:[%s0 + $0x40] sm:$0xff]
  %v43 = vld [vmem:[%s0 + $0x48] sm:$0xff]
  %v44 = vld [vmem:[%s0 + $0x50] sm:$0xff]
  %v45 = vld [vmem:[%s0 + $0x58] sm:$0xff]
  %v46 = vld [vmem:[%s0 + $0x60] sm:$0x3]
  %v47 = vld [vmem:[%s0 + $0x68] sm:$0x3]
  %v49 = vlaneseq
  %v50 = vshrl.u32 %v49, 7
  %v51 = vsub.s32 0, %v50
  %v52 = vrot.slane %v33, %v51
  %vm54 = vcmask 179200
  %v56 = vsel %vm54, %v35, 0
  %v59 = vsel %vm54, %v37, 0
  %v62 = vsel %vm54, %v39, 0
  %v65 = vsel %vm54, %v41, 0
  %v68 = vsel %vm54, %v43, 0
  %v71 = vsel %vm54, %v45, 0
  %v74 = vsel %vm54, %v47, 0
  %vm76 = vcmask 1045504
  %v78 = vsel %vm76, %v32, 0
  %80 = vmatprep.subr.mxu0 0.0
  %81 = vmatpush1.msra.mxu0 %v14
  %82 = vmatprep.subr.mxu0 0.0
  %83 = vmatpush1.msra.mxu0 %v15
  %84 = vmatprep.subr.mxu0 0.0
  %85 = vmatpush1.msra.mxu0 %v16
  %86 = vmatprep.subr.mxu0 0.0
  %87 = vmatpush1.msra.mxu0 %v17
  %88 = vmatprep.subr.mxu0 0.0
  %89 = vmatpush1.msra.mxu0 %v18
  %90 = vmatprep.subr.mxu0 0.0
  %91 = vmatpush1.msra.mxu0 %v19
  %92 = vmatprep.subr.mxu0 0.0
  %93 = vmatpush1.msra.mxu0 %v20
  %94 = vmatprep.subr.mxu0 0.0
  %95 = vmatpush1.msra.mxu0 %v21
  %96 = vmatprep.subr.mxu0 0.0
  %97 = vmatpush1.msra.mxu0 %v22
  %98 = vmatprep.subr.mxu0 0.0
  %99 = vmatpush1.msra.mxu0 %v23
  %100 = vmatprep.subr.mxu0 0.0
  %101 = vmatpush1.msra.mxu0 %v24
  %102 = vmatprep.subr.mxu0 0.0
  %103 = vmatpush1.msra.mxu0 %v25
  %104 = vmatprep.subr.mxu0 0.0
  %105 = vmatpush1.msra.mxu0 %v26
  %106 = vmatprep.subr.mxu0 0.0
  %107 = vmatpush1.msra.mxu0 %v27
  %108 = vmatprep.subr.mxu0 0.0
  %109 = vmatpush1.msra.mxu0 %v28
  %110 = vmatprep.subr.mxu0 0.0
  %111 = vmatpush1.msra.mxu0 %v29
  %112 = vmatprep.subr.mxu0 0.0
  %113 = vmatpush1.msra.mxu0 %v30
  %114 = vmatprep.subr.mxu0 0.0
  %115 = vmatpush1.msra.mxu0 %v31
  %116 = vmatprep.subr.mxu0 0.0
  %117 = vmatpush1.msra.mxu0 %v78
  %118 = vmatprep.subr.mxu0 0.0
  %119 = vmatpush1.msra.mxu0 0.0
  %120 = vmatprep.subr.mxu0 0.0
  %121 = vmatpush1.msra.mxu0 0.0
  %122 = vmatprep.subr.mxu0 0.0
  %123 = vmatpush1.msra.mxu0 0.0
  %124 = vmatprep.subr.mxu0 0.0
  %125 = vmatpush1.msra.mxu0 0.0
  %126 = vmatprep.subr.mxu0 0.0
  %127 = vmatpush1.msra.mxu0 0.0
  %128 = vmatprep.subr.mxu0 0.0
  %129 = vmatpush1.msra.mxu0 0.0
  %130 = vmatprep.subr.mxu0 0.0
  %131 = vmatpush1.msra.mxu0 0.0
  %132 = vmatprep.subr.mxu0 0.0
  %133 = vmatpush1.msra.mxu0 0.0
  %134 = vmatprep.subr.mxu0 0.0
  %135 = vmatpush1.msra.mxu0 0.0
  %136 = vmatprep.subr.mxu0 0.0
  %137 = vmatpush1.msra.mxu0 0.0
  %138 = vmatprep.subr.mxu0 0.0
  %139 = vmatpush1.msra.mxu0 0.0
  %140 = vmatprep.subr.mxu0 0.0
  %141 = vmatpush1.msra.mxu0 0.0
  %142 = vmatprep.subr.mxu0 0.0
  %143 = vmatpush1.msra.mxu0 0.0
  %144 = vmatprep.mubr.f32.mxu0 %v56
  %145 = vmatmul.mubr.f32.gmra.mrb[0].mxu0 %v34
  %v146 = vpop.f32.mrb[0].mxu0
  %v147 = vadd.f32 %v52, %v146
  %v148 = vpop.f32.mrb[0].mxu0
  %149 = vmatprep.mubr.f32.mxu0 %v59
  %150 = vmatmul.mubr.f32.gmra.mrb[0].mxu0 %v36
  %v151 = vpop.f32.mrb[0].mxu0
  %v152 = vadd.f32 %v52, %v151
  %v153 = vpop.f32.mrb[0].mxu0
  %154 = vmatprep.mubr.f32.mxu0 %v62
  %155 = vmatmul.mubr.f32.gmra.mrb[0].mxu0 %v38
  %v156 = vpop.f32.mrb[0].mxu0
  %v157 = vadd.f32 %v52, %v156
  %v158 = vpop.f32.mrb[0].mxu0
  %159 = vmatprep.mubr.f32.mxu0 %v65
  %160 = vmatmul.mubr.f32.gmra.mrb[0].mxu0 %v40
  %v161 = vpop.f32.mrb[0].mxu0
  %v162 = vadd.f32 %v52, %v161
  %v163 = vpop.f32.mrb[0].mxu0
  %164 = vmatprep.mubr.f32.mxu0 %v68
  %165 = vmatmul.mubr.f32.gmra.mrb[0].mxu0 %v42
  %v166 = vpop.f32.mrb[0].mxu0
  %v167 = vadd.f32 %v52, %v166
  %v168 = vpop.f32.mrb[0].mxu0
  %169 = vmatprep.mubr.f32.mxu0 %v71
  %170 = vmatmul.mubr.f32.gmra.mrb[0].mxu0 %v44
  %v171 = vpop.f32.mrb[0].mxu0
  %v172 = vadd.f32 %v52, %v171
  %v173 = vpop.f32.mrb[0].mxu0
  %174 = vmatprep.mubr.f32.mxu0 %v74
  %175 = vmatmul.mubr.f32.gmra.mrb[0].mxu0 %v46
  %v176 = vpop.f32.mrb[0].mxu0
  %v177 = vadd.f32 %v52, %v176
  %v178 = vpop.f32.mrb[0].mxu0
  %179 = vdwg.mxu0
  %s180 = scalar_lea.vmem %s0, 112
  %v181 = vld [vmem:[%s180] sm:$0xff]
  %v182 = vld [vmem:[%s180 + $0x8] sm:$0xff]
  %v183 = vld [vmem:[%s180 + $0x10] sm:$0xff]
  %v184 = vld [vmem:[%s180 + $0x18] sm:$0xff]
  %v185 = vld [vmem:[%s180 + $0x20] sm:$0xff]
  %v186 = vld [vmem:[%s180 + $0x28] sm:$0xff]
  %v187 = vld [vmem:[%s180 + $0x30] sm:$0xff]
  %v188 = vld [vmem:[%s180 + $0x38] sm:$0xff]
  %v189 = vld [vmem:[%s180 + $0x40] sm:$0xff]
  %v190 = vld [vmem:[%s180 + $0x48] sm:$0xff]
  %v191 = vld [vmem:[%s180 + $0x50] sm:$0xff]
  %v192 = vld [vmem:[%s180 + $0x58] sm:$0xff]
  %v193 = vld [vmem:[%s180 + $0x60] sm:$0x3]
  %v194 = vld [vmem:[%s180 + $0x68] sm:$0x3]
  %v196 = vsel %vm54, %v182, 0
  %v199 = vsel %vm54, %v184, 0
  %v202 = vsel %vm54, %v186, 0
  %v205 = vsel %vm54, %v188, 0
  %v208 = vsel %vm54, %v190, 0
  %v211 = vsel %vm54, %v192, 0
  %v214 = vsel %vm54, %v194, 0
  %216 = vmatprep.subr.mxu0 0.0
  %217 = vmatpush1.msra.mxu0 %v14
  %218 = vmatprep.subr.mxu0 0.0
  %219 = vmatpush1.msra.mxu0 %v15
  %220 = vmatprep.subr.mxu0 0.0
  %221 = vmatpush1.msra.mxu0 %v16
  %222 = vmatprep.subr.mxu0 0.0
  %223 = vmatpush1.msra.mxu0 %v17
  %224 = vmatprep.subr.mxu0 0.0
  %225 = vmatpush1.msra.mxu0 %v18
  %226 = vmatprep.subr.mxu0 0.0
  %227 = vmatpush1.msra.mxu0 %v19
  %228 = vmatprep.subr.mxu0 0.0
  %229 = vmatpush1.msra.mxu0 %v20
  %230 = vmatprep.subr.mxu0 0.0
  %231 = vmatpush1.msra.mxu0 %v21
  %232 = vmatprep.subr.mxu0 0.0
  %233 = vmatpush1.msra.mxu0 %v22
  %234 = vmatprep.subr.mxu0 0.0
  %235 = vmatpush1.msra.mxu0 %v23
  %236 = vmatprep.subr.mxu0 0.0
  %237 = vmatpush1.msra.mxu0 %v24
  %238 = vmatprep.subr.mxu0 0.0
  %239 = vmatpush1.msra.mxu0 %v25
  %240 = vmatprep.subr.mxu0 0.0
  %241 = vmatpush1.msra.mxu0 %v26
  %242 = vmatprep.subr.mxu0 0.0
  %243 = vmatpush1.msra.mxu0 %v27
  %244 = vmatprep.subr.mxu0 0.0
  %245 = vmatpush1.msra.mxu0 %v28
  %246 = vmatprep.subr.mxu0 0.0
  %247 = vmatpush1.msra.mxu0 %v29
  %248 = vmatprep.subr.mxu0 0.0
  %249 = vmatpush1.msra.mxu0 %v30
  %250 = vmatprep.subr.mxu0 0.0
  %251 = vmatpush1.msra.mxu0 %v31
  %252 = vmatprep.subr.mxu0 0.0
  %253 = vmatpush1.msra.mxu0 %v78
  %254 = vmatprep.subr.mxu0 0.0
  %255 = vmatpush1.msra.mxu0 0.0
  %256 = vmatprep.subr.mxu0 0.0
  %257 = vmatpush1.msra.mxu0 0.0
  %258 = vmatprep.subr.mxu0 0.0
  %259 = vmatpush1.msra.mxu0 0.0
  %260 = vmatprep.subr.mxu0 0.0
  %261 = vmatpush1.msra.mxu0 0.0
  %262 = vmatprep.subr.mxu0 0.0
  %263 = vmatpush1.msra.mxu0 0.0
  %264 = vmatprep.subr.mxu0 0.0
  %265 = vmatpush1.msra.mxu0 0.0
  %266 = vmatprep.subr.mxu0 0.0
  %267 = vmatpush1.msra.mxu0 0.0
  %268 = vmatprep.subr.mxu0 0.0
  %269 = vmatpush1.msra.mxu0 0.0
  %270 = vmatprep.subr.mxu0 0.0
  %271 = vmatpush1.msra.mxu0 0.0
  %272 = vmatprep.subr.mxu0 0.0
  %273 = vmatpush1.msra.mxu0 0.0
  %274 = vmatprep.subr.mxu0 0.0
  %275 = vmatpush1.msra.mxu0 0.0
  %276 = vmatprep.subr.mxu0 0.0
  %277 = vmatpush1.msra.mxu0 0.0
  %278 = vmatprep.subr.mxu0 0.0
  %279 = vmatpush1.msra.mxu0 0.0
  %280 = vmatprep.mubr.f32.mxu0 %v196
  %281 = vmatmul.mubr.f32.gmra.mrb[0].mxu0 %v181
  %v282 = vpop.f32.mrb[0].mxu0
  %v283 = vadd.f32 %v52, %v282
  %v284 = vpop.f32.mrb[0].mxu0
  %285 = vmatprep.mubr.f32.mxu0 %v199
  %286 = vmatmul.mubr.f32.gmra.mrb[0].mxu0 %v183
  %v287 = vpop.f32.mrb[0].mxu0
  %v288 = vadd.f32 %v52, %v287
  %v289 = vpop.f32.mrb[0].mxu0
  %290 = vmatprep.mubr.f32.mxu0 %v202
  %291 = vmatmul.mubr.f32.gmra.mrb[0].mxu0 %v185
  %v292 = vpop.f32.mrb[0].mxu0
  %v293 = vadd.f32 %v52, %v292
  %v294 = vpop.f32.mrb[0].mxu0
  %295 = vmatprep.mubr.f32.mxu0 %v205
  %296 = vmatmul.mubr.f32.gmra.mrb[0].mxu0 %v187
  %v297 = vpop.f32.mrb[0].mxu0
  %v298 = vadd.f32 %v52, %v297
  %v299 = vpop.f32.mrb[0].mxu0
  %300 = vmatprep.mubr.f32.mxu0 %v208
  %301 = vmatmul.mubr.f32.gmra.mrb[0].mxu0 %v189
  %v302 = vpop.f32.mrb[0].mxu0
  %v303 = vadd.f32 %v52, %v302
  %v304 = vpop.f32.mrb[0].mxu0
  %305 = vmatprep.mubr.f32.mxu0 %v211
  %306 = vmatmul.mubr.f32.gmra.mrb[0].mxu0 %v191
  %v307 = vpop.f32.mrb[0].mxu0
  %v308 = vadd.f32 %v52, %v307
  %v309 = vpop.f32.mrb[0].mxu0
  %310 = vmatprep.mubr.f32.mxu0 %v214
  %311 = vmatmul.mubr.f32.gmra.mrb[0].mxu0 %v193
  %v312 = vpop.f32.mrb[0].mxu0
  %v313 = vadd.f32 %v52, %v312
  %v314 = vpop.f32.mrb[0].mxu0
  %315 = vdwg.mxu0
  %v316 = vmax.f32 %v147, %v283
  %v317 = vmax.f32 %v152, %v288
  %v318 = vmax.f32 %v157, %v293
  %v319 = vmax.f32 %v162, %v298
  %v320 = vmax.f32 %v167, %v303
  %v321 = vmax.f32 %v172, %v308
  %v322 = vmax.f32 %v177, %v313
  %s323 = scalar_lea.vmem %s0, 224
  %v324 = vld [vmem:[%s323] sm:$0xff]
  %v325 = vld [vmem:[%s323 + $0x8] sm:$0xff]
  %v326 = vld [vmem:[%s323 + $0x10] sm:$0xff]
  %v327 = vld [vmem:[%s323 + $0x18] sm:$0xff]
  %v328 = vld [vmem:[%s323 + $0x20] sm:$0xff]
  %v329 = vld [vmem:[%s323 + $0x28] sm:$0xff]
  %v330 = vld [vmem:[%s323 + $0x30] sm:$0xff]
  %v331 = vld [vmem:[%s323 + $0x38] sm:$0xff]
  %v332 = vld [vmem:[%s323 + $0x40] sm:$0xff]
  %v333 = vld [vmem:[%s323 + $0x48] sm:$0xff]
  %v334 = vld [vmem:[%s323 + $0x50] sm:$0xff]
  %v335 = vld [vmem:[%s323 + $0x58] sm:$0xff]
  %v336 = vld [vmem:[%s323 + $0x60] sm:$0x3]
  %v337 = vld [vmem:[%s323 + $0x68] sm:$0x3]
  %v339 = vsel %vm54, %v325, 0
  %v342 = vsel %vm54, %v327, 0
  %v345 = vsel %vm54, %v329, 0
  %v348 = vsel %vm54, %v331, 0
  %v351 = vsel %vm54, %v333, 0
  %v354 = vsel %vm54, %v335, 0
  %v357 = vsel %vm54, %v337, 0
  %359 = vmatprep.subr.mxu0 0.0
  %360 = vmatpush1.msra.mxu0 %v14
  %361 = vmatprep.subr.mxu0 0.0
  %362 = vmatpush1.msra.mxu0 %v15
  %363 = vmatprep.subr.mxu0 0.0
  %364 = vmatpush1.msra.mxu0 %v16
  %365 = vmatprep.subr.mxu0 0.0
  %366 = vmatpush1.msra.mxu0 %v17
  %367 = vmatprep.subr.mxu0 0.0
  %368 = vmatpush1.msra.mxu0 %v18
  %369 = vmatprep.subr.mxu0 0.0
  %370 = vmatpush1.msra.mxu0 %v19
  %371 = vmatprep.subr.mxu0 0.0
  %372 = vmatpush1.msra.mxu0 %v20
  %373 = vmatprep.subr.mxu0 0.0
  %374 = vmatpush1.msra.mxu0 %v21
  %375 = vmatprep.subr.mxu0 0.0
  %376 = vmatpush1.msra.mxu0 %v22
  %377 = vmatprep.subr.mxu0 0.0
  %378 = vmatpush1.msra.mxu0 %v23
  %379 = vmatprep.subr.mxu0 0.0
  %380 = vmatpush1.msra.mxu0 %v24
  %381 = vmatprep.subr.mxu0 0.0
  %382 = vmatpush1.msra.mxu0 %v25
  %383 = vmatprep.subr.mxu0 0.0
  %384 = vmatpush1.msra.mxu0 %v26
  %385 = vmatprep.subr.mxu0 0.0
  %386 = vmatpush1.msra.mxu0 %v27
  %387 = vmatprep.subr.mxu0 0.0
  %388 = vmatpush1.msra.mxu0 %v28
  %389 = vmatprep.subr.mxu0 0.0
  %390 = vmatpush1.msra.mxu0 %v29
  %391 = vmatprep.subr.mxu0 0.0
  %392 = vmatpush1.msra.mxu0 %v30
  %393 = vmatprep.subr.mxu0 0.0
  %394 = vmatpush1.msra.mxu0 %v31
  %395 = vmatprep.subr.mxu0 0.0
  %396 = vmatpush1.msra.mxu0 %v78
  %397 = vmatprep.subr.mxu0 0.0
  %398 = vmatpush1.msra.mxu0 0.0
  %399 = vmatprep.subr.mxu0 0.0
  %400 = vmatpush1.msra.mxu0 0.0
  %401 = vmatprep.subr.mxu0 0.0
  %402 = vmatpush1.msra.mxu0 0.0
  %403 = vmatprep.subr.mxu0 0.0
  %404 = vmatpush1.msra.mxu0 0.0
  %405 = vmatprep.subr.mxu0 0.0
  %406 = vmatpush1.msra.mxu0 0.0
  %407 = vmatprep.subr.mxu0 0.0
  %408 = vmatpush1.msra.mxu0 0.0
  %409 = vmatprep.subr.mxu0 0.0
  %410 = vmatpush1.msra.mxu0 0.0
  %411 = vmatprep.subr.mxu0 0.0
  %412 = vmatpush1.msra.mxu0 0.0
  %413 = vmatprep.subr.mxu0 0.0
  %414 = vmatpush1.msra.mxu0 0.0
  %415 = vmatprep.subr.mxu0 0.0
  %416 = vmatpush1.msra.mxu0 0.0
  %417 = vmatprep.subr.mxu0 0.0
  %418 = vmatpush1.msra.mxu0 0.0
  %419 = vmatprep.subr.mxu0 0.0
  %420 = vmatpush1.msra.mxu0 0.0
  %421 = vmatprep.subr.mxu0 0.0
  %422 = vmatpush1.msra.mxu0 0.0
  %423 = vmatprep.mubr.f32.mxu0 %v339
  %424 = vmatmul.mubr.f32.gmra.mrb[0].mxu0 %v324
  %v425 = vpop.f32.mrb[0].mxu0
  %v426 = vadd.f32 %v52, %v425
  %v427 = vpop.f32.mrb[0].mxu0
  %428 = vmatprep.mubr.f32.mxu0 %v342
  %429 = vmatmul.mubr.f32.gmra.mrb[0].mxu0 %v326
  %v430 = vpop.f32.mrb[0].mxu0
  %v431 = vadd.f32 %v52, %v430
  %v432 = vpop.f32.mrb[0].mxu0
  %433 = vmatprep.mubr.f32.mxu0 %v345
  %434 = vmatmul.mubr.f32.gmra.mrb[0].mxu0 %v328
  %v435 = vpop.f32.mrb[0].mxu0
  %v436 = vadd.f32 %v52, %v435
  %v437 = vpop.f32.mrb[0].mxu0
  %438 = vmatprep.mubr.f32.mxu0 %v348
  %439 = vmatmul.mubr.f32.gmra.mrb[0].mxu0 %v330
  %v440 = vpop.f32.mrb[0].mxu0
  %v441 = vadd.f32 %v52, %v440
  %v442 = vpop.f32.mrb[0].mxu0
  %443 = vmatprep.mubr.f32.mxu0 %v351
  %444 = vmatmul.mubr.f32.gmra.mrb[0].mxu0 %v332
  %v445 = vpop.f32.mrb[0].mxu0
  %v446 = vadd.f32 %v52, %v445
  %v447 = vpop.f32.mrb[0].mxu0
  %448 = vmatprep.mubr.f32.mxu0 %v354
  %449 = vmatmul.mubr.f32.gmra.mrb[0].mxu0 %v334
  %v450 = vpop.f32.mrb[0].mxu0
  %v451 = vadd.f32 %v52, %v450
  %v452 = vpop.f32.mrb[0].mxu0
  %453 = vmatprep.mubr.f32.mxu0 %v357
  %454 = vmatmul.mubr.f32.gmra.mrb[0].mxu0 %v336
  %v455 = vpop.f32.mrb[0].mxu0
  %v456 = vadd.f32 %v52, %v455
  %v457 = vpop.f32.mrb[0].mxu0
  %458 = vdwg.mxu0
  %v459 = vmax.f32 %v316, %v426
  %v460 = vmax.f32 %v317, %v431
  %v461 = vmax.f32 %v318, %v436
  %v462 = vmax.f32 %v319, %v441
  %v463 = vmax.f32 %v320, %v446
  %v464 = vmax.f32 %v321, %v451
  %v465 = vmax.f32 %v322, %v456
  %s466 = scalar_lea.vmem %s0, 336
  %v467 = vld [vmem:[%s466] sm:$0xff]
  %v468 = vld [vmem:[%s466 + $0x8] sm:$0xff]
  %v469 = vld [vmem:[%s466 + $0x10] sm:$0xff]
  %v470 = vld [vmem:[%s466 + $0x18] sm:$0xff]
  %v471 = vld [vmem:[%s466 + $0x20] sm:$0xff]
  %v472 = vld [vmem:[%s466 + $0x28] sm:$0xff]
  %v473 = vld [vmem:[%s466 + $0x30] sm:$0xff]
  %v474 = vld [vmem:[%s466 + $0x38] sm:$0xff]
  %v475 = vld [vmem:[%s466 + $0x40] sm:$0xff]
  %v476 = vld [vmem:[%s466 + $0x48] sm:$0xff]
  %v477 = vld [vmem:[%s466 + $0x50] sm:$0xff]
  %v478 = vld [vmem:[%s466 + $0x58] sm:$0xff]
  %v479 = vld [vmem:[%s466 + $0x60] sm:$0x3]
  %v480 = vld [vmem:[%s466 + $0x68] sm:$0x3]
  %v482 = vsel %vm54, %v468, 0
  %v485 = vsel %vm54, %v470, 0
  %v488 = vsel %vm54, %v472, 0
  %v491 = vsel %vm54, %v474, 0
  %v494 = vsel %vm54, %v476, 0
  %v497 = vsel %vm54, %v478, 0
  %v500 = vsel %vm54, %v480, 0
  %502 = vmatprep.subr.mxu0 0.0
  %503 = vmatpush1.msra.mxu0 %v14
  %504 = vmatprep.subr.mxu0 0.0
  %505 = vmatpush1.msra.mxu0 %v15
  %506 = vmatprep.subr.mxu0 0.0
  %507 = vmatpush1.msra.mxu0 %v16
  %508 = vmatprep.subr.mxu0 0.0
  %509 = vmatpush1.msra.mxu0 %v17
  %510 = vmatprep.subr.mxu0 0.0
  %511 = vmatpush1.msra.mxu0 %v18
  %512 = vmatprep.subr.mxu0 0.0
  %513 = vmatpush1.msra.mxu0 %v19
  %514 = vmatprep.subr.mxu0 0.0
  %515 = vmatpush1.msra.mxu0 %v20
  %516 = vmatprep.subr.mxu0 0.0
  %517 = vmatpush1.msra.mxu0 %v21
  %518 = vmatprep.subr.mxu0 0.0
  %519 = vmatpush1.msra.mxu0 %v22
  %520 = vmatprep.subr.mxu0 0.0
  %521 = vmatpush1.msra.mxu0 %v23
  %522 = vmatprep.subr.mxu0 0.0
  %523 = vmatpush1.msra.mxu0 %v24
  %524 = vmatprep.subr.mxu0 0.0
  %525 = vmatpush1.msra.mxu0 %v25
  %526 = vmatprep.subr.mxu0 0.0
  %527 = vmatpush1.msra.mxu0 %v26
  %528 = vmatprep.subr.mxu0 0.0
  %529 = vmatpush1.msra.mxu0 %v27
  %530 = vmatprep.subr.mxu0 0.0
  %531 = vmatpush1.msra.mxu0 %v28
  %532 = vmatprep.subr.mxu0 0.0
  %533 = vmatpush1.msra.mxu0 %v29
  %534 = vmatprep.subr.mxu0 0.0
  %535 = vmatpush1.msra.mxu0 %v30
  %536 = vmatprep.subr.mxu0 0.0
  %537 = vmatpush1.msra.mxu0 %v31
  %538 = vmatprep.subr.mxu0 0.0
  %539 = vmatpush1.msra.mxu0 %v78
  %540 = vmatprep.subr.mxu0 0.0
  %541 = vmatpush1.msra.mxu0 0.0
  %542 = vmatprep.subr.mxu0 0.0
  %543 = vmatpush1.msra.mxu0 0.0
  %544 = vmatprep.subr.mxu0 0.0
  %545 = vmatpush1.msra.mxu0 0.0
  %546 = vmatprep.subr.mxu0 0.0
  %547 = vmatpush1.msra.mxu0 0.0
  %548 = vmatprep.subr.mxu0 0.0
  %549 = vmatpush1.msra.mxu0 0.0
  %550 = vmatprep.subr.mxu0 0.0
  %551 = vmatpush1.msra.mxu0 0.0
  %552 = vmatprep.subr.mxu0 0.0
  %553 = vmatpush1.msra.mxu0 0.0
  %554 = vmatprep.subr.mxu0 0.0
  %555 = vmatpush1.msra.mxu0 0.0
  %556 = vmatprep.subr.mxu0 0.0
  %557 = vmatpush1.msra.mxu0 0.0
  %558 = vmatprep.subr.mxu0 0.0
  %559 = vmatpush1.msra.mxu0 0.0
  %560 = vmatprep.subr.mxu0 0.0
  %561 = vmatpush1.msra.mxu0 0.0
  %562 = vmatprep.subr.mxu0 0.0
  %563 = vmatpush1.msra.mxu0 0.0
  %564 = vmatprep.subr.mxu0 0.0
  %565 = vmatpush1.msra.mxu0 0.0
  %566 = vmatprep.mubr.f32.mxu0 %v482
  %567 = vmatmul.mubr.f32.gmra.mrb[0].mxu0 %v467
  %v568 = vpop.f32.mrb[0].mxu0
  %v569 = vadd.f32 %v52, %v568
  %v570 = vpop.f32.mrb[0].mxu0
  %571 = vmatprep.mubr.f32.mxu0 %v485
  %572 = vmatmul.mubr.f32.gmra.mrb[0].mxu0 %v469
  %v573 = vpop.f32.mrb[0].mxu0
  %v574 = vadd.f32 %v52, %v573
  %v575 = vpop.f32.mrb[0].mxu0
  %576 = vmatprep.mubr.f32.mxu0 %v488
  %577 = vmatmul.mubr.f32.gmra.mrb[0].mxu0 %v471
  %v578 = vpop.f32.mrb[0].mxu0
  %v579 = vadd.f32 %v52, %v578
  %v580 = vpop.f32.mrb[0].mxu0
  %581 = vmatprep.mubr.f32.mxu0 %v491
  %582 = vmatmul.mubr.f32.gmra.mrb[0].mxu0 %v473
  %v583 = vpop.f32.mrb[0].mxu0
  %v584 = vadd.f32 %v52, %v583
  %v585 = vpop.f32.mrb[0].mxu0
  %586 = vmatprep.mubr.f32.mxu0 %v494
  %587 = vmatmul.mubr.f32.gmra.mrb[0].mxu0 %v475
  %v588 = vpop.f32.mrb[0].mxu0
  %v589 = vadd.f32 %v52, %v588
  %v590 = vpop.f32.mrb[0].mxu0
  %591 = vmatprep.mubr.f32.mxu0 %v497
  %592 = vmatmul.mubr.f32.gmra.mrb[0].mxu0 %v477
  %v593 = vpop.f32.mrb[0].mxu0
  %v594 = vadd.f32 %v52, %v593
  %v595 = vpop.f32.mrb[0].mxu0
  %596 = vmatprep.mubr.f32.mxu0 %v500
  %597 = vmatmul.mubr.f32.gmra.mrb[0].mxu0 %v479
  %v598 = vpop.f32.mrb[0].mxu0
  %v599 = vadd.f32 %v52, %v598
  %v600 = vpop.f32.mrb[0].mxu0
  %601 = vdwg.mxu0
  %v602 = vmax.f32 %v459, %v569
  %v603 = vmax.f32 %v460, %v574
  %v604 = vmax.f32 %v461, %v579
  %v605 = vmax.f32 %v462, %v584
  %v606 = vmax.f32 %v463, %v589
  %v607 = vmax.f32 %v464, %v594
  %v608 = vmax.f32 %v465, %v599
  %v609 = vmax.f32 %v602, 0.0
  %v610 = vmax.f32 %v603, 0.0
  %v611 = vmax.f32 %v604, 0.0
  %v612 = vmax.f32 %v605, 0.0
  %v613 = vmax.f32 %v606, 0.0
  %v614 = vmax.f32 %v607, 0.0
  %v615 = vmax.f32 %v608, 0.0
  %vm616 = vcmask 130048
  %617 = vst.msk [vmem:[%s3] sm:$0xff] %vm616, %v609
  %618 = vst.msk [vmem:[%s3 + $0x8] sm:$0xff] %vm616, %v610
  %619 = vst.msk [vmem:[%s3 + $0x10] sm:$0xff] %vm616, %v611
  %620 = vst.msk [vmem:[%s3 + $0x18] sm:$0xff] %vm616, %v612
  %621 = vst.msk [vmem:[%s3 + $0x20] sm:$0xff] %vm616, %v613
  %622 = vst.msk [vmem:[%s3 + $0x28] sm:$0xff] %vm616, %v614
  %vm623 = vcmask 123904
  %624 = vst.msk [vmem:[%s3 + $0x30] sm:$0x3] %vm623, %v615
  // Predicated region
  $region14: #{cnn_cifar_forward.4} parent=0 // pred_check
    _
  $region15: #{cnn_cifar_forward.4} parent=0 // pred_check_branch
    %626 = sbr.rel (0) target = $region17
  $region16: #{cnn_cifar_forward.4} parent=0 // pred_region
    _
  $region17: #{cnn_cifar_forward.4} parent=0 // pred_fallthru
    _
  // Predicated region
  $region18: #{cnn_cifar_forward.4} parent=0 // pred_check
    _
  $region19: #{cnn_cifar_forward.4} parent=0 // pred_check_branch
    %628 = sbr.rel (0) target = $region21
  $region20: #{cnn_cifar_forward.4} parent=0 // pred_region
    _
  $region21: #{cnn_cifar_forward.4} parent=0 // pred_fallthru
    _

// kernel: cnn_cifar_forward.5
$region0: #{cnn_cifar_forward.5}
  #allocation0 [shape = 'u32[]', space=smem, size = 0x4, offset = 0x4, fixed_abs, tag = 'smem constant byte address 0x4 - core index']
  #allocation1 [shape = 'u32[144,128]{1,0:T(1,128)}', space=vmem, size = 0x12000, scoped, tag = 'internal scratch']
  %s0 = inlined_call_operand.vmem [shape: f32[2,400], index: 0, kind: input, shape index: {}]
  %s1 = inlined_call_operand.vmem [shape: f32[400,60], index: 1, kind: input, shape index: {}]
  %s2 = inlined_call_operand.vmem [shape: f32[1,60], index: 2, kind: input, shape index: {}]
  %s3 = inlined_call_operand.vmem [shape: f32[60,32], index: 3, kind: input, shape index: {}]
  %s4 = inlined_call_operand.vmem [shape: f32[1,32], index: 4, kind: input, shape index: {}]
  %s5 = inlined_call_operand.vmem [shape: f32[32,10], index: 5, kind: input, shape index: {}]
  %s6 = inlined_call_operand.vmem [shape: f32[1,10], index: 6, kind: input, shape index: {}]
  %s7 = inlined_call_operand.hbm [shape: f32[2,10], index: 7, kind: output, shape index: {}]
  %s8 = sld [smem:[#allocation0]]
  $region38: #{cnn_cifar_forward.5} parent=0
    _
  %s10 = ssub.s32 1, %s8
  %s11 = scalar_select 0, %s10, %s8
  $region1: #{cnn_cifar_forward.5} parent=0
    #allocation2 [shape = 'u8[1024]{0}', space=vmem, size = 0x400, scoped, tag = 'output window, operand 0, single buffered']
    #allocation3 [shape = 's32[1]{0}', space=sflag, size = 0x4, scoped, tag = 'scoped memory for cnn_cifar_forward.5']
    %12 = vsyncpa [#allocation3], 0
    // Predicated region
    $region2: #{cnn_cifar_forward.5} parent=1 // pred_check
      _
    $region3: #{cnn_cifar_forward.5} parent=1 // pred_check_branch
      %14 = sbr.rel (0) target = $region5
    $region4: #{cnn_cifar_forward.5} parent=1 // pred_region
      _
    $region5: #{cnn_cifar_forward.5} parent=1 // pred_fallthru
      _
    // Predicated region
    $region6: #{cnn_cifar_forward.5} parent=1 // pred_check
      _
    $region7: #{cnn_cifar_forward.5} parent=1 // pred_check_branch
      %16 = sbr.rel (0) target = $region9
    $region8: #{cnn_cifar_forward.5} parent=1 // pred_region
      _
    $region9: #{cnn_cifar_forward.5} parent=1 // pred_fallthru
      _
    // Predicated region
    $region10: #{cnn_cifar_forward.5} parent=1 // pred_check
      _
    $region11: #{cnn_cifar_forward.5} parent=1 // pred_check_branch
      %18 = sbr.rel (0) target = $region13
    $region12: #{cnn_cifar_forward.5} parent=1 // pred_region
      _
    $region13: #{cnn_cifar_forward.5} parent=1 // pred_fallthru
      _
    // Predicated region
    $region14: #{cnn_cifar_forward.5} parent=1 // pred_check
      _
    $region15: #{cnn_cifar_forward.5} parent=1 // pred_check_branch
      %20 = sbr.rel (0) target = $region17
    $region16: #{cnn_cifar_forward.5} parent=1 // pred_region
      _
    $region17: #{cnn_cifar_forward.5} parent=1 // pred_fallthru
      _
    // Predicated region
    $region18: #{cnn_cifar_forward.5} parent=1 // pred_check
      _
    $region19: #{cnn_cifar_forward.5} parent=1 // pred_check_branch
      %22 = sbr.rel (0) target = $region21
    $region20: #{cnn_cifar_forward.5} parent=1 // pred_region
      _
    $region21: #{cnn_cifar_forward.5} parent=1 // pred_fallthru
      _
    // Predicated region
    $region22: #{cnn_cifar_forward.5} parent=1 // pred_check
      _
    $region23: #{cnn_cifar_forward.5} parent=1 // pred_check_branch
      %24 = sbr.rel (0) target = $region25
    $region24: #{cnn_cifar_forward.5} parent=1 // pred_region
      _
    $region25: #{cnn_cifar_forward.5} parent=1 // pred_fallthru
      _
    // Predicated region
    $region26: #{cnn_cifar_forward.5} parent=1 // pred_check
      _
    $region27: #{cnn_cifar_forward.5} parent=1 // pred_check_branch
      %26 = sbr.rel (0) target = $region29
    $region28: #{cnn_cifar_forward.5} parent=1 // pred_region
      _
    $region29: #{cnn_cifar_forward.5} parent=1 // pred_fallthru
      _
    %v27 = vld [vmem:[%s0] sm:$0xff]
    %v28 = vld [vmem:[%s1] sm:$0xff]
    %v29 = vld [vmem:[%s1 + $0x8] sm:$0xff]
    %v30 = vld [vmem:[%s1 + $0x10] sm:$0xff]
    %v31 = vld [vmem:[%s1 + $0x18] sm:$0xff]
    %v32 = vld [vmem:[%s1 + $0x20] sm:$0xff]
    %v33 = vld [vmem:[%s1 + $0x28] sm:$0xff]
    %v34 = vld [vmem:[%s1 + $0x30] sm:$0xff]
    %v35 = vld [vmem:[%s1 + $0x38] sm:$0xff]
    %v36 = vld [vmem:[%s1 + $0x40] sm:$0xff]
    %v37 = vld [vmem:[%s1 + $0x48] sm:$0xff]
    %v38 = vld [vmem:[%s1 + $0x50] sm:$0xff]
    %v39 = vld [vmem:[%s1 + $0x58] sm:$0xff]
    %v40 = vld [vmem:[%s1 + $0x60] sm:$0xff]
    %v41 = vld [vmem:[%s1 + $0x68] sm:$0xff]
    %v42 = vld [vmem:[%s1 + $0x70] sm:$0xff]
    %v43 = vld [vmem:[%s1 + $0x78] sm:$0xff]
    %v44 = vld [vmem:[%s1 + $0x80] sm:$0xff]
    %v45 = vld [vmem:[%s1 + $0x88] sm:$0xff]
    %v46 = vld [vmem:[%s1 + $0x90] sm:$0xff]
    %v47 = vld [vmem:[%s1 + $0x98] sm:$0xff]
    %v48 = vld [vmem:[%s1 + $0xa0] sm:$0xff]
    %v49 = vld [vmem:[%s1 + $0xa8] sm:$0xff]
    %v50 = vld [vmem:[%s1 + $0xb0] sm:$0xff]
    %v51 = vld [vmem:[%s1 + $0xb8] sm:$0xff]
    %v52 = vld [vmem:[%s1 + $0xc0] sm:$0xff]
    %v53 = vld [vmem:[%s1 + $0xc8] sm:$0xff]
    %v54 = vld [vmem:[%s1 + $0xd0] sm:$0xff]
    %v55 = vld [vmem:[%s1 + $0xd8] sm:$0xff]
    %v56 = vld [vmem:[%s1 + $0xe0] sm:$0xff]
    %v57 = vld [vmem:[%s1 + $0xe8] sm:$0xff]
    %v58 = vld [vmem:[%s1 + $0xf0] sm:$0xff]
    %v59 = vld [vmem:[%s1 + $0xf8] sm:$0xff]
    %v60 = vld [vmem:[%s1 + $0x100] sm:$0xff]
    %v61 = vld [vmem:[%s1 + $0x108] sm:$0xff]
    %v62 = vld [vmem:[%s1 + $0x110] sm:$0xff]
    %v63 = vld [vmem:[%s1 + $0x118] sm:$0xff]
    %v64 = vld [vmem:[%s1 + $0x120] sm:$0xff]
    %v65 = vld [vmem:[%s1 + $0x128] sm:$0xff]
    %v66 = vld [vmem:[%s1 + $0x130] sm:$0xff]
    %v67 = vld [vmem:[%s1 + $0x138] sm:$0xff]
    %v68 = vld [vmem:[%s1 + $0x140] sm:$0xff]
    %v69 = vld [vmem:[%s1 + $0x148] sm:$0xff]
    %v70 = vld [vmem:[%s1 + $0x150] sm:$0xff]
    %v71 = vld [vmem:[%s1 + $0x158] sm:$0xff]
    %v72 = vld [vmem:[%s1 + $0x160] sm:$0xff]
    %v73 = vld [vmem:[%s1 + $0x168] sm:$0xff]
    %v74 = vld [vmem:[%s1 + $0x170] sm:$0xff]
    %v75 = vld [vmem:[%s1 + $0x178] sm:$0xff]
    %v76 = vld [vmem:[%s1 + $0x180] sm:$0xff]
    %v77 = vld [vmem:[%s1 + $0x188] sm:$0xff]
    %v78 = vld [vmem:[%s2] sm:$0x1]
    %v80 = vlaneseq
    %v81 = vshrl.u32 %v80, 7
    %v82 = vsub.s32 0, %v81
    %v83 = vrot.slane %v78, %v82
    %v86 = vcombine.high %v27, %v27
    %v88 = vunpack.c.l.s4 1983009808
    %v89 = vunpack.c.0.s8 %v88
    %v90 = vlaneseq
    %v91 = vshrl.u32 %v90, 7
    %v92 = vsub.s32 %v89, %v91
    %v93 = vrot.slane %v27, %v92
    %v95 = vunpack.c.l.s4 1983009808
    %v96 = vunpack.c.0.s8 %v95
    %v97 = vlaneseq
    %v98 = vshrl.u32 %v97, 7
    %v99 = vsub.s32 %v96, %v98
    %v100 = vrot.slane %v86, %v99
    %v101 = vcombine.high %v93, %v93
    %v102 = vcombine.high %v100, %v100
    %vm106 = vcmask 130048
    %v107 = vsel %vm106, %v102, 0
    %109 = vmatprep.subr.mxu0 0.0
    %110 = vmatpush1.msra.mxu0 %v28
    %111 = vmatprep.subr.mxu0 0.0
    %112 = vmatpush1.msra.mxu0 %v29
    %113 = vmatprep.subr.mxu0 0.0
    %114 = vmatpush1.msra.mxu0 %v30
    %115 = vmatprep.subr.mxu0 0.0
    %116 = vmatpush1.msra.mxu0 %v31
    %117 = vmatprep.subr.mxu0 0.0
    %118 = vmatpush1.msra.mxu0 %v32
    %119 = vmatprep.subr.mxu0 0.0
    %120 = vmatpush1.msra.mxu0 %v33
    %121 = vmatprep.subr.mxu0 0.0
    %122 = vmatpush1.msra.mxu0 %v34
    %123 = vmatprep.subr.mxu0 0.0
    %124 = vmatpush1.msra.mxu0 %v35
    %125 = vmatprep.subr.mxu0 0.0
    %126 = vmatpush1.msra.mxu0 %v36
    %127 = vmatprep.subr.mxu0 0.0
    %128 = vmatpush1.msra.mxu0 %v37
    %129 = vmatprep.subr.mxu0 0.0
    %130 = vmatpush1.msra.mxu0 %v38
    %131 = vmatprep.subr.mxu0 0.0
    %132 = vmatpush1.msra.mxu0 %v39
    %133 = vmatprep.subr.mxu0 0.0
    %134 = vmatpush1.msra.mxu0 %v40
    %135 = vmatprep.subr.mxu0 0.0
    %136 = vmatpush1.msra.mxu0 %v41
    %137 = vmatprep.subr.mxu0 0.0
    %138 = vmatpush1.msra.mxu0 %v42
    %139 = vmatprep.subr.mxu0 0.0
    %140 = vmatpush1.msra.mxu0 %v43
    %141 = vmatprep.subr.mxu0 0.0
    %142 = vmatpush1.msra.mxu0 %v44
    %143 = vmatprep.subr.mxu0 0.0
    %144 = vmatpush1.msra.mxu0 %v45
    %145 = vmatprep.subr.mxu0 0.0
    %146 = vmatpush1.msra.mxu0 %v46
    %147 = vmatprep.subr.mxu0 0.0
    %148 = vmatpush1.msra.mxu0 %v47
    %149 = vmatprep.subr.mxu0 0.0
    %150 = vmatpush1.msra.mxu0 %v48
    %151 = vmatprep.subr.mxu0 0.0
    %152 = vmatpush1.msra.mxu0 %v49
    %153 = vmatprep.subr.mxu0 0.0
    %154 = vmatpush1.msra.mxu0 %v50
    %155 = vmatprep.subr.mxu0 0.0
    %156 = vmatpush1.msra.mxu0 %v51
    %157 = vmatprep.subr.mxu0 0.0
    %158 = vmatpush1.msra.mxu0 %v52
    %159 = vmatprep.subr.mxu0 0.0
    %160 = vmatpush1.msra.mxu0 %v53
    %161 = vmatprep.subr.mxu0 0.0
    %162 = vmatpush1.msra.mxu0 %v54
    %163 = vmatprep.subr.mxu0 0.0
    %164 = vmatpush1.msra.mxu0 %v55
    %165 = vmatprep.subr.mxu0 0.0
    %166 = vmatpush1.msra.mxu0 %v56
    %167 = vmatprep.subr.mxu0 0.0
    %168 = vmatpush1.msra.mxu0 %v57
    %169 = vmatprep.subr.mxu0 0.0
    %170 = vmatpush1.msra.mxu0 %v58
    %171 = vmatprep.subr.mxu0 0.0
    %172 = vmatpush1.msra.mxu0 %v59
    %173 = vmatprep.mubr.f32.mxu0 %v101
    %174 = vmatmul.mubr.f32.gmra.mrb[0].mxu0 %v93
    %v175 = vpop.f32.mrb[0].mxu0
    %v176 = vadd.f32 %v83, %v175
    %v177 = vpop.f32.mrb[0].mxu0
    %178 = vdwg.mxu0
    %179 = vmatprep.subr.mxu0 0.0
    %180 = vmatpush1.msra.mxu0 %v60
    %181 = vmatprep.subr.mxu0 0.0
    %182 = vmatpush1.msra.mxu0 %v61
    %183 = vmatprep.subr.mxu0 0.0
    %184 = vmatpush1.msra.mxu0 %v62
    %185 = vmatprep.subr.mxu0 0.0
    %186 = vmatpush1.msra.mxu0 %v63
    %187 = vmatprep.subr.mxu0 0.0
    %188 = vmatpush1.msra.mxu0 %v64
    %189 = vmatprep.subr.mxu0 0.0
    %190 = vmatpush1.msra.mxu0 %v65
    %191 = vmatprep.subr.mxu0 0.0
    %192 = vmatpush1.msra.mxu0 %v66
    %193 = vmatprep.subr.mxu0 0.0
    %194 = vmatpush1.msra.mxu0 %v67
    %195 = vmatprep.subr.mxu0 0.0
    %196 = vmatpush1.msra.mxu0 %v68
    %197 = vmatprep.subr.mxu0 0.0
    %198 = vmatpush1.msra.mxu0 %v69
    %199 = vmatprep.subr.mxu0 0.0
    %200 = vmatpush1.msra.mxu0 %v70
    %201 = vmatprep.subr.mxu0 0.0
    %202 = vmatpush1.msra.mxu0 %v71
    %203 = vmatprep.subr.mxu0 0.0
    %204 = vmatpush1.msra.mxu0 %v72
    %205 = vmatprep.subr.mxu0 0.0
    %206 = vmatpush1.msra.mxu0 %v73
    %207 = vmatprep.subr.mxu0 0.0
    %208 = vmatpush1.msra.mxu0 %v74
    %209 = vmatprep.subr.mxu0 0.0
    %210 = vmatpush1.msra.mxu0 %v75
    %211 = vmatprep.subr.mxu0 0.0
    %212 = vmatpush1.msra.mxu0 %v76
    %213 = vmatprep.subr.mxu0 0.0
    %214 = vmatpush1.msra.mxu0 %v77
    %215 = vmatprep.subr.mxu0 0.0
    %216 = vmatpush1.msra.mxu0 0.0
    %217 = vmatprep.subr.mxu0 0.0
    %218 = vmatpush1.msra.mxu0 0.0
    %219 = vmatprep.subr.mxu0 0.0
    %220 = vmatpush1.msra.mxu0 0.0
    %221 = vmatprep.subr.mxu0 0.0
    %222 = vmatpush1.msra.mxu0 0.0
    %223 = vmatprep.subr.mxu0 0.0
    %224 = vmatpush1.msra.mxu0 0.0
    %225 = vmatprep.subr.mxu0 0.0
    %226 = vmatpush1.msra.mxu0 0.0
    %227 = vmatprep.subr.mxu0 0.0
    %228 = vmatpush1.msra.mxu0 0.0
    %229 = vmatprep.subr.mxu0 0.0
    %230 = vmatpush1.msra.mxu0 0.0
    %231 = vmatprep.subr.mxu0 0.0
    %232 = vmatpush1.msra.mxu0 0.0
    %233 = vmatprep.subr.mxu0 0.0
    %234 = vmatpush1.msra.mxu0 0.0
    %235 = vmatprep.subr.mxu0 0.0
    %236 = vmatpush1.msra.mxu0 0.0
    %237 = vmatprep.subr.mxu0 0.0
    %238 = vmatpush1.msra.mxu0 0.0
    %239 = vmatprep.subr.mxu0 0.0
    %240 = vmatpush1.msra.mxu0 0.0
    %241 = vmatprep.subr.mxu0 0.0
    %242 = vmatpush1.msra.mxu0 0.0
    %243 = vmatprep.mubr.f32.mxu0 %v107
    %244 = vmatmul.mubr.f32.gmra.mrb[0].mxu0 %v100
    %v245 = vpop.f32.mrb[0].mxu0
    %v246 = vadd.f32 %v176, %v245
    %v247 = vpop.f32.mrb[0].mxu0
    %248 = vdwg.mxu0
    %v249 = vmax.f32 %v246, 0.0
    %v250 = vld [vmem:[%s3] sm:$0xff]
    %v251 = vld [vmem:[%s3 + $0x8] sm:$0xff]
    %v252 = vld [vmem:[%s3 + $0x10] sm:$0xff]
    %v253 = vld [vmem:[%s3 + $0x18] sm:$0xff]
    %v254 = vld [vmem:[%s3 + $0x20] sm:$0xff]
    %v255 = vld [vmem:[%s3 + $0x28] sm:$0xff]
    %v256 = vld [vmem:[%s3 + $0x30] sm:$0xff]
    %v257 = vld [vmem:[%s3 + $0x38] sm:$0xf]
    %v258 = vld [vmem:[%s4] sm:$0x1]
    %v260 = vlaneseq
    %v261 = vshrl.u32 %v260, 7
    %v262 = vsub.s32 0, %v261
    %v263 = vrot.slane %v258, %v262
    %vm265 = vcmask 490496
    %v267 = vsel %vm265, %v249, 0
    %vm269 = vcmask 1043456
    %v271 = vsel %vm269, %v257, 0
    %273 = vmatprep.subr.mxu0 0.0
    %274 = vmatpush1.msra.mxu0 %v250
    %275 = vmatprep.subr.mxu0 0.0
    %276 = vmatpush1.msra.mxu0 %v251
    %277 = vmatprep.subr.mxu0 0.0
    %278 = vmatpush1.msra.mxu0 %v252
    %279 = vmatprep.subr.mxu0 0.0
    %280 = vmatpush1.msra.mxu0 %v253
    %281 = vmatprep.subr.mxu0 0.0
    %282 = vmatpush1.msra.mxu0 %v254
    %283 = vmatprep.subr.mxu0 0.0
    %284 = vmatpush1.msra.mxu0 %v255
    %285 = vmatprep.subr.mxu0 0.0
    %286 = vmatpush1.msra.mxu0 %v256
    %287 = vmatprep.subr.mxu0 0.0
    %288 = vmatpush1.msra.mxu0 %v271
    %289 = vmatprep.subr.mxu0 0.0
    %290 = vmatpush1.msra.mxu0 0.0
    %291 = vmatprep.subr.mxu0 0.0
    %292 = vmatpush1.msra.mxu0 0.0
    %293 = vmatprep.subr.mxu0 0.0
    %294 = vmatpush1.msra.mxu0 0.0
    %295 = vmatprep.subr.mxu0 0.0
    %296 = vmatpush1.msra.mxu0 0.0
    %297 = vmatprep.subr.mxu0 0.0
    %298 = vmatpush1.msra.mxu0 0.0
    %299 = vmatprep.subr.mxu0 0.0
    %300 = vmatpush1.msra.mxu0 0.0
    %301 = vmatprep.subr.mxu0 0.0
    %302 = vmatpush1.msra.mxu0 0.0
    %303 = vmatprep.subr.mxu0 0.0
    %304 = vmatpush1.msra.mxu0 0.0
    %305 = vmatprep.subr.mxu0 0.0
    %306 = vmatpush1.msra.mxu0 0.0
    %307 = vmatprep.subr.mxu0 0.0
    %308 = vmatpush1.msra.mxu0 0.0
    %309 = vmatprep.subr.mxu0 0.0
    %310 = vmatpush1.msra.mxu0 0.0
    %311 = vmatprep.subr.mxu0 0.0
    %312 = vmatpush1.msra.mxu0 0.0
    %313 = vmatprep.subr.mxu0 0.0
    %314 = vmatpush1.msra.mxu0 0.0
    %315 = vmatprep.subr.mxu0 0.0
    %316 = vmatpush1.msra.mxu0 0.0
    %317 = vmatprep.subr.mxu0 0.0
    %318 = vmatpush1.msra.mxu0 0.0
    %319 = vmatprep.subr.mxu0 0.0
    %320 = vmatpush1.msra.mxu0 0.0
    %321 = vmatprep.subr.mxu0 0.0
    %322 = vmatpush1.msra.mxu0 0.0
    %323 = vmatprep.subr.mxu0 0.0
    %324 = vmatpush1.msra.mxu0 0.0
    %325 = vmatprep.subr.mxu0 0.0
    %326 = vmatpush1.msra.mxu0 0.0
    %327 = vmatprep.subr.mxu0 0.0
    %328 = vmatpush1.msra.mxu0 0.0
    %329 = vmatprep.subr.mxu0 0.0
    %330 = vmatpush1.msra.mxu0 0.0
    %331 = vmatprep.subr.mxu0 0.0
    %332 = vmatpush1.msra.mxu0 0.0
    %333 = vmatprep.subr.mxu0 0.0
    %334 = vmatpush1.msra.mxu0 0.0
    %335 = vmatprep.subr.mxu0 0.0
    %336 = vmatpush1.msra.mxu0 0.0
    %337 = vmatprep.mubr.f32.mxu0 0.0
    %338 = vmatmul.mubr.f32.gmra.mrb[0].mxu0 %v267
    %v339 = vpop.f32.mrb[0].mxu0
    %v340 = vadd.f32 %v263, %v339
    %v341 = vpop.f32.mrb[0].mxu0
    %342 = vdwg.mxu0
    %v343 = vmax.f32 %v340, 0.0
    %v344 = vld [vmem:[%s5] sm:$0xff]
    %v345 = vld [vmem:[%s5 + $0x8] sm:$0xff]
    %v346 = vld [vmem:[%s5 + $0x10] sm:$0xff]
    %v347 = vld [vmem:[%s5 + $0x18] sm:$0xff]
    %v348 = vld [vmem:[%s6] sm:$0x1]
    %v350 = vlaneseq
    %v351 = vshrl.u32 %v350, 7
    %v352 = vsub.s32 0, %v351
    %v353 = vrot.slane %v348, %v352
    %vm355 = vcmask 261120
    %v357 = vsel %vm355, %v343, 0
    %359 = vmatprep.subr.mxu0 0.0
    %360 = vmatpush1.msra.mxu0 %v344
    %361 = vmatprep.subr.mxu0 0.0
    %362 = vmatpush1.msra.mxu0 %v345
    %363 = vmatprep.subr.mxu0 0.0
    %364 = vmatpush1.msra.mxu0 %v346
    %365 = vmatprep.subr.mxu0 0.0
    %366 = vmatpush1.msra.mxu0 %v347
    %367 = vmatprep.subr.mxu0 0.0
    %368 = vmatpush1.msra.mxu0 0.0
    %369 = vmatprep.subr.mxu0 0.0
    %370 = vmatpush1.msra.mxu0 0.0
    %371 = vmatprep.subr.mxu0 0.0
    %372 = vmatpush1.msra.mxu0 0.0
    %373 = vmatprep.subr.mxu0 0.0
    %374 = vmatpush1.msra.mxu0 0.0
    %375 = vmatprep.subr.mxu0 0.0
    %376 = vmatpush1.msra.mxu0 0.0
    %377 = vmatprep.subr.mxu0 0.0
    %378 = vmatpush1.msra.mxu0 0.0
    %379 = vmatprep.subr.mxu0 0.0
    %380 = vmatpush1.msra.mxu0 0.0
    %381 = vmatprep.subr.mxu0 0.0
    %382 = vmatpush1.msra.mxu0 0.0
    %383 = vmatprep.subr.mxu0 0.0
    %384 = vmatpush1.msra.mxu0 0.0
    %385 = vmatprep.subr.mxu0 0.0
    %386 = vmatpush1.msra.mxu0 0.0
    %387 = vmatprep.subr.mxu0 0.0
    %388 = vmatpush1.msra.mxu0 0.0
    %389 = vmatprep.subr.mxu0 0.0
    %390 = vmatpush1.msra.mxu0 0.0
    %391 = vmatprep.subr.mxu0 0.0
    %392 = vmatpush1.msra.mxu0 0.0
    %393 = vmatprep.subr.mxu0 0.0
    %394 = vmatpush1.msra.mxu0 0.0
    %395 = vmatprep.subr.mxu0 0.0
    %396 = vmatpush1.msra.mxu0 0.0
    %397 = vmatprep.subr.mxu0 0.0
    %398 = vmatpush1.msra.mxu0 0.0
    %399 = vmatprep.subr.mxu0 0.0
    %400 = vmatpush1.msra.mxu0 0.0
    %401 = vmatprep.subr.mxu0 0.0
    %402 = vmatpush1.msra.mxu0 0.0
    %403 = vmatprep.subr.mxu0 0.0
    %404 = vmatpush1.msra.mxu0 0.0
    %405 = vmatprep.subr.mxu0 0.0
    %406 = vmatpush1.msra.mxu0 0.0
    %407 = vmatprep.subr.mxu0 0.0
    %408 = vmatpush1.msra.mxu0 0.0
    %409 = vmatprep.subr.mxu0 0.0
    %410 = vmatpush1.msra.mxu0 0.0
    %411 = vmatprep.subr.mxu0 0.0
    %412 = vmatpush1.msra.mxu0 0.0
    %413 = vmatprep.subr.mxu0 0.0
    %414 = vmatpush1.msra.mxu0 0.0
    %415 = vmatprep.subr.mxu0 0.0
    %416 = vmatpush1.msra.mxu0 0.0
    %417 = vmatprep.subr.mxu0 0.0
    %418 = vmatpush1.msra.mxu0 0.0
    %419 = vmatprep.subr.mxu0 0.0
    %420 = vmatpush1.msra.mxu0 0.0
    %421 = vmatprep.subr.mxu0 0.0
    %422 = vmatpush1.msra.mxu0 0.0
    %423 = vmatprep.mubr.f32.mxu0 0.0
    %424 = vmatmul.mubr.f32.gmra.mrb[0].mxu0 %v357
    %v425 = vpop.f32.mrb[0].mxu0
    %v426 = vadd.f32 %v353, %v425
    %v427 = vpop.f32.mrb[0].mxu0
    %428 = vdwg.mxu0
    %vm429 = vcmask 74752
    %v430 = vsel %vm429, %v426, -inf
    %431 = vmax.xlane.f32.xlu0 %v430
    %v432 = vpop.xlane.xlu0 %431
    %v433 = vsub.f32 %v426, %v432
    %v434 = vmul.f32 %v433, 1.442695
    %v435 = vpow.pop %v434
    %v436 = vsel %vm429, %v435, 0.0
    %437 = vadd.xlane.f32.xlu0 %v436
    %v438 = vpop.xlane.xlu0 %437
    %v439 = vlog2.pop %v438
    %v440 = vmul.f32 %v439, 0.6931472
    %v441 = vadd.f32 %v432, %v440
    %v442 = vsub.f32 %v426, %v441
    %443 = vst.msk [vmem:[#allocation2] sm:$0x3] %vm429, %v442
    // Predicated region
    $region30: #{cnn_cifar_forward.5} parent=1 // pred_check
      _
    $region31: #{cnn_cifar_forward.5} parent=1 // pred_check_branch
      %445 = sbr.rel (0) target = $region33
    $region32: #{cnn_cifar_forward.5} parent=1 // pred_region
      %s447 = ssub.s32 32, 32
      %448 = vsyncadd [#allocation3], %s447
      %s450 = sshll.u32 [#allocation2], 4
      %s451 = int_to_ptr.vmem [resolvable:$true] %s450
      %453 = dma.vmem_to_hbm [thread:$0]  %s451, 32, %s7, [#allocation3]
    $region33: #{cnn_cifar_forward.5} parent=1 // pred_fallthru
      _
    // Predicated region
    $region34: #{cnn_cifar_forward.5} parent=1 // pred_check
      _
    $region35: #{cnn_cifar_forward.5} parent=1 // pred_check_branch
      %455 = sbr.rel (0) target = $region37
    $region36: #{cnn_cifar_forward.5} parent=1 // pred_region
      %456 = dma.done [#allocation3], 32
    $region37: #{cnn_cifar_forward.5} parent=1 // pred_fallthru
      _
    %457 = vsyncpa [#allocation3], 1

</llo_original>
